<compile_context>
chip_gen: v7x
topology: tpu7x:2x2x1
jax: 0.10.0
libtpu: 0.0.40
codegen_flags: <defaults>
</compile_context>

<pallas_src>
import functools

import jax
import jax.numpy as jnp
from jax.experimental import pallas as pl
from jax.experimental.pallas import tpu as pltpu

PSF = 2       # assumed value of c.psf
CPAD = 128    # lane-dense channel padding


# --------------------------------------------------------------------------- #
# Fused kernel: conv1(+LReLU+IN) -> conv2(+LReLU+IN) -> conv3(+Sigmoid)        #
# --------------------------------------------------------------------------- #
def _fused_decoder_kernel(x_ref, w1_ref, b1_ref, w2_ref, b2_ref,
                          w3_ref, b3_ref, o_ref, act_a, act_b, *, H, W):
    """One batch sample; all intermediates stay in two bf16 VMEM scratches.

    x_ref  : (1, H*(W+2), 128) bf16  row-extended, channel-padded input
    w*_ref : (9, 128, 128)     bf16  per-tap weights (Cin/Cout padded to 128)
    b*_ref : (1, 128)          f32   channel-padded biases
    o_ref  : (1, H*(W+2), 128) bf16  conv3+sigmoid output (halo cols are junk)
    act_a/b: ((H+4)*(W+2), 128) bf16 flat padded activation scratches
    """
    Wp = W + 2
    HWp = H * Wp
    top = 2 * Wp                 # flat row where the interior starts
    bot = (H + 2) * Wp           # flat row just past the interior

    # Column-validity mask in the row-extended (H, W+2) layout: columns 0 and
    # W+1 are halo/junk.  Used for masked InstanceNorm stats and halo zeroing.
    col = jax.lax.broadcasted_iota(jnp.int32, (HWp, CPAD), 0) % Wp
    valid = jnp.logical_and(col >= 1, col <= W)

    def leaky_relu(h):
        return jnp.where(h >= 0, h, 0.01 * h)

    def instance_norm(h):
        # InstanceNorm2d(affine=False), eps=1e-5, biased variance over the
        # H*W valid pixels (two-pass, centered variance for parity).
        inv_n = 1.0 / float(H * W)
        mean = jnp.sum(jnp.where(valid, h, 0.0), axis=0, keepdims=True) * inv_n
        c = h - mean
        var = jnp.sum(jnp.where(valid, c * c, 0.0), axis=0, keepdims=True) * inv_n
        return c * jax.lax.rsqrt(var + 1e-5)

    def store_interior(dst_ref, h):
        # Contiguous store of the whole (H, W+2) slab; halo columns zeroed so
        # they act as the left/right conv padding for the next layer.
        dst_ref[top:bot, :] = jnp.where(valid, h, 0.0).astype(jnp.bfloat16)

    def conv3x3(src_ref, w_ref, b_ref):
        # 9 taps; each tap is a contiguous flat row-slice of the padded
        # activation (no reshape/repack) feeding one (H*(W+2),128)x(128,128)
        # bf16 MXU matmul with f32 accumulation.
        acc = jnp.zeros((HWp, CPAD), jnp.float32)
        for k in range(9):                       # static unrolled taps
            dy, dx = k // 3, k % 3
            start = (dy + 1) * Wp + dx - 1
            acc = acc + jnp.dot(src_ref[start:start + HWp, :], w_ref[k],
                                preferred_element_type=jnp.float32)
        return acc + b_ref[...]

    # Re-zero only the halo/spare rows (4*(W+2) rows per scratch).  Done every
    # step so correctness does not depend on scratch persistence per core.
    halo = jnp.zeros((2 * Wp, CPAD), jnp.bfloat16)
    act_a[0:top, :] = halo
    act_a[bot:bot + 2 * Wp, :] = halo
    act_b[0:top, :] = halo
    act_b[bot:bot + 2 * Wp, :] = halo

    # Input sample -> scratch A interior (already column/channel padded, bf16),
    # so conv1 is structurally identical to conv2/3.
    act_a[top:bot, :] = x_ref[0]

    # ---- layer 1: conv(12->96) + LeakyReLU + InstanceNorm -------------------
    h = instance_norm(leaky_relu(conv3x3(act_a, w1_ref, b1_ref)))
    store_interior(act_b, h)

    # ---- layer 2: conv(96->96) + LeakyReLU + InstanceNorm -------------------
    h = instance_norm(leaky_relu(conv3x3(act_b, w2_ref, b2_ref)))
    store_interior(act_a, h)

    # ---- layer 3: conv(96->12) + exact Sigmoid (f32 math, bf16 store) -------
    h = conv3x3(act_a, w3_ref, b3_ref)
    o_ref[0] = (1.0 / (1.0 + jnp.exp(-h))).astype(jnp.bfloat16)


# --------------------------------------------------------------------------- #
# Plain-JAX glue: pixel (un)shuffle, parameter prep/init, wrapper              #
# --------------------------------------------------------------------------- #
def pixel_unshuffle(x, r):
    # matches torch.nn.PixelUnshuffle channel ordering
    N, C, H, W = x.shape
    x = x.reshape(N, C, H // r, r, W // r, r)
    x = jnp.transpose(x, (0, 1, 3, 5, 2, 4))
    return x.reshape(N, C * r * r, H // r, W // r)


def pixel_shuffle(x, r):
    # matches torch.nn.PixelShuffle channel ordering
    N, C, H, W = x.shape
    x = x.reshape(N, C // (r * r), r, r, H, W)
    x = jnp.transpose(x, (0, 1, 4, 2, 5, 3))
    return x.reshape(N, C // (r * r), H * r, W * r)


def _prep_conv(w, b):
    """PyTorch-layout (Cout, Cin, 3, 3) weight -> (9, 128, 128) bf16 + f32 bias."""
    co, ci = w.shape[0], w.shape[1]
    wk = jnp.transpose(w, (2, 3, 1, 0)).reshape(9, ci, co)       # tap = dy*3+dx
    wk = jnp.pad(wk, ((0, 0), (0, CPAD - ci), (0, CPAD - co))).astype(jnp.bfloat16)
    bk = jnp.pad(b, (0, CPAD - co)).reshape(1, CPAD).astype(jnp.float32)
    return wk, bk


def init_params(key, input_channel, output_channels):
    def conv_init(kw, kb, co, ci):
        fan_in = ci * 9
        bound = 1.0 / float(fan_in) ** 0.5
        w = jax.random.uniform(kw, (co, ci, 3, 3), jnp.float32, -bound, bound)
        b = jax.random.uniform(kb, (co,), jnp.float32, -bound, bound)
        return w, b

    ks = jax.random.split(key, 6)
    w1, b1 = conv_init(ks[0], ks[1], 96, input_channel)
    w2, b2 = conv_init(ks[2], ks[3], 96, 96)
    w3, b3 = conv_init(ks[4], ks[5], output_channels, 96)
    return dict(w1=w1, b1=b1, w2=w2, b2=b2, w3=w3, b3=b3)


@jax.jit
def decoding_network_forward(x_nchw, params):
    x = pixel_unshuffle(x_nchw, PSF)              # (N, 3*psf^2, H, W)
    x = jnp.transpose(x, (0, 2, 3, 1))            # NCHW -> NHWC
    N, H, W, cin = x.shape
    Wp = W + 2

    # Row-extended (zero left/right halo columns), channel-padded, bf16 input.
    x = jnp.pad(x.astype(jnp.bfloat16),
                ((0, 0), (0, 0), (1, 1), (0, CPAD - cin)))
    x1 = x.reshape(N, H * Wp, CPAD)

    w1, b1 = _prep_conv(params["w1"], params["b1"])
    w2, b2 = _prep_conv(params["w2"], params["b2"])
    w3, b3 = _prep_conv(params["w3"], params["b3"])
    cout3 = params["w3"].shape[0]

    rows = (H + 4) * Wp

    def wspec3(shape):   # constant-index weights: no double buffering
        return pl.BlockSpec(shape, lambda n: (0, 0, 0),
                            pipeline_mode=pl.Buffered(1))

    def wspec2(shape):
        return pl.BlockSpec(shape, lambda n: (0, 0),
                            pipeline_mode=pl.Buffered(1))

    out = pl.pallas_call(
        functools.partial(_fused_decoder_kernel, H=H, W=W),
        out_shape=jax.ShapeDtypeStruct((N, H * Wp, CPAD), jnp.bfloat16),
        grid_spec=pltpu.PrefetchScalarGridSpec(
            num_scalar_prefetch=0,
            grid=(N,),
            in_specs=[
                pl.BlockSpec((1, H * Wp, CPAD), lambda n: (n, 0, 0)),   # x
                wspec3((9, CPAD, CPAD)), wspec2((1, CPAD)),             # w1, b1
                wspec3((9, CPAD, CPAD)), wspec2((1, CPAD)),             # w2, b2
                wspec3((9, CPAD, CPAD)), wspec2((1, CPAD)),             # w3, b3
            ],
            out_specs=pl.BlockSpec((1, H * Wp, CPAD), lambda n: (n, 0, 0)),
            scratch_shapes=[
                pltpu.VMEM((rows, CPAD), jnp.bfloat16),   # activation ping
                pltpu.VMEM((rows, CPAD), jnp.bfloat16),   # activation pong
            ],
        ),
        compiler_params=pltpu.CompilerParams(
            dimension_semantics=("parallel",)),
    )(x1, w1, b1, w2, b2, w3, b3)

    # Drop halo columns and padded channels, back to NCHW, then PixelShuffle.
    y = out.reshape(N, H, Wp, CPAD)[:, :, 1:1 + W, :cout3]
    y = jnp.transpose(y, (0, 3, 1, 2))
    return pixel_shuffle(y, PSF).astype(jnp.float32)


if __name__ == "__main__":
    key = jax.random.PRNGKey(0)
    k_x, k_p = jax.random.split(key)

    # Input image: N=2, 3 channels, 16x16 spatial (NCHW, like the PyTorch module).
    x = jax.random.normal(k_x, (2, 3, 16, 16), jnp.float32)

    in_ch = 3 * PSF * PSF    # 12 : channels after PixelUnshuffle(2)
    out_ch = 3 * PSF * PSF   # 12 : channels before PixelShuffle(2)
    params = init_params(k_p, in_ch, out_ch)

    y = decoding_network_forward(x, params)
    y = jax.block_until_ready(y)
    assert y.shape == (2, 3, 16, 16), y.shape
    assert bool(jnp.all(jnp.isfinite(y)))
    print("KERNEL_OK")
</pallas_src>

<mosaic_0001>
module attributes {stable_mosaic.version = 11 : i64} {
  func.func @_fused_decoder_kernel(%arg0: i32, %arg1: memref<1x80x128xbf16, #tpu.memory_space<vmem>>, %arg2: memref<9x128x128xbf16, #tpu.memory_space<vmem>>, %arg3: memref<1x128xf32, #tpu.memory_space<vmem>>, %arg4: memref<9x128x128xbf16, #tpu.memory_space<vmem>>, %arg5: memref<1x128xf32, #tpu.memory_space<vmem>>, %arg6: memref<9x128x128xbf16, #tpu.memory_space<vmem>>, %arg7: memref<1x128xf32, #tpu.memory_space<vmem>>, %arg8: memref<1x80x128xbf16, #tpu.memory_space<vmem>>, %arg9: memref<120x128xbf16, #tpu.memory_space<vmem>>, %arg10: memref<120x128xbf16, #tpu.memory_space<vmem>>) attributes {dimension_semantics = [#tpu.dimension_semantics<parallel>], iteration_bounds = array<i64: 2>, scalar_prefetch = 0 : i64, scratch_operands = 2 : i64, tpu.core_type = #tpu.core_type<tc>, window_params = [{transform_indices = @transform_0, window_bounds = array<i64: 1, 80, 128>}, {pipeline_mode = #tpu.pipeline_mode<synchronous>, transform_indices = @transform_1, window_bounds = array<i64: 9, 128, 128>}, {pipeline_mode = #tpu.pipeline_mode<synchronous>, transform_indices = @transform_2, window_bounds = array<i64: 1, 128>}, {pipeline_mode = #tpu.pipeline_mode<synchronous>, transform_indices = @transform_3, window_bounds = array<i64: 9, 128, 128>}, {pipeline_mode = #tpu.pipeline_mode<synchronous>, transform_indices = @transform_4, window_bounds = array<i64: 1, 128>}, {pipeline_mode = #tpu.pipeline_mode<synchronous>, transform_indices = @transform_5, window_bounds = array<i64: 9, 128, 128>}, {pipeline_mode = #tpu.pipeline_mode<synchronous>, transform_indices = @transform_6, window_bounds = array<i64: 1, 128>}, {transform_indices = @transform_7, window_bounds = array<i64: 1, 80, 128>}]} {
    %0 = tpu.iota {dimensions = array<i32: 0>} : vector<80x128xi32>
    %c10_i32 = arith.constant 10 : i32
    %c0_i32 = arith.constant 0 : i32
    %1 = arith.cmpi eq, %c10_i32, %c0_i32 : i32
    %c1_i32 = arith.constant 1 : i32
    %2 = arith.select %1, %c1_i32, %c10_i32 : i32
    %3 = vector.broadcast %2 : i32 to vector<80x128xi32>
    %4 = arith.remsi %0, %3 : vector<80x128xi32>
    %c0_i32_0 = arith.constant 0 : i32
    %5 = vector.broadcast %c0_i32_0 : i32 to vector<80x128xi32>
    %6 = arith.cmpi ne, %4, %5 : vector<80x128xi32>
    %c0_i32_1 = arith.constant 0 : i32
    %7 = vector.broadcast %c0_i32_1 : i32 to vector<80x128xi32>
    %8 = arith.cmpi slt, %4, %7 : vector<80x128xi32>
    %c0_i32_2 = arith.constant 0 : i32
    %9 = arith.cmpi slt, %2, %c0_i32_2 : i32
    %10 = vector.broadcast %9 : i1 to vector<80x128xi1>
    %11 = vector.broadcast %10 : vector<80x128xi1> to vector<80x128xi1>
    %12 = arith.xori %8, %11 : vector<80x128xi1>
    %13 = arith.andi %12, %6 : vector<80x128xi1>
    %14 = vector.broadcast %2 : i32 to vector<80x128xi32>
    %15 = arith.addi %4, %14 : vector<80x128xi32>
    %16 = arith.select %13, %15, %4 : vector<80x128xi1>, vector<80x128xi32>
    %c1_i32_3 = arith.constant 1 : i32
    %17 = vector.broadcast %c1_i32_3 : i32 to vector<80x128xi32>
    %18 = arith.cmpi sge, %16, %17 : vector<80x128xi32>
    %c8_i32 = arith.constant 8 : i32
    %19 = vector.broadcast %c8_i32 : i32 to vector<80x128xi32>
    %20 = arith.cmpi sle, %16, %19 : vector<80x128xi32>
    %21 = arith.andi %18, %20 : vector<80x128xi1>
    %cst = arith.constant 0.000000e+00 : bf16
    %22 = vector.broadcast %cst : bf16 to vector<20x128xbf16>
    %c0 = arith.constant 0 : index
    %c0_4 = arith.constant 0 : index
    %23 = vector.load %arg9[%c0, %c0_4] : memref<120x128xbf16, #tpu.memory_space<vmem>>, vector<20x128xbf16>
    tpu.vector_store %arg9[%c0, %c0_4], %22 {strides = array<i32>} : memref<120x128xbf16, #tpu.memory_space<vmem>>, vector<20x128xbf16>,
    %c100 = arith.constant 100 : index
    %c0_5 = arith.constant 0 : index
    %24 = vector.load %arg9[%c100, %c0_5] : memref<120x128xbf16, #tpu.memory_space<vmem>>, vector<20x128xbf16>
    tpu.vector_store %arg9[%c100, %c0_5], %22 {strides = array<i32>} : memref<120x128xbf16, #tpu.memory_space<vmem>>, vector<20x128xbf16>,
    %c0_6 = arith.constant 0 : index
    %c0_7 = arith.constant 0 : index
    %25 = vector.load %arg10[%c0_6, %c0_7] : memref<120x128xbf16, #tpu.memory_space<vmem>>, vector<20x128xbf16>
    tpu.vector_store %arg10[%c0_6, %c0_7], %22 {strides = array<i32>} : memref<120x128xbf16, #tpu.memory_space<vmem>>, vector<20x128xbf16>,
    %c100_8 = arith.constant 100 : index
    %c0_9 = arith.constant 0 : index
    %26 = vector.load %arg10[%c100_8, %c0_9] : memref<120x128xbf16, #tpu.memory_space<vmem>>, vector<20x128xbf16>
    tpu.vector_store %arg10[%c100_8, %c0_9], %22 {strides = array<i32>} : memref<120x128xbf16, #tpu.memory_space<vmem>>, vector<20x128xbf16>,
    %c0_10 = arith.constant 0 : index
    %c0_11 = arith.constant 0 : index
    %c0_12 = arith.constant 0 : index
    %27 = vector.load %arg1[%c0_10, %c0_11, %c0_12] : memref<1x80x128xbf16, #tpu.memory_space<vmem>>, vector<1x80x128xbf16>
    %28 = vector.shape_cast %27 : vector<1x80x128xbf16> to vector<80x128xbf16>
    %c20 = arith.constant 20 : index
    %c0_13 = arith.constant 0 : index
    %29 = vector.load %arg9[%c20, %c0_13] : memref<120x128xbf16, #tpu.memory_space<vmem>>, vector<80x128xbf16>
    tpu.vector_store %arg9[%c20, %c0_13], %28 {strides = array<i32>} : memref<120x128xbf16, #tpu.memory_space<vmem>>, vector<80x128xbf16>,
    %cst_14 = arith.constant 0.000000e+00 : f32
    %30 = vector.broadcast %cst_14 : f32 to vector<80x128xf32>
    %c9 = arith.constant 9 : index
    %c0_15 = arith.constant 0 : index
    %31 = vector.load %arg9[%c9, %c0_15] : memref<120x128xbf16, #tpu.memory_space<vmem>>, vector<80x128xbf16>
    %c0_16 = arith.constant 0 : index
    %c0_17 = arith.constant 0 : index
    %c0_18 = arith.constant 0 : index
    %32 = vector.load %arg2[%c0_16, %c0_17, %c0_18] : memref<9x128x128xbf16, #tpu.memory_space<vmem>>, vector<1x128x128xbf16>
    %33 = vector.shape_cast %32 : vector<1x128x128xbf16> to vector<128x128xbf16>
    %cst_19 = arith.constant dense<0.000000e+00> : vector<80x128xf32>
    %34 = tpu.matmul %31, %33, %cst_19 {dimension_numbers = #tpu.dot_dimension_numbers<[1], [0], [0], [1], [0, 0, 1, 1], [], []>} : vector<80x128xbf16>, vector<128x128xbf16>, vector<80x128xf32> -> vector<80x128xf32>
    %35 = arith.addf %30, %34 : vector<80x128xf32>
    %c10 = arith.constant 10 : index
    %c0_20 = arith.constant 0 : index
    %36 = vector.load %arg9[%c10, %c0_20] : memref<120x128xbf16, #tpu.memory_space<vmem>>, vector<80x128xbf16>
    %c1 = arith.constant 1 : index
    %c0_21 = arith.constant 0 : index
    %c0_22 = arith.constant 0 : index
    %37 = vector.load %arg2[%c1, %c0_21, %c0_22] : memref<9x128x128xbf16, #tpu.memory_space<vmem>>, vector<1x128x128xbf16>
    %38 = vector.shape_cast %37 : vector<1x128x128xbf16> to vector<128x128xbf16>
    %cst_23 = arith.constant dense<0.000000e+00> : vector<80x128xf32>
    %39 = tpu.matmul %36, %38, %cst_23 {dimension_numbers = #tpu.dot_dimension_numbers<[1], [0], [0], [1], [0, 0, 1, 1], [], []>} : vector<80x128xbf16>, vector<128x128xbf16>, vector<80x128xf32> -> vector<80x128xf32>
    %40 = arith.addf %35, %39 : vector<80x128xf32>
    %c11 = arith.constant 11 : index
    %c0_24 = arith.constant 0 : index
    %41 = vector.load %arg9[%c11, %c0_24] : memref<120x128xbf16, #tpu.memory_space<vmem>>, vector<80x128xbf16>
    %c2 = arith.constant 2 : index
    %c0_25 = arith.constant 0 : index
    %c0_26 = arith.constant 0 : index
    %42 = vector.load %arg2[%c2, %c0_25, %c0_26] : memref<9x128x128xbf16, #tpu.memory_space<vmem>>, vector<1x128x128xbf16>
    %43 = vector.shape_cast %42 : vector<1x128x128xbf16> to vector<128x128xbf16>
    %cst_27 = arith.constant dense<0.000000e+00> : vector<80x128xf32>
    %44 = tpu.matmul %41, %43, %cst_27 {dimension_numbers = #tpu.dot_dimension_numbers<[1], [0], [0], [1], [0, 0, 1, 1], [], []>} : vector<80x128xbf16>, vector<128x128xbf16>, vector<80x128xf32> -> vector<80x128xf32>
    %45 = arith.addf %40, %44 : vector<80x128xf32>
    %c19 = arith.constant 19 : index
    %c0_28 = arith.constant 0 : index
    %46 = vector.load %arg9[%c19, %c0_28] : memref<120x128xbf16, #tpu.memory_space<vmem>>, vector<80x128xbf16>
    %c3 = arith.constant 3 : index
    %c0_29 = arith.constant 0 : index
    %c0_30 = arith.constant 0 : index
    %47 = vector.load %arg2[%c3, %c0_29, %c0_30] : memref<9x128x128xbf16, #tpu.memory_space<vmem>>, vector<1x128x128xbf16>
    %48 = vector.shape_cast %47 : vector<1x128x128xbf16> to vector<128x128xbf16>
    %cst_31 = arith.constant dense<0.000000e+00> : vector<80x128xf32>
    %49 = tpu.matmul %46, %48, %cst_31 {dimension_numbers = #tpu.dot_dimension_numbers<[1], [0], [0], [1], [0, 0, 1, 1], [], []>} : vector<80x128xbf16>, vector<128x128xbf16>, vector<80x128xf32> -> vector<80x128xf32>
    %50 = arith.addf %45, %49 : vector<80x128xf32>
    %c20_32 = arith.constant 20 : index
    %c0_33 = arith.constant 0 : index
    %51 = vector.load %arg9[%c20_32, %c0_33] : memref<120x128xbf16, #tpu.memory_space<vmem>>, vector<80x128xbf16>
    %c4 = arith.constant 4 : index
    %c0_34 = arith.constant 0 : index
    %c0_35 = arith.constant 0 : index
    %52 = vector.load %arg2[%c4, %c0_34, %c0_35] : memref<9x128x128xbf16, #tpu.memory_space<vmem>>, vector<1x128x128xbf16>
    %53 = vector.shape_cast %52 : vector<1x128x128xbf16> to vector<128x128xbf16>
    %cst_36 = arith.constant dense<0.000000e+00> : vector<80x128xf32>
    %54 = tpu.matmul %51, %53, %cst_36 {dimension_numbers = #tpu.dot_dimension_numbers<[1], [0], [0], [1], [0, 0, 1, 1], [], []>} : vector<80x128xbf16>, vector<128x128xbf16>, vector<80x128xf32> -> vector<80x128xf32>
    %55 = arith.addf %50, %54 : vector<80x128xf32>
    %c21 = arith.constant 21 : index
    %c0_37 = arith.constant 0 : index
    %56 = vector.load %arg9[%c21, %c0_37] : memref<120x128xbf16, #tpu.memory_space<vmem>>, vector<80x128xbf16>
    %c5 = arith.constant 5 : index
    %c0_38 = arith.constant 0 : index
    %c0_39 = arith.constant 0 : index
    %57 = vector.load %arg2[%c5, %c0_38, %c0_39] : memref<9x128x128xbf16, #tpu.memory_space<vmem>>, vector<1x128x128xbf16>
    %58 = vector.shape_cast %57 : vector<1x128x128xbf16> to vector<128x128xbf16>
    %cst_40 = arith.constant dense<0.000000e+00> : vector<80x128xf32>
    %59 = tpu.matmul %56, %58, %cst_40 {dimension_numbers = #tpu.dot_dimension_numbers<[1], [0], [0], [1], [0, 0, 1, 1], [], []>} : vector<80x128xbf16>, vector<128x128xbf16>, vector<80x128xf32> -> vector<80x128xf32>
    %60 = arith.addf %55, %59 : vector<80x128xf32>
    %c29 = arith.constant 29 : index
    %c0_41 = arith.constant 0 : index
    %61 = vector.load %arg9[%c29, %c0_41] : memref<120x128xbf16, #tpu.memory_space<vmem>>, vector<80x128xbf16>
    %c6 = arith.constant 6 : index
    %c0_42 = arith.constant 0 : index
    %c0_43 = arith.constant 0 : index
    %62 = vector.load %arg2[%c6, %c0_42, %c0_43] : memref<9x128x128xbf16, #tpu.memory_space<vmem>>, vector<1x128x128xbf16>
    %63 = vector.shape_cast %62 : vector<1x128x128xbf16> to vector<128x128xbf16>
    %cst_44 = arith.constant dense<0.000000e+00> : vector<80x128xf32>
    %64 = tpu.matmul %61, %63, %cst_44 {dimension_numbers = #tpu.dot_dimension_numbers<[1], [0], [0], [1], [0, 0, 1, 1], [], []>} : vector<80x128xbf16>, vector<128x128xbf16>, vector<80x128xf32> -> vector<80x128xf32>
    %65 = arith.addf %60, %64 : vector<80x128xf32>
    %c30 = arith.constant 30 : index
    %c0_45 = arith.constant 0 : index
    %66 = vector.load %arg9[%c30, %c0_45] : memref<120x128xbf16, #tpu.memory_space<vmem>>, vector<80x128xbf16>
    %c7 = arith.constant 7 : index
    %c0_46 = arith.constant 0 : index
    %c0_47 = arith.constant 0 : index
    %67 = vector.load %arg2[%c7, %c0_46, %c0_47] : memref<9x128x128xbf16, #tpu.memory_space<vmem>>, vector<1x128x128xbf16>
    %68 = vector.shape_cast %67 : vector<1x128x128xbf16> to vector<128x128xbf16>
    %cst_48 = arith.constant dense<0.000000e+00> : vector<80x128xf32>
    %69 = tpu.matmul %66, %68, %cst_48 {dimension_numbers = #tpu.dot_dimension_numbers<[1], [0], [0], [1], [0, 0, 1, 1], [], []>} : vector<80x128xbf16>, vector<128x128xbf16>, vector<80x128xf32> -> vector<80x128xf32>
    %70 = arith.addf %65, %69 : vector<80x128xf32>
    %c31 = arith.constant 31 : index
    %c0_49 = arith.constant 0 : index
    %71 = vector.load %arg9[%c31, %c0_49] : memref<120x128xbf16, #tpu.memory_space<vmem>>, vector<80x128xbf16>
    %c8 = arith.constant 8 : index
    %c0_50 = arith.constant 0 : index
    %c0_51 = arith.constant 0 : index
    %72 = vector.load %arg2[%c8, %c0_50, %c0_51] : memref<9x128x128xbf16, #tpu.memory_space<vmem>>, vector<1x128x128xbf16>
    %73 = vector.shape_cast %72 : vector<1x128x128xbf16> to vector<128x128xbf16>
    %cst_52 = arith.constant dense<0.000000e+00> : vector<80x128xf32>
    %74 = tpu.matmul %71, %73, %cst_52 {dimension_numbers = #tpu.dot_dimension_numbers<[1], [0], [0], [1], [0, 0, 1, 1], [], []>} : vector<80x128xbf16>, vector<128x128xbf16>, vector<80x128xf32> -> vector<80x128xf32>
    %75 = arith.addf %70, %74 : vector<80x128xf32>
    %c0_53 = arith.constant 0 : index
    %c0_54 = arith.constant 0 : index
    %76 = vector.load %arg3[%c0_53, %c0_54] : memref<1x128xf32, #tpu.memory_space<vmem>>, vector<1x128xf32>
    %77 = vector.broadcast %76 : vector<1x128xf32> to vector<80x128xf32>
    %78 = arith.addf %75, %77 : vector<80x128xf32>
    %cst_55 = arith.constant 0.000000e+00 : f32
    %79 = vector.broadcast %cst_55 : f32 to vector<80x128xf32>
    %80 = arith.cmpf oge, %78, %79 : vector<80x128xf32>
    %cst_56 = arith.constant 0.00999999977 : f32
    %81 = vector.broadcast %cst_56 : f32 to vector<80x128xf32>
    %82 = arith.mulf %81, %78 : vector<80x128xf32>
    %83 = arith.select %80, %78, %82 : vector<80x128xi1>, vector<80x128xf32>
    %cst_57 = arith.constant 0.000000e+00 : f32
    %84 = vector.broadcast %cst_57 : f32 to vector<80x128xf32>
    %85 = arith.select %21, %83, %84 : vector<80x128xi1>, vector<80x128xf32>
    %cst_58 = arith.constant dense<0.000000e+00> : vector<128xf32>
    %86 = vector.multi_reduction <add>, %85, %cst_58 [0] : vector<80x128xf32> to vector<128xf32>
    %87 = vector.shape_cast %86 : vector<128xf32> to vector<1x128xf32>
    %cst_59 = arith.constant 1.562500e-02 : f32
    %88 = vector.broadcast %cst_59 : f32 to vector<1x128xf32>
    %89 = arith.mulf %87, %88 : vector<1x128xf32>
    %90 = vector.broadcast %89 : vector<1x128xf32> to vector<80x128xf32>
    %91 = arith.subf %83, %90 : vector<80x128xf32>
    %92 = arith.mulf %91, %91 : vector<80x128xf32>
    %cst_60 = arith.constant 0.000000e+00 : f32
    %93 = vector.broadcast %cst_60 : f32 to vector<80x128xf32>
    %94 = arith.select %21, %92, %93 : vector<80x128xi1>, vector<80x128xf32>
    %cst_61 = arith.constant dense<0.000000e+00> : vector<128xf32>
    %95 = vector.multi_reduction <add>, %94, %cst_61 [0] : vector<80x128xf32> to vector<128xf32>
    %96 = vector.shape_cast %95 : vector<128xf32> to vector<1x128xf32>
    %cst_62 = arith.constant 1.562500e-02 : f32
    %97 = vector.broadcast %cst_62 : f32 to vector<1x128xf32>
    %98 = arith.mulf %96, %97 : vector<1x128xf32>
    %cst_63 = arith.constant 9.99999974E-6 : f32
    %99 = vector.broadcast %cst_63 : f32 to vector<1x128xf32>
    %100 = arith.addf %98, %99 : vector<1x128xf32>
    %101 = math.rsqrt %100 : vector<1x128xf32>
    %102 = vector.broadcast %101 : vector<1x128xf32> to vector<80x128xf32>
    %103 = arith.mulf %91, %102 : vector<80x128xf32>
    %cst_64 = arith.constant 0.000000e+00 : f32
    %104 = vector.broadcast %cst_64 : f32 to vector<80x128xf32>
    %105 = arith.select %21, %103, %104 : vector<80x128xi1>, vector<80x128xf32>
    %106 = arith.truncf %105 : vector<80x128xf32> to vector<80x128xbf16>
    %c20_65 = arith.constant 20 : index
    %c0_66 = arith.constant 0 : index
    %107 = vector.load %arg10[%c20_65, %c0_66] : memref<120x128xbf16, #tpu.memory_space<vmem>>, vector<80x128xbf16>
    tpu.vector_store %arg10[%c20_65, %c0_66], %106 {strides = array<i32>} : memref<120x128xbf16, #tpu.memory_space<vmem>>, vector<80x128xbf16>,
    %cst_67 = arith.constant 0.000000e+00 : f32
    %108 = vector.broadcast %cst_67 : f32 to vector<80x128xf32>
    %c9_68 = arith.constant 9 : index
    %c0_69 = arith.constant 0 : index
    %109 = vector.load %arg10[%c9_68, %c0_69] : memref<120x128xbf16, #tpu.memory_space<vmem>>, vector<80x128xbf16>
    %c0_70 = arith.constant 0 : index
    %c0_71 = arith.constant 0 : index
    %c0_72 = arith.constant 0 : index
    %110 = vector.load %arg4[%c0_70, %c0_71, %c0_72] : memref<9x128x128xbf16, #tpu.memory_space<vmem>>, vector<1x128x128xbf16>
    %111 = vector.shape_cast %110 : vector<1x128x128xbf16> to vector<128x128xbf16>
    %cst_73 = arith.constant dense<0.000000e+00> : vector<80x128xf32>
    %112 = tpu.matmul %109, %111, %cst_73 {dimension_numbers = #tpu.dot_dimension_numbers<[1], [0], [0], [1], [0, 0, 1, 1], [], []>} : vector<80x128xbf16>, vector<128x128xbf16>, vector<80x128xf32> -> vector<80x128xf32>
    %113 = arith.addf %108, %112 : vector<80x128xf32>
    %c10_74 = arith.constant 10 : index
    %c0_75 = arith.constant 0 : index
    %114 = vector.load %arg10[%c10_74, %c0_75] : memref<120x128xbf16, #tpu.memory_space<vmem>>, vector<80x128xbf16>
    %c1_76 = arith.constant 1 : index
    %c0_77 = arith.constant 0 : index
    %c0_78 = arith.constant 0 : index
    %115 = vector.load %arg4[%c1_76, %c0_77, %c0_78] : memref<9x128x128xbf16, #tpu.memory_space<vmem>>, vector<1x128x128xbf16>
    %116 = vector.shape_cast %115 : vector<1x128x128xbf16> to vector<128x128xbf16>
    %cst_79 = arith.constant dense<0.000000e+00> : vector<80x128xf32>
    %117 = tpu.matmul %114, %116, %cst_79 {dimension_numbers = #tpu.dot_dimension_numbers<[1], [0], [0], [1], [0, 0, 1, 1], [], []>} : vector<80x128xbf16>, vector<128x128xbf16>, vector<80x128xf32> -> vector<80x128xf32>
    %118 = arith.addf %113, %117 : vector<80x128xf32>
    %c11_80 = arith.constant 11 : index
    %c0_81 = arith.constant 0 : index
    %119 = vector.load %arg10[%c11_80, %c0_81] : memref<120x128xbf16, #tpu.memory_space<vmem>>, vector<80x128xbf16>
    %c2_82 = arith.constant 2 : index
    %c0_83 = arith.constant 0 : index
    %c0_84 = arith.constant 0 : index
    %120 = vector.load %arg4[%c2_82, %c0_83, %c0_84] : memref<9x128x128xbf16, #tpu.memory_space<vmem>>, vector<1x128x128xbf16>
    %121 = vector.shape_cast %120 : vector<1x128x128xbf16> to vector<128x128xbf16>
    %cst_85 = arith.constant dense<0.000000e+00> : vector<80x128xf32>
    %122 = tpu.matmul %119, %121, %cst_85 {dimension_numbers = #tpu.dot_dimension_numbers<[1], [0], [0], [1], [0, 0, 1, 1], [], []>} : vector<80x128xbf16>, vector<128x128xbf16>, vector<80x128xf32> -> vector<80x128xf32>
    %123 = arith.addf %118, %122 : vector<80x128xf32>
    %c19_86 = arith.constant 19 : index
    %c0_87 = arith.constant 0 : index
    %124 = vector.load %arg10[%c19_86, %c0_87] : memref<120x128xbf16, #tpu.memory_space<vmem>>, vector<80x128xbf16>
    %c3_88 = arith.constant 3 : index
    %c0_89 = arith.constant 0 : index
    %c0_90 = arith.constant 0 : index
    %125 = vector.load %arg4[%c3_88, %c0_89, %c0_90] : memref<9x128x128xbf16, #tpu.memory_space<vmem>>, vector<1x128x128xbf16>
    %126 = vector.shape_cast %125 : vector<1x128x128xbf16> to vector<128x128xbf16>
    %cst_91 = arith.constant dense<0.000000e+00> : vector<80x128xf32>
    %127 = tpu.matmul %124, %126, %cst_91 {dimension_numbers = #tpu.dot_dimension_numbers<[1], [0], [0], [1], [0, 0, 1, 1], [], []>} : vector<80x128xbf16>, vector<128x128xbf16>, vector<80x128xf32> -> vector<80x128xf32>
    %128 = arith.addf %123, %127 : vector<80x128xf32>
    %c20_92 = arith.constant 20 : index
    %c0_93 = arith.constant 0 : index
    %129 = vector.load %arg10[%c20_92, %c0_93] : memref<120x128xbf16, #tpu.memory_space<vmem>>, vector<80x128xbf16>
    %c4_94 = arith.constant 4 : index
    %c0_95 = arith.constant 0 : index
    %c0_96 = arith.constant 0 : index
    %130 = vector.load %arg4[%c4_94, %c0_95, %c0_96] : memref<9x128x128xbf16, #tpu.memory_space<vmem>>, vector<1x128x128xbf16>
    %131 = vector.shape_cast %130 : vector<1x128x128xbf16> to vector<128x128xbf16>
    %cst_97 = arith.constant dense<0.000000e+00> : vector<80x128xf32>
    %132 = tpu.matmul %129, %131, %cst_97 {dimension_numbers = #tpu.dot_dimension_numbers<[1], [0], [0], [1], [0, 0, 1, 1], [], []>} : vector<80x128xbf16>, vector<128x128xbf16>, vector<80x128xf32> -> vector<80x128xf32>
    %133 = arith.addf %128, %132 : vector<80x128xf32>
    %c21_98 = arith.constant 21 : index
    %c0_99 = arith.constant 0 : index
    %134 = vector.load %arg10[%c21_98, %c0_99] : memref<120x128xbf16, #tpu.memory_space<vmem>>, vector<80x128xbf16>
    %c5_100 = arith.constant 5 : index
    %c0_101 = arith.constant 0 : index
    %c0_102 = arith.constant 0 : index
    %135 = vector.load %arg4[%c5_100, %c0_101, %c0_102] : memref<9x128x128xbf16, #tpu.memory_space<vmem>>, vector<1x128x128xbf16>
    %136 = vector.shape_cast %135 : vector<1x128x128xbf16> to vector<128x128xbf16>
    %cst_103 = arith.constant dense<0.000000e+00> : vector<80x128xf32>
    %137 = tpu.matmul %134, %136, %cst_103 {dimension_numbers = #tpu.dot_dimension_numbers<[1], [0], [0], [1], [0, 0, 1, 1], [], []>} : vector<80x128xbf16>, vector<128x128xbf16>, vector<80x128xf32> -> vector<80x128xf32>
    %138 = arith.addf %133, %137 : vector<80x128xf32>
    %c29_104 = arith.constant 29 : index
    %c0_105 = arith.constant 0 : index
    %139 = vector.load %arg10[%c29_104, %c0_105] : memref<120x128xbf16, #tpu.memory_space<vmem>>, vector<80x128xbf16>
    %c6_106 = arith.constant 6 : index
    %c0_107 = arith.constant 0 : index
    %c0_108 = arith.constant 0 : index
    %140 = vector.load %arg4[%c6_106, %c0_107, %c0_108] : memref<9x128x128xbf16, #tpu.memory_space<vmem>>, vector<1x128x128xbf16>
    %141 = vector.shape_cast %140 : vector<1x128x128xbf16> to vector<128x128xbf16>
    %cst_109 = arith.constant dense<0.000000e+00> : vector<80x128xf32>
    %142 = tpu.matmul %139, %141, %cst_109 {dimension_numbers = #tpu.dot_dimension_numbers<[1], [0], [0], [1], [0, 0, 1, 1], [], []>} : vector<80x128xbf16>, vector<128x128xbf16>, vector<80x128xf32> -> vector<80x128xf32>
    %143 = arith.addf %138, %142 : vector<80x128xf32>
    %c30_110 = arith.constant 30 : index
    %c0_111 = arith.constant 0 : index
    %144 = vector.load %arg10[%c30_110, %c0_111] : memref<120x128xbf16, #tpu.memory_space<vmem>>, vector<80x128xbf16>
    %c7_112 = arith.constant 7 : index
    %c0_113 = arith.constant 0 : index
    %c0_114 = arith.constant 0 : index
    %145 = vector.load %arg4[%c7_112, %c0_113, %c0_114] : memref<9x128x128xbf16, #tpu.memory_space<vmem>>, vector<1x128x128xbf16>
    %146 = vector.shape_cast %145 : vector<1x128x128xbf16> to vector<128x128xbf16>
    %cst_115 = arith.constant dense<0.000000e+00> : vector<80x128xf32>
    %147 = tpu.matmul %144, %146, %cst_115 {dimension_numbers = #tpu.dot_dimension_numbers<[1], [0], [0], [1], [0, 0, 1, 1], [], []>} : vector<80x128xbf16>, vector<128x128xbf16>, vector<80x128xf32> -> vector<80x128xf32>
    %148 = arith.addf %143, %147 : vector<80x128xf32>
    %c31_116 = arith.constant 31 : index
    %c0_117 = arith.constant 0 : index
    %149 = vector.load %arg10[%c31_116, %c0_117] : memref<120x128xbf16, #tpu.memory_space<vmem>>, vector<80x128xbf16>
    %c8_118 = arith.constant 8 : index
    %c0_119 = arith.constant 0 : index
    %c0_120 = arith.constant 0 : index
    %150 = vector.load %arg4[%c8_118, %c0_119, %c0_120] : memref<9x128x128xbf16, #tpu.memory_space<vmem>>, vector<1x128x128xbf16>
    %151 = vector.shape_cast %150 : vector<1x128x128xbf16> to vector<128x128xbf16>
    %cst_121 = arith.constant dense<0.000000e+00> : vector<80x128xf32>
    %152 = tpu.matmul %149, %151, %cst_121 {dimension_numbers = #tpu.dot_dimension_numbers<[1], [0], [0], [1], [0, 0, 1, 1], [], []>} : vector<80x128xbf16>, vector<128x128xbf16>, vector<80x128xf32> -> vector<80x128xf32>
    %153 = arith.addf %148, %152 : vector<80x128xf32>
    %c0_122 = arith.constant 0 : index
    %c0_123 = arith.constant 0 : index
    %154 = vector.load %arg5[%c0_122, %c0_123] : memref<1x128xf32, #tpu.memory_space<vmem>>, vector<1x128xf32>
    %155 = vector.broadcast %154 : vector<1x128xf32> to vector<80x128xf32>
    %156 = arith.addf %153, %155 : vector<80x128xf32>
    %cst_124 = arith.constant 0.000000e+00 : f32
    %157 = vector.broadcast %cst_124 : f32 to vector<80x128xf32>
    %158 = arith.cmpf oge, %156, %157 : vector<80x128xf32>
    %cst_125 = arith.constant 0.00999999977 : f32
    %159 = vector.broadcast %cst_125 : f32 to vector<80x128xf32>
    %160 = arith.mulf %159, %156 : vector<80x128xf32>
    %161 = arith.select %158, %156, %160 : vector<80x128xi1>, vector<80x128xf32>
    %cst_126 = arith.constant 0.000000e+00 : f32
    %162 = vector.broadcast %cst_126 : f32 to vector<80x128xf32>
    %163 = arith.select %21, %161, %162 : vector<80x128xi1>, vector<80x128xf32>
    %cst_127 = arith.constant dense<0.000000e+00> : vector<128xf32>
    %164 = vector.multi_reduction <add>, %163, %cst_127 [0] : vector<80x128xf32> to vector<128xf32>
    %165 = vector.shape_cast %164 : vector<128xf32> to vector<1x128xf32>
    %cst_128 = arith.constant 1.562500e-02 : f32
    %166 = vector.broadcast %cst_128 : f32 to vector<1x128xf32>
    %167 = arith.mulf %165, %166 : vector<1x128xf32>
    %168 = vector.broadcast %167 : vector<1x128xf32> to vector<80x128xf32>
    %169 = arith.subf %161, %168 : vector<80x128xf32>
    %170 = arith.mulf %169, %169 : vector<80x128xf32>
    %cst_129 = arith.constant 0.000000e+00 : f32
    %171 = vector.broadcast %cst_129 : f32 to vector<80x128xf32>
    %172 = arith.select %21, %170, %171 : vector<80x128xi1>, vector<80x128xf32>
    %cst_130 = arith.constant dense<0.000000e+00> : vector<128xf32>
    %173 = vector.multi_reduction <add>, %172, %cst_130 [0] : vector<80x128xf32> to vector<128xf32>
    %174 = vector.shape_cast %173 : vector<128xf32> to vector<1x128xf32>
    %cst_131 = arith.constant 1.562500e-02 : f32
    %175 = vector.broadcast %cst_131 : f32 to vector<1x128xf32>
    %176 = arith.mulf %174, %175 : vector<1x128xf32>
    %cst_132 = arith.constant 9.99999974E-6 : f32
    %177 = vector.broadcast %cst_132 : f32 to vector<1x128xf32>
    %178 = arith.addf %176, %177 : vector<1x128xf32>
    %179 = math.rsqrt %178 : vector<1x128xf32>
    %180 = vector.broadcast %179 : vector<1x128xf32> to vector<80x128xf32>
    %181 = arith.mulf %169, %180 : vector<80x128xf32>
    %cst_133 = arith.constant 0.000000e+00 : f32
    %182 = vector.broadcast %cst_133 : f32 to vector<80x128xf32>
    %183 = arith.select %21, %181, %182 : vector<80x128xi1>, vector<80x128xf32>
    %184 = arith.truncf %183 : vector<80x128xf32> to vector<80x128xbf16>
    %c20_134 = arith.constant 20 : index
    %c0_135 = arith.constant 0 : index
    %185 = vector.load %arg9[%c20_134, %c0_135] : memref<120x128xbf16, #tpu.memory_space<vmem>>, vector<80x128xbf16>
    tpu.vector_store %arg9[%c20_134, %c0_135], %184 {strides = array<i32>} : memref<120x128xbf16, #tpu.memory_space<vmem>>, vector<80x128xbf16>,
    %cst_136 = arith.constant 0.000000e+00 : f32
    %186 = vector.broadcast %cst_136 : f32 to vector<80x128xf32>
    %c9_137 = arith.constant 9 : index
    %c0_138 = arith.constant 0 : index
    %187 = vector.load %arg9[%c9_137, %c0_138] : memref<120x128xbf16, #tpu.memory_space<vmem>>, vector<80x128xbf16>
    %c0_139 = arith.constant 0 : index
    %c0_140 = arith.constant 0 : index
    %c0_141 = arith.constant 0 : index
    %188 = vector.load %arg6[%c0_139, %c0_140, %c0_141] : memref<9x128x128xbf16, #tpu.memory_space<vmem>>, vector<1x128x128xbf16>
    %189 = vector.shape_cast %188 : vector<1x128x128xbf16> to vector<128x128xbf16>
    %cst_142 = arith.constant dense<0.000000e+00> : vector<80x128xf32>
    %190 = tpu.matmul %187, %189, %cst_142 {dimension_numbers = #tpu.dot_dimension_numbers<[1], [0], [0], [1], [0, 0, 1, 1], [], []>} : vector<80x128xbf16>, vector<128x128xbf16>, vector<80x128xf32> -> vector<80x128xf32>
    %191 = arith.addf %186, %190 : vector<80x128xf32>
    %c10_143 = arith.constant 10 : index
    %c0_144 = arith.constant 0 : index
    %192 = vector.load %arg9[%c10_143, %c0_144] : memref<120x128xbf16, #tpu.memory_space<vmem>>, vector<80x128xbf16>
    %c1_145 = arith.constant 1 : index
    %c0_146 = arith.constant 0 : index
    %c0_147 = arith.constant 0 : index
    %193 = vector.load %arg6[%c1_145, %c0_146, %c0_147] : memref<9x128x128xbf16, #tpu.memory_space<vmem>>, vector<1x128x128xbf16>
    %194 = vector.shape_cast %193 : vector<1x128x128xbf16> to vector<128x128xbf16>
    %cst_148 = arith.constant dense<0.000000e+00> : vector<80x128xf32>
    %195 = tpu.matmul %192, %194, %cst_148 {dimension_numbers = #tpu.dot_dimension_numbers<[1], [0], [0], [1], [0, 0, 1, 1], [], []>} : vector<80x128xbf16>, vector<128x128xbf16>, vector<80x128xf32> -> vector<80x128xf32>
    %196 = arith.addf %191, %195 : vector<80x128xf32>
    %c11_149 = arith.constant 11 : index
    %c0_150 = arith.constant 0 : index
    %197 = vector.load %arg9[%c11_149, %c0_150] : memref<120x128xbf16, #tpu.memory_space<vmem>>, vector<80x128xbf16>
    %c2_151 = arith.constant 2 : index
    %c0_152 = arith.constant 0 : index
    %c0_153 = arith.constant 0 : index
    %198 = vector.load %arg6[%c2_151, %c0_152, %c0_153] : memref<9x128x128xbf16, #tpu.memory_space<vmem>>, vector<1x128x128xbf16>
    %199 = vector.shape_cast %198 : vector<1x128x128xbf16> to vector<128x128xbf16>
    %cst_154 = arith.constant dense<0.000000e+00> : vector<80x128xf32>
    %200 = tpu.matmul %197, %199, %cst_154 {dimension_numbers = #tpu.dot_dimension_numbers<[1], [0], [0], [1], [0, 0, 1, 1], [], []>} : vector<80x128xbf16>, vector<128x128xbf16>, vector<80x128xf32> -> vector<80x128xf32>
    %201 = arith.addf %196, %200 : vector<80x128xf32>
    %c19_155 = arith.constant 19 : index
    %c0_156 = arith.constant 0 : index
    %202 = vector.load %arg9[%c19_155, %c0_156] : memref<120x128xbf16, #tpu.memory_space<vmem>>, vector<80x128xbf16>
    %c3_157 = arith.constant 3 : index
    %c0_158 = arith.constant 0 : index
    %c0_159 = arith.constant 0 : index
    %203 = vector.load %arg6[%c3_157, %c0_158, %c0_159] : memref<9x128x128xbf16, #tpu.memory_space<vmem>>, vector<1x128x128xbf16>
    %204 = vector.shape_cast %203 : vector<1x128x128xbf16> to vector<128x128xbf16>
    %cst_160 = arith.constant dense<0.000000e+00> : vector<80x128xf32>
    %205 = tpu.matmul %202, %204, %cst_160 {dimension_numbers = #tpu.dot_dimension_numbers<[1], [0], [0], [1], [0, 0, 1, 1], [], []>} : vector<80x128xbf16>, vector<128x128xbf16>, vector<80x128xf32> -> vector<80x128xf32>
    %206 = arith.addf %201, %205 : vector<80x128xf32>
    %c20_161 = arith.constant 20 : index
    %c0_162 = arith.constant 0 : index
    %207 = vector.load %arg9[%c20_161, %c0_162] : memref<120x128xbf16, #tpu.memory_space<vmem>>, vector<80x128xbf16>
    %c4_163 = arith.constant 4 : index
    %c0_164 = arith.constant 0 : index
    %c0_165 = arith.constant 0 : index
    %208 = vector.load %arg6[%c4_163, %c0_164, %c0_165] : memref<9x128x128xbf16, #tpu.memory_space<vmem>>, vector<1x128x128xbf16>
    %209 = vector.shape_cast %208 : vector<1x128x128xbf16> to vector<128x128xbf16>
    %cst_166 = arith.constant dense<0.000000e+00> : vector<80x128xf32>
    %210 = tpu.matmul %207, %209, %cst_166 {dimension_numbers = #tpu.dot_dimension_numbers<[1], [0], [0], [1], [0, 0, 1, 1], [], []>} : vector<80x128xbf16>, vector<128x128xbf16>, vector<80x128xf32> -> vector<80x128xf32>
    %211 = arith.addf %206, %210 : vector<80x128xf32>
    %c21_167 = arith.constant 21 : index
    %c0_168 = arith.constant 0 : index
    %212 = vector.load %arg9[%c21_167, %c0_168] : memref<120x128xbf16, #tpu.memory_space<vmem>>, vector<80x128xbf16>
    %c5_169 = arith.constant 5 : index
    %c0_170 = arith.constant 0 : index
    %c0_171 = arith.constant 0 : index
    %213 = vector.load %arg6[%c5_169, %c0_170, %c0_171] : memref<9x128x128xbf16, #tpu.memory_space<vmem>>, vector<1x128x128xbf16>
    %214 = vector.shape_cast %213 : vector<1x128x128xbf16> to vector<128x128xbf16>
    %cst_172 = arith.constant dense<0.000000e+00> : vector<80x128xf32>
    %215 = tpu.matmul %212, %214, %cst_172 {dimension_numbers = #tpu.dot_dimension_numbers<[1], [0], [0], [1], [0, 0, 1, 1], [], []>} : vector<80x128xbf16>, vector<128x128xbf16>, vector<80x128xf32> -> vector<80x128xf32>
    %216 = arith.addf %211, %215 : vector<80x128xf32>
    %c29_173 = arith.constant 29 : index
    %c0_174 = arith.constant 0 : index
    %217 = vector.load %arg9[%c29_173, %c0_174] : memref<120x128xbf16, #tpu.memory_space<vmem>>, vector<80x128xbf16>
    %c6_175 = arith.constant 6 : index
    %c0_176 = arith.constant 0 : index
    %c0_177 = arith.constant 0 : index
    %218 = vector.load %arg6[%c6_175, %c0_176, %c0_177] : memref<9x128x128xbf16, #tpu.memory_space<vmem>>, vector<1x128x128xbf16>
    %219 = vector.shape_cast %218 : vector<1x128x128xbf16> to vector<128x128xbf16>
    %cst_178 = arith.constant dense<0.000000e+00> : vector<80x128xf32>
    %220 = tpu.matmul %217, %219, %cst_178 {dimension_numbers = #tpu.dot_dimension_numbers<[1], [0], [0], [1], [0, 0, 1, 1], [], []>} : vector<80x128xbf16>, vector<128x128xbf16>, vector<80x128xf32> -> vector<80x128xf32>
    %221 = arith.addf %216, %220 : vector<80x128xf32>
    %c30_179 = arith.constant 30 : index
    %c0_180 = arith.constant 0 : index
    %222 = vector.load %arg9[%c30_179, %c0_180] : memref<120x128xbf16, #tpu.memory_space<vmem>>, vector<80x128xbf16>
    %c7_181 = arith.constant 7 : index
    %c0_182 = arith.constant 0 : index
    %c0_183 = arith.constant 0 : index
    %223 = vector.load %arg6[%c7_181, %c0_182, %c0_183] : memref<9x128x128xbf16, #tpu.memory_space<vmem>>, vector<1x128x128xbf16>
    %224 = vector.shape_cast %223 : vector<1x128x128xbf16> to vector<128x128xbf16>
    %cst_184 = arith.constant dense<0.000000e+00> : vector<80x128xf32>
    %225 = tpu.matmul %222, %224, %cst_184 {dimension_numbers = #tpu.dot_dimension_numbers<[1], [0], [0], [1], [0, 0, 1, 1], [], []>} : vector<80x128xbf16>, vector<128x128xbf16>, vector<80x128xf32> -> vector<80x128xf32>
    %226 = arith.addf %221, %225 : vector<80x128xf32>
    %c31_185 = arith.constant 31 : index
    %c0_186 = arith.constant 0 : index
    %227 = vector.load %arg9[%c31_185, %c0_186] : memref<120x128xbf16, #tpu.memory_space<vmem>>, vector<80x128xbf16>
    %c8_187 = arith.constant 8 : index
    %c0_188 = arith.constant 0 : index
    %c0_189 = arith.constant 0 : index
    %228 = vector.load %arg6[%c8_187, %c0_188, %c0_189] : memref<9x128x128xbf16, #tpu.memory_space<vmem>>, vector<1x128x128xbf16>
    %229 = vector.shape_cast %228 : vector<1x128x128xbf16> to vector<128x128xbf16>
    %cst_190 = arith.constant dense<0.000000e+00> : vector<80x128xf32>
    %230 = tpu.matmul %227, %229, %cst_190 {dimension_numbers = #tpu.dot_dimension_numbers<[1], [0], [0], [1], [0, 0, 1, 1], [], []>} : vector<80x128xbf16>, vector<128x128xbf16>, vector<80x128xf32> -> vector<80x128xf32>
    %231 = arith.addf %226, %230 : vector<80x128xf32>
    %c0_191 = arith.constant 0 : index
    %c0_192 = arith.constant 0 : index
    %232 = vector.load %arg7[%c0_191, %c0_192] : memref<1x128xf32, #tpu.memory_space<vmem>>, vector<1x128xf32>
    %233 = vector.broadcast %232 : vector<1x128xf32> to vector<80x128xf32>
    %234 = arith.addf %231, %233 : vector<80x128xf32>
    %cst_193 = arith.constant 0.000000e+00 : f32
    %235 = vector.broadcast %cst_193 : f32 to vector<80x128xf32>
    %236 = arith.subf %235, %234 : vector<80x128xf32>
    %237 = math.exp %236 : vector<80x128xf32>
    %cst_194 = arith.constant 1.000000e+00 : f32
    %238 = vector.broadcast %cst_194 : f32 to vector<80x128xf32>
    %239 = arith.addf %238, %237 : vector<80x128xf32>
    %cst_195 = arith.constant 1.000000e+00 : f32
    %240 = vector.broadcast %cst_195 : f32 to vector<80x128xf32>
    %241 = arith.divf %240, %239 : vector<80x128xf32>
    %242 = arith.truncf %241 : vector<80x128xf32> to vector<80x128xbf16>
    %c0_196 = arith.constant 0 : index
    %c0_197 = arith.constant 0 : index
    %c0_198 = arith.constant 0 : index
    %243 = vector.load %arg8[%c0_196, %c0_197, %c0_198] : memref<1x80x128xbf16, #tpu.memory_space<vmem>>, vector<1x80x128xbf16>
    %244 = vector.shape_cast %243 : vector<1x80x128xbf16> to vector<80x128xbf16>
    %245 = vector.shape_cast %242 : vector<80x128xbf16> to vector<1x80x128xbf16>
    tpu.vector_store %arg8[%c0_196, %c0_197, %c0_198], %245 {strides = array<i32>} : memref<1x80x128xbf16, #tpu.memory_space<vmem>>, vector<1x80x128xbf16>,
    return
  }
  func.func @transform_0(%arg0: i32) -> (i32, i32, i32) {
    %c0_i32 = arith.constant 0 : i32
    %c0_i32_0 = arith.constant 0 : i32
    %c0_i32_1 = arith.constant 0 : i32
    return %arg0, %c0_i32, %c0_i32_0 : i32, i32, i32
  }
  func.func @transform_1(%arg0: i32) -> (i32, i32, i32) {
    %c0_i32 = arith.constant 0 : i32
    %c0_i32_0 = arith.constant 0 : i32
    %c0_i32_1 = arith.constant 0 : i32
    %c0_i32_2 = arith.constant 0 : i32
    return %c0_i32, %c0_i32_0, %c0_i32_1 : i32, i32, i32
  }
  func.func @transform_2(%arg0: i32) -> (i32, i32) {
    %c0_i32 = arith.constant 0 : i32
    %c0_i32_0 = arith.constant 0 : i32
    %c0_i32_1 = arith.constant 0 : i32
    return %c0_i32, %c0_i32_0 : i32, i32
  }
  func.func @transform_3(%arg0: i32) -> (i32, i32, i32) {
    %c0_i32 = arith.constant 0 : i32
    %c0_i32_0 = arith.constant 0 : i32
    %c0_i32_1 = arith.constant 0 : i32
    %c0_i32_2 = arith.constant 0 : i32
    return %c0_i32, %c0_i32_0, %c0_i32_1 : i32, i32, i32
  }
  func.func @transform_4(%arg0: i32) -> (i32, i32) {
    %c0_i32 = arith.constant 0 : i32
    %c0_i32_0 = arith.constant 0 : i32
    %c0_i32_1 = arith.constant 0 : i32
    return %c0_i32, %c0_i32_0 : i32, i32
  }
  func.func @transform_5(%arg0: i32) -> (i32, i32, i32) {
    %c0_i32 = arith.constant 0 : i32
    %c0_i32_0 = arith.constant 0 : i32
    %c0_i32_1 = arith.constant 0 : i32
    %c0_i32_2 = arith.constant 0 : i32
    return %c0_i32, %c0_i32_0, %c0_i32_1 : i32, i32, i32
  }
  func.func @transform_6(%arg0: i32) -> (i32, i32) {
    %c0_i32 = arith.constant 0 : i32
    %c0_i32_0 = arith.constant 0 : i32
    %c0_i32_1 = arith.constant 0 : i32
    return %c0_i32, %c0_i32_0 : i32, i32
  }
  func.func @transform_7(%arg0: i32) -> (i32, i32, i32) {
    %c0_i32 = arith.constant 0 : i32
    %c0_i32_0 = arith.constant 0 : i32
    %c0_i32_1 = arith.constant 0 : i32
    return %arg0, %c0_i32, %c0_i32_0 : i32, i32, i32
  }
}

</mosaic_0001>

<llo_original>
// kernel: decoding_network_forward.1
$region0: #{decoding_network_forward.1}
  #allocation0 [shape = 'u32[]', space=smem, size = 0x4, offset = 0x4, fixed_abs, tag = 'smem constant byte address 0x4 - core index']
  #allocation1 [shape = 'u32[144,128]{1,0:T(1,128)}', space=vmem, size = 0x12000, scoped, tag = 'internal scratch']
  #allocation2 [shape = 'bf16[120,128]{1,0:T(8,128)(2,1)}', space=vmem, size = 0x7800, scoped, tag = 'scratch operand']
  #allocation3 [shape = 'bf16[120,128]{1,0:T(8,128)(2,1)}', space=vmem, size = 0x7800, scoped, tag = 'scratch operand']
  %s0 = inlined_call_operand.vmem [shape: bf16[2,80,128], index: 0, kind: input, shape index: {}]
  %s1 = inlined_call_operand.vmem [shape: bf16[9,128,128], index: 1, kind: input, shape index: {}]
  %s2 = inlined_call_operand.vmem [shape: f32[1,128], index: 2, kind: input, shape index: {}]
  %s3 = inlined_call_operand.vmem [shape: bf16[9,128,128], index: 3, kind: input, shape index: {}]
  %s4 = inlined_call_operand.vmem [shape: f32[1,128], index: 4, kind: input, shape index: {}]
  %s5 = inlined_call_operand.vmem [shape: bf16[9,128,128], index: 5, kind: input, shape index: {}]
  %s6 = inlined_call_operand.vmem [shape: f32[1,128], index: 6, kind: input, shape index: {}]
  %s7 = inlined_call_operand.vmem [shape: bf16[2,80,128], index: 7, kind: output, shape index: {}]
  %s8 = sld [smem:[#allocation0]]
  $region61: #{decoding_network_forward.1} parent=0
    _
  %s10 = ssub.s32 1, %s8
  %s11 = scalar_select 0, %s10, %s8
  loop: start=0, step=1, limit=4
  $region2: #{decoding_network_forward.1} parent=0 // loop_pre_header
    _
  $region3: #{decoding_network_forward.1} parent=0 // loop_header
    %s13 = sphi 0, %s17
    %p14 = scmp.ge.s32.totalorder %s13, 4
    %s23 = sphi 0, %s25
    %s26 = sphi 0, %s23
    %s27 = sphi 0, %s26
    %s43 = sphi 0, %s27
    %s47 = sphi 0, %s47
    %s49 = sphi 0, %s47
    %s50 = sphi 0, %s49
    %s64 = sphi 0, %s50
    %s68 = sphi 0, %s68
    %s70 = sphi 0, %s68
    %s71 = sphi 0, %s70
    %s85 = sphi 0, %s71
    %s89 = sphi 0, %s89
    %s91 = sphi 0, %s89
    %s92 = sphi 0, %s91
    %s106 = sphi 0, %s92
    %s110 = sphi 0, %s110
    %s112 = sphi 0, %s110
    %s113 = sphi 0, %s112
    %s127 = sphi 0, %s113
    %s131 = sphi 0, %s131
    %s133 = sphi 0, %s131
    %s134 = sphi 0, %s133
    %s148 = sphi 0, %s134
    %s152 = sphi 0, %s152
    %s154 = sphi 0, %s152
    %s155 = sphi 0, %s154
    %s169 = sphi 0, %s155
    %s175 = sphi 0, %s177
    %s178 = sphi 0, %s175
    %s179 = sphi 0, %s178
    %s195 = sphi 0, %s179
  $region4: #{decoding_network_forward.1} parent=0 // loop_header_branch
    %16 = sbr.rel (%p14) target = $region8
  $region5: #{decoding_network_forward.1} parent=0 // loop_body
    %s18 = ssub.s32 %s13, 1
    %s19 = ssub.s32 %s13, 2
    %s20 = sadd.s32 %s13, 1
    %s21 = ssub.s32 %s13, %s20
    %p22 = scmp.eq.s32.totalorder %s21, 0
    %s24 = sadd.s32 %s23, 1
    %s25 = scalar_select %p22, %s23, %s24
    %p28 = pneg %p22
    %p29 = scmp.eq.s32.totalorder %s13, 1
    %p30 = por %p28, %p29
    %p31 = scmp.ne.s32.totalorder %s23, %s26
    %p32 = scmp.eq.s32.totalorder %s13, 0
    %p33 = por %p31, %p32
    %p34 = scmp.ne.s32.totalorder %s23, %s26
    %p35 = scmp.eq.s32.totalorder %s18, 1
    %p36 = por %p34, %p35
    %p37 = scmp.ne.s32.totalorder %s26, %s27
    %p38 = scmp.eq.s32.totalorder %s18, 0
    %p39 = por %p37, %p38
    %p40 = scmp.ne.s32.totalorder %s26, %s27
    %p41 = scmp.eq.s32.totalorder %s19, 1
    %p42 = por %p40, %p41
    %p44 = scmp.ne.s32.totalorder %s27, %s43
    %p45 = scmp.eq.s32.totalorder %s19, 0
    %p46 = por %p44, %p45
    %s48 = sadd.s32 %s47, 1
    %p51 = scmp.eq.s32.totalorder %s13, 1
    %p52 = scmp.ne.s32.totalorder %s47, %s49
    %p53 = scmp.eq.s32.totalorder %s13, 0
    %p54 = por %p52, %p53
    %p55 = scmp.ne.s32.totalorder %s47, %s49
    %p56 = scmp.eq.s32.totalorder %s18, 1
    %p57 = por %p55, %p56
    %p58 = scmp.ne.s32.totalorder %s49, %s50
    %p59 = scmp.eq.s32.totalorder %s18, 0
    %p60 = por %p58, %p59
    %p61 = scmp.ne.s32.totalorder %s49, %s50
    %p62 = scmp.eq.s32.totalorder %s19, 1
    %p63 = por %p61, %p62
    %p65 = scmp.ne.s32.totalorder %s50, %s64
    %p66 = scmp.eq.s32.totalorder %s19, 0
    %p67 = por %p65, %p66
    %s69 = sadd.s32 %s68, 1
    %p72 = scmp.eq.s32.totalorder %s13, 1
    %p73 = scmp.ne.s32.totalorder %s68, %s70
    %p74 = scmp.eq.s32.totalorder %s13, 0
    %p75 = por %p73, %p74
    %p76 = scmp.ne.s32.totalorder %s68, %s70
    %p77 = scmp.eq.s32.totalorder %s18, 1
    %p78 = por %p76, %p77
    %p79 = scmp.ne.s32.totalorder %s70, %s71
    %p80 = scmp.eq.s32.totalorder %s18, 0
    %p81 = por %p79, %p80
    %p82 = scmp.ne.s32.totalorder %s70, %s71
    %p83 = scmp.eq.s32.totalorder %s19, 1
    %p84 = por %p82, %p83
    %p86 = scmp.ne.s32.totalorder %s71, %s85
    %p87 = scmp.eq.s32.totalorder %s19, 0
    %p88 = por %p86, %p87
    %s90 = sadd.s32 %s89, 1
    %p93 = scmp.eq.s32.totalorder %s13, 1
    %p94 = scmp.ne.s32.totalorder %s89, %s91
    %p95 = scmp.eq.s32.totalorder %s13, 0
    %p96 = por %p94, %p95
    %p97 = scmp.ne.s32.totalorder %s89, %s91
    %p98 = scmp.eq.s32.totalorder %s18, 1
    %p99 = por %p97, %p98
    %p100 = scmp.ne.s32.totalorder %s91, %s92
    %p101 = scmp.eq.s32.totalorder %s18, 0
    %p102 = por %p100, %p101
    %p103 = scmp.ne.s32.totalorder %s91, %s92
    %p104 = scmp.eq.s32.totalorder %s19, 1
    %p105 = por %p103, %p104
    %p107 = scmp.ne.s32.totalorder %s92, %s106
    %p108 = scmp.eq.s32.totalorder %s19, 0
    %p109 = por %p107, %p108
    %s111 = sadd.s32 %s110, 1
    %p114 = scmp.eq.s32.totalorder %s13, 1
    %p115 = scmp.ne.s32.totalorder %s110, %s112
    %p116 = scmp.eq.s32.totalorder %s13, 0
    %p117 = por %p115, %p116
    %p118 = scmp.ne.s32.totalorder %s110, %s112
    %p119 = scmp.eq.s32.totalorder %s18, 1
    %p120 = por %p118, %p119
    %p121 = scmp.ne.s32.totalorder %s112, %s113
    %p122 = scmp.eq.s32.totalorder %s18, 0
    %p123 = por %p121, %p122
    %p124 = scmp.ne.s32.totalorder %s112, %s113
    %p125 = scmp.eq.s32.totalorder %s19, 1
    %p126 = por %p124, %p125
    %p128 = scmp.ne.s32.totalorder %s113, %s127
    %p129 = scmp.eq.s32.totalorder %s19, 0
    %p130 = por %p128, %p129
    %s132 = sadd.s32 %s131, 1
    %p135 = scmp.eq.s32.totalorder %s13, 1
    %p136 = scmp.ne.s32.totalorder %s131, %s133
    %p137 = scmp.eq.s32.totalorder %s13, 0
    %p138 = por %p136, %p137
    %p139 = scmp.ne.s32.totalorder %s131, %s133
    %p140 = scmp.eq.s32.totalorder %s18, 1
    %p141 = por %p139, %p140
    %p142 = scmp.ne.s32.totalorder %s133, %s134
    %p143 = scmp.eq.s32.totalorder %s18, 0
    %p144 = por %p142, %p143
    %p145 = scmp.ne.s32.totalorder %s133, %s134
    %p146 = scmp.eq.s32.totalorder %s19, 1
    %p147 = por %p145, %p146
    %p149 = scmp.ne.s32.totalorder %s134, %s148
    %p150 = scmp.eq.s32.totalorder %s19, 0
    %p151 = por %p149, %p150
    %s153 = sadd.s32 %s152, 1
    %p156 = scmp.eq.s32.totalorder %s13, 1
    %p157 = scmp.ne.s32.totalorder %s152, %s154
    %p158 = scmp.eq.s32.totalorder %s13, 0
    %p159 = por %p157, %p158
    %p160 = scmp.ne.s32.totalorder %s152, %s154
    %p161 = scmp.eq.s32.totalorder %s18, 1
    %p162 = por %p160, %p161
    %p163 = scmp.ne.s32.totalorder %s154, %s155
    %p164 = scmp.eq.s32.totalorder %s18, 0
    %p165 = por %p163, %p164
    %p166 = scmp.ne.s32.totalorder %s154, %s155
    %p167 = scmp.eq.s32.totalorder %s19, 1
    %p168 = por %p166, %p167
    %p170 = scmp.ne.s32.totalorder %s155, %s169
    %p171 = scmp.eq.s32.totalorder %s19, 0
    %p172 = por %p170, %p171
    %s173 = ssub.s32 %s13, %s20
    %p174 = scmp.eq.s32.totalorder %s173, 0
    %s176 = sadd.s32 %s175, 1
    %s177 = scalar_select %p174, %s175, %s176
    %p180 = pneg %p174
    %p181 = scmp.eq.s32.totalorder %s13, 1
    %p182 = por %p180, %p181
    %p183 = scmp.ne.s32.totalorder %s175, %s178
    %p184 = scmp.eq.s32.totalorder %s13, 0
    %p185 = por %p183, %p184
    %p186 = scmp.ne.s32.totalorder %s175, %s178
    %p187 = scmp.eq.s32.totalorder %s18, 1
    %p188 = por %p186, %p187
    %p189 = scmp.ne.s32.totalorder %s178, %s179
    %p190 = scmp.eq.s32.totalorder %s18, 0
    %p191 = por %p189, %p190
    %p192 = scmp.ne.s32.totalorder %s178, %s179
    %p193 = scmp.eq.s32.totalorder %s19, 1
    %p194 = por %p192, %p193
    %p196 = scmp.ne.s32.totalorder %s179, %s195
    %p197 = scmp.eq.s32.totalorder %s19, 0
    %p198 = por %p196, %p197
    %p199 = scmp.le.s32.totalorder 1, %s13
    %p200 = scmp.lt.s32.totalorder %s13, 3
    %p201 = pnand %p199, %p200
    %p202 = pneg %p201
    // Predicated region
    $region9: #{decoding_network_forward.1} parent=5 // pred_check
      _
    $region10: #{decoding_network_forward.1} parent=5 // pred_check_branch
      %204 = sbr.rel (%p201) target = $region12
    $region11: #{decoding_network_forward.1} parent=5 // pred_region
      %s205 = ssub.s32 %s13, 1
      // Predicated region
      $region13: #{decoding_network_forward.1} parent=11 // pred_check
        %p206 = pneg %p60
      $region14: #{decoding_network_forward.1} parent=11 // pred_check_branch
        %208 = sbr.rel (%p206) target = $region16
      $region15: #{decoding_network_forward.1} parent=11 // pred_region
        _
      $region16: #{decoding_network_forward.1} parent=11 // pred_fallthru
        _
      // Predicated region
      $region17: #{decoding_network_forward.1} parent=11 // pred_check
        %p209 = pneg %p81
      $region18: #{decoding_network_forward.1} parent=11 // pred_check_branch
        %211 = sbr.rel (%p209) target = $region20
      $region19: #{decoding_network_forward.1} parent=11 // pred_region
        _
      $region20: #{decoding_network_forward.1} parent=11 // pred_fallthru
        _
      // Predicated region
      $region21: #{decoding_network_forward.1} parent=11 // pred_check
        %p212 = pneg %p102
      $region22: #{decoding_network_forward.1} parent=11 // pred_check_branch
        %214 = sbr.rel (%p212) target = $region24
      $region23: #{decoding_network_forward.1} parent=11 // pred_region
        _
      $region24: #{decoding_network_forward.1} parent=11 // pred_fallthru
        _
      // Predicated region
      $region25: #{decoding_network_forward.1} parent=11 // pred_check
        %p215 = pneg %p123
      $region26: #{decoding_network_forward.1} parent=11 // pred_check_branch
        %217 = sbr.rel (%p215) target = $region28
      $region27: #{decoding_network_forward.1} parent=11 // pred_region
        _
      $region28: #{decoding_network_forward.1} parent=11 // pred_fallthru
        _
      // Predicated region
      $region29: #{decoding_network_forward.1} parent=11 // pred_check
        %p218 = pneg %p144
      $region30: #{decoding_network_forward.1} parent=11 // pred_check_branch
        %220 = sbr.rel (%p218) target = $region32
      $region31: #{decoding_network_forward.1} parent=11 // pred_region
        _
      $region32: #{decoding_network_forward.1} parent=11 // pred_fallthru
        _
      // Predicated region
      $region33: #{decoding_network_forward.1} parent=11 // pred_check
        %p221 = pneg %p165
      $region34: #{decoding_network_forward.1} parent=11 // pred_check_branch
        %223 = sbr.rel (%p221) target = $region36
      $region35: #{decoding_network_forward.1} parent=11 // pred_region
        _
      $region36: #{decoding_network_forward.1} parent=11 // pred_fallthru
        _
    $region12: #{decoding_network_forward.1} parent=5 // pred_fallthru
      _
    %p224 = scmp.lt.s32.totalorder %s13, 2
    // Predicated region
    $region37: #{decoding_network_forward.1} parent=5 // pred_check
      %p225 = pneg %p224
    $region38: #{decoding_network_forward.1} parent=5 // pred_check_branch
      %227 = sbr.rel (%p225) target = $region40
    $region39: #{decoding_network_forward.1} parent=5 // pred_region
      // Predicated region
      $region41: #{decoding_network_forward.1} parent=39 // pred_check
        %p228 = pneg %p33
      $region42: #{decoding_network_forward.1} parent=39 // pred_check_branch
        %230 = sbr.rel (%p228) target = $region44
      $region43: #{decoding_network_forward.1} parent=39 // pred_region
        %p231 = scmp.lt.s32.totalorder %s13, 1
        %s232 = scalar_select %p231, %s13, 1
        %s233 = smul.addr %s232, 10
        %s234 = smul.addr %s233, 4
        %s235 = scalar_lea.vmem %s0, %s234
      $region44: #{decoding_network_forward.1} parent=39 // pred_fallthru
        _
    $region40: #{decoding_network_forward.1} parent=5 // pred_fallthru
      _
    %p236 = scmp.le.s32.totalorder 1, %s13
    %p237 = scmp.lt.s32.totalorder %s13, 3
    %p238 = pnand %p236, %p237
    %p239 = pneg %p238
    // Predicated region
    $region45: #{decoding_network_forward.1} parent=5 // pred_check
      _
    $region46: #{decoding_network_forward.1} parent=5 // pred_check_branch
      %241 = sbr.rel (%p238) target = $region48
    $region47: #{decoding_network_forward.1} parent=5 // pred_region
      %s242 = ssub.s32 %s13, 1
      %p243 = scmp.lt.s32.totalorder %s18, 1
      %s244 = scalar_select %p243, %s18, 1
      %s245 = smul.addr %s244, 10
      %s246 = smul.addr %s245, 4
      %s247 = scalar_lea.vmem %s0, %s246
      %p248 = pneg %p39
      %p249 = pneg %p36
      %p250 = pneg %p60
      %p251 = pneg %p57
      %p252 = pneg %p81
      %p253 = pneg %p78
      %p254 = pneg %p102
      %p255 = pneg %p99
      %p256 = pneg %p123
      %p257 = pneg %p120
      %p258 = pneg %p144
      %p259 = pneg %p141
      %p260 = pneg %p165
      %p261 = pneg %p162
      %p262 = pneg %p191
      %p263 = pneg %p188
      %p264 = scmp.lt.s32.totalorder %s18, 1
      %s265 = scalar_select %p264, %s18, 1
      %s266 = smul.addr %s265, 10
      %s267 = smul.addr %s266, 4
      %s268 = scalar_lea.vmem %s7, %s267
      %p269 = scmp.lt.s32.totalorder %s18, 1
      %s270 = scalar_select %p269, %s18, 1
      %s271 = smul.addr %s270, 10
      %s272 = smul.addr %s271, 4
      %s273 = scalar_lea.vmem %s0, %s272
      %p274 = scmp.lt.s32.totalorder %s18, 1
      %s275 = scalar_select %p274, %s18, 1
      %s276 = smul.addr %s275, 10
      %s277 = smul.addr %s276, 4
      %s278 = scalar_lea.vmem %s7, %s277
      %v280 = vlaneseq
      %v281 = vshrl.u32 %v280, 7
      %v282 = vadd.s32 %v281, 8
      %v283 = vadd.s32 %v281, 16
      %v284 = vadd.s32 %v281, 24
      %v285 = vadd.s32 %v281, 32
      %v286 = vadd.s32 %v281, 40
      %v287 = vadd.s32 %v281, 48
      %v288 = vadd.s32 %v281, 56
      %v289 = vadd.s32 %v281, 64
      %v290 = vadd.s32 %v281, 72
      %vm291 = vcmp.lt.s32.totalorder %v281, 0
      %v292 = vsub.s32 0, %v281
      %v293 = vsel %vm291, %v292, %v281
      %v294 = vmul.u32.u64.compose %v293, 3435973837
      %v295 = vextract.low.u32 %v294
      %v296 = vextract.high.u32 %v294
      %v297 = vshrl.u32 %v296, 3
      %v298 = vmul.u32 %v297, 10
      %v299 = vsub.s32 %v293, %v298
      %v300 = vsub.s32 0, %v299
      %v301 = vsel %vm291, %v300, %v299
      %vm302 = vcmp.lt.s32.totalorder %v282, 0
      %v303 = vsub.s32 0, %v282
      %v304 = vsel %vm302, %v303, %v282
      %v305 = vmul.u32.u64.compose %v304, 3435973837
      %v306 = vextract.low.u32 %v305
      %v307 = vextract.high.u32 %v305
      %v308 = vshrl.u32 %v307, 3
      %v309 = vmul.u32 %v308, 10
      %v310 = vsub.s32 %v304, %v309
      %v311 = vsub.s32 0, %v310
      %v312 = vsel %vm302, %v311, %v310
      %vm313 = vcmp.lt.s32.totalorder %v283, 0
      %v314 = vsub.s32 0, %v283
      %v315 = vsel %vm313, %v314, %v283
      %v316 = vmul.u32.u64.compose %v315, 3435973837
      %v317 = vextract.low.u32 %v316
      %v318 = vextract.high.u32 %v316
      %v319 = vshrl.u32 %v318, 3
      %v320 = vmul.u32 %v319, 10
      %v321 = vsub.s32 %v315, %v320
      %v322 = vsub.s32 0, %v321
      %v323 = vsel %vm313, %v322, %v321
      %vm324 = vcmp.lt.s32.totalorder %v284, 0
      %v325 = vsub.s32 0, %v284
      %v326 = vsel %vm324, %v325, %v284
      %v327 = vmul.u32.u64.compose %v326, 3435973837
      %v328 = vextract.low.u32 %v327
      %v329 = vextract.high.u32 %v327
      %v330 = vshrl.u32 %v329, 3
      %v331 = vmul.u32 %v330, 10
      %v332 = vsub.s32 %v326, %v331
      %v333 = vsub.s32 0, %v332
      %v334 = vsel %vm324, %v333, %v332
      %vm335 = vcmp.lt.s32.totalorder %v285, 0
      %v336 = vsub.s32 0, %v285
      %v337 = vsel %vm335, %v336, %v285
      %v338 = vmul.u32.u64.compose %v337, 3435973837
      %v339 = vextract.low.u32 %v338
      %v340 = vextract.high.u32 %v338
      %v341 = vshrl.u32 %v340, 3
      %v342 = vmul.u32 %v341, 10
      %v343 = vsub.s32 %v337, %v342
      %v344 = vsub.s32 0, %v343
      %v345 = vsel %vm335, %v344, %v343
      %vm346 = vcmp.lt.s32.totalorder %v286, 0
      %v347 = vsub.s32 0, %v286
      %v348 = vsel %vm346, %v347, %v286
      %v349 = vmul.u32.u64.compose %v348, 3435973837
      %v350 = vextract.low.u32 %v349
      %v351 = vextract.high.u32 %v349
      %v352 = vshrl.u32 %v351, 3
      %v353 = vmul.u32 %v352, 10
      %v354 = vsub.s32 %v348, %v353
      %v355 = vsub.s32 0, %v354
      %v356 = vsel %vm346, %v355, %v354
      %vm357 = vcmp.lt.s32.totalorder %v287, 0
      %v358 = vsub.s32 0, %v287
      %v359 = vsel %vm357, %v358, %v287
      %v360 = vmul.u32.u64.compose %v359, 3435973837
      %v361 = vextract.low.u32 %v360
      %v362 = vextract.high.u32 %v360
      %v363 = vshrl.u32 %v362, 3
      %v364 = vmul.u32 %v363, 10
      %v365 = vsub.s32 %v359, %v364
      %v366 = vsub.s32 0, %v365
      %v367 = vsel %vm357, %v366, %v365
      %vm368 = vcmp.lt.s32.totalorder %v288, 0
      %v369 = vsub.s32 0, %v288
      %v370 = vsel %vm368, %v369, %v288
      %v371 = vmul.u32.u64.compose %v370, 3435973837
      %v372 = vextract.low.u32 %v371
      %v373 = vextract.high.u32 %v371
      %v374 = vshrl.u32 %v373, 3
      %v375 = vmul.u32 %v374, 10
      %v376 = vsub.s32 %v370, %v375
      %v377 = vsub.s32 0, %v376
      %v378 = vsel %vm368, %v377, %v376
      %vm379 = vcmp.lt.s32.totalorder %v289, 0
      %v380 = vsub.s32 0, %v289
      %v381 = vsel %vm379, %v380, %v289
      %v382 = vmul.u32.u64.compose %v381, 3435973837
      %v383 = vextract.low.u32 %v382
      %v384 = vextract.high.u32 %v382
      %v385 = vshrl.u32 %v384, 3
      %v386 = vmul.u32 %v385, 10
      %v387 = vsub.s32 %v381, %v386
      %v388 = vsub.s32 0, %v387
      %v389 = vsel %vm379, %v388, %v387
      %vm390 = vcmp.lt.s32.totalorder %v290, 0
      %v391 = vsub.s32 0, %v290
      %v392 = vsel %vm390, %v391, %v290
      %v393 = vmul.u32.u64.compose %v392, 3435973837
      %v394 = vextract.low.u32 %v393
      %v395 = vextract.high.u32 %v393
      %v396 = vshrl.u32 %v395, 3
      %v397 = vmul.u32 %v396, 10
      %v398 = vsub.s32 %v392, %v397
      %v399 = vsub.s32 0, %v398
      %v400 = vsel %vm390, %v399, %v398
      %vm401 = vcmp.ne.s32.totalorder %v301, 0
      %vm402 = vcmp.ne.s32.totalorder %v312, 0
      %vm403 = vcmp.ne.s32.totalorder %v323, 0
      %vm404 = vcmp.ne.s32.totalorder %v334, 0
      %vm405 = vcmp.ne.s32.totalorder %v345, 0
      %vm406 = vcmp.ne.s32.totalorder %v356, 0
      %vm407 = vcmp.ne.s32.totalorder %v367, 0
      %vm408 = vcmp.ne.s32.totalorder %v378, 0
      %vm409 = vcmp.ne.s32.totalorder %v389, 0
      %vm410 = vcmp.ne.s32.totalorder %v400, 0
      %vm411 = vcmp.lt.s32.totalorder %v301, 0
      %vm412 = vcmp.lt.s32.totalorder %v312, 0
      %vm413 = vcmp.lt.s32.totalorder %v323, 0
      %vm414 = vcmp.lt.s32.totalorder %v334, 0
      %vm415 = vcmp.lt.s32.totalorder %v345, 0
      %vm416 = vcmp.lt.s32.totalorder %v356, 0
      %vm417 = vcmp.lt.s32.totalorder %v367, 0
      %vm418 = vcmp.lt.s32.totalorder %v378, 0
      %vm419 = vcmp.lt.s32.totalorder %v389, 0
      %vm420 = vcmp.lt.s32.totalorder %v400, 0
      %vm421 = vmand %vm411, %vm401
      %vm422 = vmand %vm412, %vm402
      %vm423 = vmand %vm413, %vm403
      %vm424 = vmand %vm414, %vm404
      %vm425 = vmand %vm415, %vm405
      %vm426 = vmand %vm416, %vm406
      %vm427 = vmand %vm417, %vm407
      %vm428 = vmand %vm418, %vm408
      %vm429 = vmand %vm419, %vm409
      %vm430 = vmand %vm420, %vm410
      %v431 = vadd.s32 %v301, 10
      %v432 = vadd.s32 %v312, 10
      %v433 = vadd.s32 %v323, 10
      %v434 = vadd.s32 %v334, 10
      %v435 = vadd.s32 %v345, 10
      %v436 = vadd.s32 %v356, 10
      %v437 = vadd.s32 %v367, 10
      %v438 = vadd.s32 %v378, 10
      %v439 = vadd.s32 %v389, 10
      %v440 = vadd.s32 %v400, 10
      %v441 = vsel %vm421, %v431, %v301
      %v442 = vsel %vm422, %v432, %v312
      %v443 = vsel %vm423, %v433, %v323
      %v444 = vsel %vm424, %v434, %v334
      %v445 = vsel %vm425, %v435, %v345
      %v446 = vsel %vm426, %v436, %v356
      %v447 = vsel %vm427, %v437, %v367
      %v448 = vsel %vm428, %v438, %v378
      %v449 = vsel %vm429, %v439, %v389
      %v450 = vsel %vm430, %v440, %v400
      %vm451 = vcmp.ge.s32.totalorder %v441, 1
      %vm452 = vcmp.ge.s32.totalorder %v442, 1
      %vm453 = vcmp.ge.s32.totalorder %v443, 1
      %vm454 = vcmp.ge.s32.totalorder %v444, 1
      %vm455 = vcmp.ge.s32.totalorder %v445, 1
      %vm456 = vcmp.ge.s32.totalorder %v446, 1
      %vm457 = vcmp.ge.s32.totalorder %v447, 1
      %vm458 = vcmp.ge.s32.totalorder %v448, 1
      %vm459 = vcmp.ge.s32.totalorder %v449, 1
      %vm460 = vcmp.ge.s32.totalorder %v450, 1
      %vm461 = vcmp.le.s32.totalorder %v441, 8
      %vm462 = vcmp.le.s32.totalorder %v442, 8
      %vm463 = vcmp.le.s32.totalorder %v443, 8
      %vm464 = vcmp.le.s32.totalorder %v444, 8
      %vm465 = vcmp.le.s32.totalorder %v445, 8
      %vm466 = vcmp.le.s32.totalorder %v446, 8
      %vm467 = vcmp.le.s32.totalorder %v447, 8
      %vm468 = vcmp.le.s32.totalorder %v448, 8
      %vm469 = vcmp.le.s32.totalorder %v449, 8
      %vm470 = vcmp.le.s32.totalorder %v450, 8
      %vm471 = vmand %vm451, %vm461
      %vm472 = vmand %vm452, %vm462
      %vm473 = vmand %vm453, %vm463
      %vm474 = vmand %vm454, %vm464
      %vm475 = vmand %vm455, %vm465
      %vm476 = vmand %vm456, %vm466
      %vm477 = vmand %vm457, %vm467
      %vm478 = vmand %vm458, %vm468
      %vm479 = vmand %vm459, %vm469
      %vm480 = vmand %vm460, %vm470
      %481 = vst [vmem:[#allocation2] sm:$0xf] 0
      %482 = vst [vmem:[#allocation2 + $0x4] sm:$0xf] 0
      %483 = vst [vmem:[#allocation2 + $0x8] sm:$0x3] 0
      %484 = vst [vmem:[#allocation2 + $0x30] sm:$0xc] 0
      %485 = vst [vmem:[#allocation2 + $0x34] sm:$0xf] 0
      %486 = vst [vmem:[#allocation2 + $0x38] sm:$0xf] 0
      %487 = vst [vmem:[#allocation3] sm:$0xf] 0
      %488 = vst [vmem:[#allocation3 + $0x4] sm:$0xf] 0
      %489 = vst [vmem:[#allocation3 + $0x8] sm:$0x3] 0
      %490 = vst [vmem:[#allocation3 + $0x30] sm:$0xc] 0
      %491 = vst [vmem:[#allocation3 + $0x34] sm:$0xf] 0
      %492 = vst [vmem:[#allocation3 + $0x38] sm:$0xf] 0
      %v493 = vld [vmem:[%s273] sm:$0xf]
      %v494 = vld [vmem:[%s273 + $0x4] sm:$0xf]
      %v495 = vld [vmem:[%s273 + $0x8] sm:$0xf]
      %v496 = vld [vmem:[%s273 + $0xc] sm:$0xf]
      %v497 = vld [vmem:[%s273 + $0x10] sm:$0xf]
      %v498 = vld [vmem:[%s273 + $0x14] sm:$0xf]
      %v499 = vld [vmem:[%s273 + $0x18] sm:$0xf]
      %v500 = vld [vmem:[%s273 + $0x1c] sm:$0xf]
      %v501 = vld [vmem:[%s273 + $0x20] sm:$0xf]
      %v502 = vld [vmem:[%s273 + $0x24] sm:$0xf]
      %vm513 = vcmask 1041408
      %vm514 = vcmask 1045508
      %vm515 = vmor %vm513, %vm514
      %v516 = vrot.slane %v493, 6
      %v517 = vrot.slane %v516, 4
      %v518 = vrot.slane %v494, 6
      %v519 = vsel %vm515, %v517, %v518
      %v520 = vrot.slane %v518, 4
      %v521 = vrot.slane %v495, 6
      %v522 = vsel %vm515, %v520, %v521
      %v523 = vrot.slane %v521, 4
      %v524 = vrot.slane %v496, 6
      %v525 = vsel %vm515, %v523, %v524
      %v526 = vrot.slane %v524, 4
      %v527 = vrot.slane %v497, 6
      %v528 = vsel %vm515, %v526, %v527
      %v529 = vrot.slane %v527, 4
      %v530 = vrot.slane %v498, 6
      %v531 = vsel %vm515, %v529, %v530
      %v532 = vrot.slane %v530, 4
      %v533 = vrot.slane %v499, 6
      %v534 = vsel %vm515, %v532, %v533
      %v535 = vrot.slane %v533, 4
      %v536 = vrot.slane %v500, 6
      %v537 = vsel %vm515, %v535, %v536
      %v538 = vrot.slane %v536, 4
      %v539 = vrot.slane %v501, 6
      %v540 = vsel %vm515, %v538, %v539
      %v541 = vrot.slane %v539, 4
      %v542 = vrot.slane %v502, 6
      %v543 = vsel %vm515, %v541, %v542
      %v544 = vrot.slane %v542, 4
      %556 = vst [vmem:[#allocation2 + $0x8] sm:$0xc] %v516
      %557 = vst [vmem:[#allocation2 + $0xc] sm:$0xf] %v519
      %558 = vst [vmem:[#allocation2 + $0x10] sm:$0xf] %v522
      %559 = vst [vmem:[#allocation2 + $0x14] sm:$0xf] %v525
      %560 = vst [vmem:[#allocation2 + $0x18] sm:$0xf] %v528
      %561 = vst [vmem:[#allocation2 + $0x1c] sm:$0xf] %v531
      %562 = vst [vmem:[#allocation2 + $0x20] sm:$0xf] %v534
      %563 = vst [vmem:[#allocation2 + $0x24] sm:$0xf] %v537
      %564 = vst [vmem:[#allocation2 + $0x28] sm:$0xf] %v540
      %565 = vst [vmem:[#allocation2 + $0x2c] sm:$0xf] %v543
      %566 = vst [vmem:[#allocation2 + $0x30] sm:$0x3] %v544
      %v567 = vld [vmem:[#allocation2 + $0x4] sm:$0xf]
      %v568 = vld [vmem:[#allocation2 + $0x8] sm:$0xf]
      %v569 = vld [vmem:[#allocation2 + $0xc] sm:$0xf]
      %v570 = vld [vmem:[#allocation2 + $0x10] sm:$0xf]
      %v571 = vld [vmem:[#allocation2 + $0x14] sm:$0xf]
      %v572 = vld [vmem:[#allocation2 + $0x18] sm:$0xf]
      %v573 = vld [vmem:[#allocation2 + $0x1c] sm:$0xf]
      %v574 = vld [vmem:[#allocation2 + $0x20] sm:$0xf]
      %v575 = vld [vmem:[#allocation2 + $0x24] sm:$0xf]
      %v576 = vld [vmem:[#allocation2 + $0x28] sm:$0xf]
      %v577 = vld [vmem:[#allocation2 + $0x2c] sm:$0x1]
      %v578 = vld [vmem:[%s1] sm:$0xf]
      %v579 = vld [vmem:[%s1 + $0x4] sm:$0xf]
      %v580 = vld [vmem:[%s1 + $0x8] sm:$0xf]
      %v581 = vld [vmem:[%s1 + $0xc] sm:$0xf]
      %v582 = vld [vmem:[%s1 + $0x10] sm:$0xf]
      %v583 = vld [vmem:[%s1 + $0x14] sm:$0xf]
      %v584 = vld [vmem:[%s1 + $0x18] sm:$0xf]
      %v585 = vld [vmem:[%s1 + $0x1c] sm:$0xf]
      %v586 = vld [vmem:[%s1 + $0x20] sm:$0xf]
      %v587 = vld [vmem:[%s1 + $0x24] sm:$0xf]
      %v588 = vld [vmem:[%s1 + $0x28] sm:$0xf]
      %v589 = vld [vmem:[%s1 + $0x2c] sm:$0xf]
      %v590 = vld [vmem:[%s1 + $0x30] sm:$0xf]
      %v591 = vld [vmem:[%s1 + $0x34] sm:$0xf]
      %v592 = vld [vmem:[%s1 + $0x38] sm:$0xf]
      %v593 = vld [vmem:[%s1 + $0x3c] sm:$0xf]
      %v594 = vld [vmem:[#allocation2 + $0x4] sm:$0xe]
      %s595 = scalar_lea.vmem %s1, 64
      %v596 = vld [vmem:[%s595] sm:$0xf]
      %v597 = vld [vmem:[%s595 + $0x4] sm:$0xf]
      %v598 = vld [vmem:[%s595 + $0x8] sm:$0xf]
      %v599 = vld [vmem:[%s595 + $0xc] sm:$0xf]
      %v600 = vld [vmem:[%s595 + $0x10] sm:$0xf]
      %v601 = vld [vmem:[%s595 + $0x14] sm:$0xf]
      %v602 = vld [vmem:[%s595 + $0x18] sm:$0xf]
      %v603 = vld [vmem:[%s595 + $0x1c] sm:$0xf]
      %v604 = vld [vmem:[%s595 + $0x20] sm:$0xf]
      %v605 = vld [vmem:[%s595 + $0x24] sm:$0xf]
      %v606 = vld [vmem:[%s595 + $0x28] sm:$0xf]
      %v607 = vld [vmem:[%s595 + $0x2c] sm:$0xf]
      %v608 = vld [vmem:[%s595 + $0x30] sm:$0xf]
      %v609 = vld [vmem:[%s595 + $0x34] sm:$0xf]
      %v610 = vld [vmem:[%s595 + $0x38] sm:$0xf]
      %v611 = vld [vmem:[%s595 + $0x3c] sm:$0xf]
      %v623 = vunpack.c.l.b16 %v594
      %v624 = vunpack.c.l.b16 %v568
      %v625 = vunpack.c.l.b16 %v569
      %v626 = vunpack.c.l.b16 %v570
      %v627 = vunpack.c.l.b16 %v571
      %v628 = vunpack.c.l.b16 %v572
      %v629 = vunpack.c.l.b16 %v573
      %v630 = vunpack.c.l.b16 %v574
      %v631 = vunpack.c.l.b16 %v575
      %v632 = vunpack.c.l.b16 %v576
      %v633 = vunpack.c.l.b16 %v577
      %v634 = vpack.c.b16 %v624, %v623
      %v635 = vpack.c.b16 %v626, %v625
      %v636 = vpack.c.b16 %v628, %v627
      %v637 = vpack.c.b16 %v630, %v629
      %v638 = vpack.c.b16 %v632, %v631
      %v639 = vpack.c.b16 %v633, %v633
      %vm640 = vcmask 1046528
      %v641 = vrot.slane %v634, 1
      %v642 = vrot.slane %v635, 1
      %v643 = vsel %vm640, %v641, %v642
      %v644 = vrot.slane %v636, 1
      %v645 = vsel %vm640, %v642, %v644
      %v646 = vrot.slane %v637, 1
      %v647 = vsel %vm640, %v644, %v646
      %v648 = vrot.slane %v638, 1
      %v649 = vsel %vm640, %v646, %v648
      %v650 = vrot.slane %v639, 1
      %v651 = vsel %vm640, %v648, %v650
      %v673 = vunpack.c.l.b16 %v596
      %v674 = vunpack.c.l.b16 %v597
      %v675 = vunpack.c.l.b16 %v598
      %v676 = vunpack.c.l.b16 %v599
      %v677 = vunpack.c.l.b16 %v600
      %v678 = vunpack.c.l.b16 %v601
      %v679 = vunpack.c.l.b16 %v602
      %v680 = vunpack.c.l.b16 %v603
      %v681 = vunpack.c.l.b16 %v604
      %v682 = vunpack.c.l.b16 %v605
      %v683 = vunpack.c.l.b16 %v606
      %v684 = vunpack.c.l.b16 %v607
      %v685 = vunpack.c.l.b16 %v608
      %v686 = vunpack.c.l.b16 %v609
      %v687 = vunpack.c.l.b16 %v610
      %v688 = vunpack.c.l.b16 %v611
      %v689 = vpack.c.b16 %v674, %v673
      %v690 = vpack.c.b16 %v676, %v675
      %v691 = vpack.c.b16 %v678, %v677
      %v692 = vpack.c.b16 %v680, %v679
      %v693 = vpack.c.b16 %v682, %v681
      %v694 = vpack.c.b16 %v684, %v683
      %v695 = vpack.c.b16 %v686, %v685
      %v696 = vpack.c.b16 %v688, %v687
      %705 = vmatprep.subr.bf16.mxu0 0
      %706 = vmatpush1.bf16.msra.mxu0 %v689
      %707 = vmatprep.subr.bf16.mxu0 0
      %708 = vmatpush1.bf16.msra.mxu0 %v690
      %709 = vmatprep.subr.bf16.mxu0 0
      %710 = vmatpush1.bf16.msra.mxu0 %v691
      %711 = vmatprep.subr.bf16.mxu0 0
      %712 = vmatpush1.bf16.msra.mxu0 %v692
      %713 = vmatprep.subr.bf16.mxu0 0
      %714 = vmatpush1.bf16.msra.mxu0 %v693
      %715 = vmatprep.subr.bf16.mxu0 0
      %716 = vmatpush1.bf16.msra.mxu0 %v694
      %717 = vmatprep.subr.bf16.mxu0 0
      %718 = vmatpush1.bf16.msra.mxu0 %v695
      %719 = vmatprep.subr.bf16.mxu0 0
      %720 = vmatpush1.bf16.msra.mxu0 %v696
      %721 = vmatprep.subr.bf16.mxu0 0
      %722 = vmatpush1.bf16.msra.mxu0 0
      %723 = vmatprep.subr.bf16.mxu0 0
      %724 = vmatpush1.bf16.msra.mxu0 0
      %725 = vmatprep.subr.bf16.mxu0 0
      %726 = vmatpush1.bf16.msra.mxu0 0
      %727 = vmatprep.subr.bf16.mxu0 0
      %728 = vmatpush1.bf16.msra.mxu0 0
      %729 = vmatprep.subr.bf16.mxu0 0
      %730 = vmatpush1.bf16.msra.mxu0 0
      %731 = vmatprep.subr.bf16.mxu0 0
      %732 = vmatpush1.bf16.msra.mxu0 0
      %733 = vmatprep.subr.bf16.mxu0 0
      %734 = vmatpush1.bf16.msra.mxu0 0
      %735 = vmatprep.subr.bf16.mxu0 0
      %736 = vmatpush1.bf16.msra.mxu0 0
      %737 = vmatprep.mubr.bf16.mxu0 0
      %738 = vmatmul.mubr.bf16.gmra.mrb[0].mxu0 %v643
      %v739 = vpop.f32.mrb[0].mxu0
      %v740 = vadd.f32 0.0, %v739
      %v741 = vpop.f32.mrb[0].mxu0
      %v742 = vpop.f32.mrb[0].mxu0
      %v743 = vadd.f32 0.0, %v742
      %v744 = vpop.f32.mrb[0].mxu0
      %745 = vmatprep.mubr.bf16.mxu0 0
      %746 = vmatmul.mubr.bf16.gmra.mrb[0].mxu0 %v645
      %v747 = vpop.f32.mrb[0].mxu0
      %v748 = vadd.f32 0.0, %v747
      %v749 = vpop.f32.mrb[0].mxu0
      %v750 = vpop.f32.mrb[0].mxu0
      %v751 = vadd.f32 0.0, %v750
      %v752 = vpop.f32.mrb[0].mxu0
      %753 = vmatprep.mubr.bf16.mxu0 0
      %754 = vmatmul.mubr.bf16.gmra.mrb[0].mxu0 %v647
      %v755 = vpop.f32.mrb[0].mxu0
      %v756 = vadd.f32 0.0, %v755
      %v757 = vpop.f32.mrb[0].mxu0
      %v758 = vpop.f32.mrb[0].mxu0
      %v759 = vadd.f32 0.0, %v758
      %v760 = vpop.f32.mrb[0].mxu0
      %761 = vmatprep.mubr.bf16.mxu0 0
      %762 = vmatmul.mubr.bf16.gmra.mrb[0].mxu0 %v649
      %v763 = vpop.f32.mrb[0].mxu0
      %v764 = vadd.f32 0.0, %v763
      %v765 = vpop.f32.mrb[0].mxu0
      %v766 = vpop.f32.mrb[0].mxu0
      %v767 = vadd.f32 0.0, %v766
      %v768 = vpop.f32.mrb[0].mxu0
      %769 = vmatprep.mubr.bf16.mxu0 0
      %770 = vmatmul.mubr.bf16.gmra.mrb[0].mxu0 %v651
      %v771 = vpop.f32.mrb[0].mxu0
      %v772 = vadd.f32 0.0, %v771
      %v773 = vpop.f32.mrb[0].mxu0
      %v774 = vpop.f32.mrb[0].mxu0
      %v775 = vadd.f32 0.0, %v774
      %v776 = vpop.f32.mrb[0].mxu0
      %777 = vdwg.mxu0
      %v779 = vunpack.c.l.b16 %v567
      %v780 = vpack.c.b16 %v624, %v779
      %vm781 = vsmask.f32 7424
      %v783 = vshrl.u32 %v780, 16
      %v785 = vshll.u32 %v780, 16
      %v787 = vrot.slane %v785, 1
      %v788 = vor.u32 %v783, %v787
      %v790 = vshll.u32 %v635, 16
      %v792 = vrot.slane %v790, 1
      %v793 = vsel %vm781, %v788, %v792
      %v794 = vshrl.u32 %v635, 16
      %v796 = vor.u32 %v794, %v792
      %v798 = vshll.u32 %v636, 16
      %v800 = vrot.slane %v798, 1
      %v801 = vsel %vm781, %v796, %v800
      %v802 = vshrl.u32 %v636, 16
      %v804 = vor.u32 %v802, %v800
      %v806 = vshll.u32 %v637, 16
      %v808 = vrot.slane %v806, 1
      %v809 = vsel %vm781, %v804, %v808
      %v810 = vshrl.u32 %v637, 16
      %v812 = vor.u32 %v810, %v808
      %v814 = vshll.u32 %v638, 16
      %v816 = vrot.slane %v814, 1
      %v817 = vsel %vm781, %v812, %v816
      %v818 = vshrl.u32 %v638, 16
      %v820 = vor.u32 %v818, %v816
      %v822 = vshll.u32 %v639, 16
      %v824 = vrot.slane %v822, 1
      %v825 = vsel %vm781, %v820, %v824
      %v847 = vunpack.c.l.b16 %v578
      %v848 = vunpack.c.l.b16 %v579
      %v849 = vunpack.c.l.b16 %v580
      %v850 = vunpack.c.l.b16 %v581
      %v851 = vunpack.c.l.b16 %v582
      %v852 = vunpack.c.l.b16 %v583
      %v853 = vunpack.c.l.b16 %v584
      %v854 = vunpack.c.l.b16 %v585
      %v855 = vunpack.c.l.b16 %v586
      %v856 = vunpack.c.l.b16 %v587
      %v857 = vunpack.c.l.b16 %v588
      %v858 = vunpack.c.l.b16 %v589
      %v859 = vunpack.c.l.b16 %v590
      %v860 = vunpack.c.l.b16 %v591
      %v861 = vunpack.c.l.b16 %v592
      %v862 = vunpack.c.l.b16 %v593
      %v863 = vpack.c.b16 %v848, %v847
      %v864 = vpack.c.b16 %v850, %v849
      %v865 = vpack.c.b16 %v852, %v851
      %v866 = vpack.c.b16 %v854, %v853
      %v867 = vpack.c.b16 %v856, %v855
      %v868 = vpack.c.b16 %v858, %v857
      %v869 = vpack.c.b16 %v860, %v859
      %v870 = vpack.c.b16 %v862, %v861
      %879 = vmatprep.subr.bf16.mxu0 0
      %880 = vmatpush1.bf16.msra.mxu0 %v863
      %881 = vmatprep.subr.bf16.mxu0 0
      %882 = vmatpush1.bf16.msra.mxu0 %v864
      %883 = vmatprep.subr.bf16.mxu0 0
      %884 = vmatpush1.bf16.msra.mxu0 %v865
      %885 = vmatprep.subr.bf16.mxu0 0
      %886 = vmatpush1.bf16.msra.mxu0 %v866
      %887 = vmatprep.subr.bf16.mxu0 0
      %888 = vmatpush1.bf16.msra.mxu0 %v867
      %889 = vmatprep.subr.bf16.mxu0 0
      %890 = vmatpush1.bf16.msra.mxu0 %v868
      %891 = vmatprep.subr.bf16.mxu0 0
      %892 = vmatpush1.bf16.msra.mxu0 %v869
      %893 = vmatprep.subr.bf16.mxu0 0
      %894 = vmatpush1.bf16.msra.mxu0 %v870
      %895 = vmatprep.subr.bf16.mxu0 0
      %896 = vmatpush1.bf16.msra.mxu0 0
      %897 = vmatprep.subr.bf16.mxu0 0
      %898 = vmatpush1.bf16.msra.mxu0 0
      %899 = vmatprep.subr.bf16.mxu0 0
      %900 = vmatpush1.bf16.msra.mxu0 0
      %901 = vmatprep.subr.bf16.mxu0 0
      %902 = vmatpush1.bf16.msra.mxu0 0
      %903 = vmatprep.subr.bf16.mxu0 0
      %904 = vmatpush1.bf16.msra.mxu0 0
      %905 = vmatprep.subr.bf16.mxu0 0
      %906 = vmatpush1.bf16.msra.mxu0 0
      %907 = vmatprep.subr.bf16.mxu0 0
      %908 = vmatpush1.bf16.msra.mxu0 0
      %909 = vmatprep.subr.bf16.mxu0 0
      %910 = vmatpush1.bf16.msra.mxu0 0
      %911 = vmatprep.mubr.bf16.mxu0 0
      %912 = vmatmul.mubr.bf16.gmra.mrb[0].mxu0 %v793
      %v913 = vpop.f32.mrb[0].mxu0
      %v914 = vadd.f32 %v740, %v913
      %v915 = vpop.f32.mrb[0].mxu0
      %v916 = vpop.f32.mrb[0].mxu0
      %v917 = vadd.f32 %v743, %v916
      %v918 = vpop.f32.mrb[0].mxu0
      %919 = vmatprep.mubr.bf16.mxu0 0
      %920 = vmatmul.mubr.bf16.gmra.mrb[0].mxu0 %v801
      %v921 = vpop.f32.mrb[0].mxu0
      %v922 = vadd.f32 %v748, %v921
      %v923 = vpop.f32.mrb[0].mxu0
      %v924 = vpop.f32.mrb[0].mxu0
      %v925 = vadd.f32 %v751, %v924
      %v926 = vpop.f32.mrb[0].mxu0
      %927 = vmatprep.mubr.bf16.mxu0 0
      %928 = vmatmul.mubr.bf16.gmra.mrb[0].mxu0 %v809
      %v929 = vpop.f32.mrb[0].mxu0
      %v930 = vadd.f32 %v756, %v929
      %v931 = vpop.f32.mrb[0].mxu0
      %v932 = vpop.f32.mrb[0].mxu0
      %v933 = vadd.f32 %v759, %v932
      %v934 = vpop.f32.mrb[0].mxu0
      %935 = vmatprep.mubr.bf16.mxu0 0
      %936 = vmatmul.mubr.bf16.gmra.mrb[0].mxu0 %v817
      %v937 = vpop.f32.mrb[0].mxu0
      %v938 = vadd.f32 %v764, %v937
      %v939 = vpop.f32.mrb[0].mxu0
      %v940 = vpop.f32.mrb[0].mxu0
      %v941 = vadd.f32 %v767, %v940
      %v942 = vpop.f32.mrb[0].mxu0
      %943 = vmatprep.mubr.bf16.mxu0 0
      %944 = vmatmul.mubr.bf16.gmra.mrb[0].mxu0 %v825
      %v945 = vpop.f32.mrb[0].mxu0
      %v946 = vadd.f32 %v772, %v945
      %v947 = vpop.f32.mrb[0].mxu0
      %v948 = vpop.f32.mrb[0].mxu0
      %v949 = vadd.f32 %v775, %v948
      %v950 = vpop.f32.mrb[0].mxu0
      %951 = vdwg.mxu0
      %v952 = vld [vmem:[#allocation2 + $0x2c] sm:$0x3]
      %s953 = scalar_lea.vmem %s1, 128
      %v954 = vld [vmem:[%s953] sm:$0xf]
      %v955 = vld [vmem:[%s953 + $0x4] sm:$0xf]
      %v956 = vld [vmem:[%s953 + $0x8] sm:$0xf]
      %v957 = vld [vmem:[%s953 + $0xc] sm:$0xf]
      %v958 = vld [vmem:[%s953 + $0x10] sm:$0xf]
      %v959 = vld [vmem:[%s953 + $0x14] sm:$0xf]
      %v960 = vld [vmem:[%s953 + $0x18] sm:$0xf]
      %v961 = vld [vmem:[%s953 + $0x1c] sm:$0xf]
      %v962 = vld [vmem:[%s953 + $0x20] sm:$0xf]
      %v963 = vld [vmem:[%s953 + $0x24] sm:$0xf]
      %v964 = vld [vmem:[%s953 + $0x28] sm:$0xf]
      %v965 = vld [vmem:[%s953 + $0x2c] sm:$0xf]
      %v966 = vld [vmem:[%s953 + $0x30] sm:$0xf]
      %v967 = vld [vmem:[%s953 + $0x34] sm:$0xf]
      %v968 = vld [vmem:[%s953 + $0x38] sm:$0xf]
      %v969 = vld [vmem:[%s953 + $0x3c] sm:$0xf]
      %v971 = vunpack.c.l.b16 %v952
      %v972 = vpack.c.b16 %v971, %v971
      %vm973 = vsmask.f32 6400
      %v975 = vshrl.u32 %v634, 16
      %v977 = vrot.slane %v975, 1
      %v978 = vshll.u32 %v634, 16
      %v980 = vrot.slane %v978, 2
      %v981 = vor.u32 %v977, %v980
      %v982 = vrot.slane %v794, 1
      %v983 = vrot.slane %v790, 2
      %v984 = vor.u32 %v982, %v983
      %v985 = vsel %vm973, %v981, %v984
      %v986 = vrot.slane %v802, 1
      %v987 = vrot.slane %v798, 2
      %v988 = vor.u32 %v986, %v987
      %v989 = vsel %vm973, %v984, %v988
      %v990 = vrot.slane %v810, 1
      %v991 = vrot.slane %v806, 2
      %v992 = vor.u32 %v990, %v991
      %v993 = vsel %vm973, %v988, %v992
      %v994 = vrot.slane %v818, 1
      %v995 = vrot.slane %v814, 2
      %v996 = vor.u32 %v994, %v995
      %v997 = vsel %vm973, %v992, %v996
      %v999 = vshrl.u32 %v972, 16
      %v1001 = vrot.slane %v999, 1
      %v1002 = vshll.u32 %v972, 16
      %v1004 = vrot.slane %v1002, 2
      %v1005 = vor.u32 %v1001, %v1004
      %v1006 = vsel %vm973, %v996, %v1005
      %v1028 = vunpack.c.l.b16 %v954
      %v1029 = vunpack.c.l.b16 %v955
      %v1030 = vunpack.c.l.b16 %v956
      %v1031 = vunpack.c.l.b16 %v957
      %v1032 = vunpack.c.l.b16 %v958
      %v1033 = vunpack.c.l.b16 %v959
      %v1034 = vunpack.c.l.b16 %v960
      %v1035 = vunpack.c.l.b16 %v961
      %v1036 = vunpack.c.l.b16 %v962
      %v1037 = vunpack.c.l.b16 %v963
      %v1038 = vunpack.c.l.b16 %v964
      %v1039 = vunpack.c.l.b16 %v965
      %v1040 = vunpack.c.l.b16 %v966
      %v1041 = vunpack.c.l.b16 %v967
      %v1042 = vunpack.c.l.b16 %v968
      %v1043 = vunpack.c.l.b16 %v969
      %v1044 = vpack.c.b16 %v1029, %v1028
      %v1045 = vpack.c.b16 %v1031, %v1030
      %v1046 = vpack.c.b16 %v1033, %v1032
      %v1047 = vpack.c.b16 %v1035, %v1034
      %v1048 = vpack.c.b16 %v1037, %v1036
      %v1049 = vpack.c.b16 %v1039, %v1038
      %v1050 = vpack.c.b16 %v1041, %v1040
      %v1051 = vpack.c.b16 %v1043, %v1042
      %1060 = vmatprep.subr.bf16.mxu0 0
      %1061 = vmatpush1.bf16.msra.mxu0 %v1044
      %1062 = vmatprep.subr.bf16.mxu0 0
      %1063 = vmatpush1.bf16.msra.mxu0 %v1045
      %1064 = vmatprep.subr.bf16.mxu0 0
      %1065 = vmatpush1.bf16.msra.mxu0 %v1046
      %1066 = vmatprep.subr.bf16.mxu0 0
      %1067 = vmatpush1.bf16.msra.mxu0 %v1047
      %1068 = vmatprep.subr.bf16.mxu0 0
      %1069 = vmatpush1.bf16.msra.mxu0 %v1048
      %1070 = vmatprep.subr.bf16.mxu0 0
      %1071 = vmatpush1.bf16.msra.mxu0 %v1049
      %1072 = vmatprep.subr.bf16.mxu0 0
      %1073 = vmatpush1.bf16.msra.mxu0 %v1050
      %1074 = vmatprep.subr.bf16.mxu0 0
      %1075 = vmatpush1.bf16.msra.mxu0 %v1051
      %1076 = vmatprep.subr.bf16.mxu0 0
      %1077 = vmatpush1.bf16.msra.mxu0 0
      %1078 = vmatprep.subr.bf16.mxu0 0
      %1079 = vmatpush1.bf16.msra.mxu0 0
      %1080 = vmatprep.subr.bf16.mxu0 0
      %1081 = vmatpush1.bf16.msra.mxu0 0
      %1082 = vmatprep.subr.bf16.mxu0 0
      %1083 = vmatpush1.bf16.msra.mxu0 0
      %1084 = vmatprep.subr.bf16.mxu0 0
      %1085 = vmatpush1.bf16.msra.mxu0 0
      %1086 = vmatprep.subr.bf16.mxu0 0
      %1087 = vmatpush1.bf16.msra.mxu0 0
      %1088 = vmatprep.subr.bf16.mxu0 0
      %1089 = vmatpush1.bf16.msra.mxu0 0
      %1090 = vmatprep.subr.bf16.mxu0 0
      %1091 = vmatpush1.bf16.msra.mxu0 0
      %1092 = vmatprep.mubr.bf16.mxu0 0
      %1093 = vmatmul.mubr.bf16.gmra.mrb[0].mxu0 %v985
      %v1094 = vpop.f32.mrb[0].mxu0
      %v1095 = vadd.f32 0.0, %v1094
      %v1096 = vpop.f32.mrb[0].mxu0
      %v1097 = vpop.f32.mrb[0].mxu0
      %v1098 = vadd.f32 0.0, %v1097
      %v1099 = vpop.f32.mrb[0].mxu0
      %1100 = vmatprep.mubr.bf16.mxu0 0
      %1101 = vmatmul.mubr.bf16.gmra.mrb[0].mxu0 %v989
      %v1102 = vpop.f32.mrb[0].mxu0
      %v1103 = vadd.f32 0.0, %v1102
      %v1104 = vpop.f32.mrb[0].mxu0
      %v1105 = vpop.f32.mrb[0].mxu0
      %v1106 = vadd.f32 0.0, %v1105
      %v1107 = vpop.f32.mrb[0].mxu0
      %1108 = vmatprep.mubr.bf16.mxu0 0
      %1109 = vmatmul.mubr.bf16.gmra.mrb[0].mxu0 %v993
      %v1110 = vpop.f32.mrb[0].mxu0
      %v1111 = vadd.f32 0.0, %v1110
      %v1112 = vpop.f32.mrb[0].mxu0
      %v1113 = vpop.f32.mrb[0].mxu0
      %v1114 = vadd.f32 0.0, %v1113
      %v1115 = vpop.f32.mrb[0].mxu0
      %1116 = vmatprep.mubr.bf16.mxu0 0
      %1117 = vmatmul.mubr.bf16.gmra.mrb[0].mxu0 %v997
      %v1118 = vpop.f32.mrb[0].mxu0
      %v1119 = vadd.f32 0.0, %v1118
      %v1120 = vpop.f32.mrb[0].mxu0
      %v1121 = vpop.f32.mrb[0].mxu0
      %v1122 = vadd.f32 0.0, %v1121
      %v1123 = vpop.f32.mrb[0].mxu0
      %1124 = vmatprep.mubr.bf16.mxu0 0
      %1125 = vmatmul.mubr.bf16.gmra.mrb[0].mxu0 %v1006
      %v1126 = vpop.f32.mrb[0].mxu0
      %v1127 = vadd.f32 0.0, %v1126
      %v1128 = vpop.f32.mrb[0].mxu0
      %v1129 = vpop.f32.mrb[0].mxu0
      %v1130 = vadd.f32 0.0, %v1129
      %v1131 = vpop.f32.mrb[0].mxu0
      %1132 = vdwg.mxu0
      %v1133 = vadd.f32 %v914, %v1095
      %v1134 = vadd.f32 %v917, %v1098
      %v1135 = vadd.f32 %v922, %v1103
      %v1136 = vadd.f32 %v925, %v1106
      %v1137 = vadd.f32 %v930, %v1111
      %v1138 = vadd.f32 %v933, %v1114
      %v1139 = vadd.f32 %v938, %v1119
      %v1140 = vadd.f32 %v941, %v1122
      %v1141 = vadd.f32 %v946, %v1127
      %v1142 = vadd.f32 %v949, %v1130
      %v1143 = vld [vmem:[#allocation2 + $0x8] sm:$0xe]
      %v1144 = vld [vmem:[#allocation2 + $0xc] sm:$0xf]
      %v1145 = vld [vmem:[#allocation2 + $0x10] sm:$0xf]
      %v1146 = vld [vmem:[#allocation2 + $0x14] sm:$0xf]
      %v1147 = vld [vmem:[#allocation2 + $0x18] sm:$0xf]
      %v1148 = vld [vmem:[#allocation2 + $0x1c] sm:$0xf]
      %v1149 = vld [vmem:[#allocation2 + $0x20] sm:$0xf]
      %v1150 = vld [vmem:[#allocation2 + $0x24] sm:$0xf]
      %v1151 = vld [vmem:[#allocation2 + $0x28] sm:$0xf]
      %v1152 = vld [vmem:[#allocation2 + $0x2c] sm:$0xf]
      %v1153 = vld [vmem:[#allocation2 + $0x30] sm:$0x3]
      %s1154 = scalar_lea.vmem %s1, 192
      %v1155 = vld [vmem:[%s1154] sm:$0xf]
      %v1156 = vld [vmem:[%s1154 + $0x4] sm:$0xf]
      %v1157 = vld [vmem:[%s1154 + $0x8] sm:$0xf]
      %v1158 = vld [vmem:[%s1154 + $0xc] sm:$0xf]
      %v1159 = vld [vmem:[%s1154 + $0x10] sm:$0xf]
      %v1160 = vld [vmem:[%s1154 + $0x14] sm:$0xf]
      %v1161 = vld [vmem:[%s1154 + $0x18] sm:$0xf]
      %v1162 = vld [vmem:[%s1154 + $0x1c] sm:$0xf]
      %v1163 = vld [vmem:[%s1154 + $0x20] sm:$0xf]
      %v1164 = vld [vmem:[%s1154 + $0x24] sm:$0xf]
      %v1165 = vld [vmem:[%s1154 + $0x28] sm:$0xf]
      %v1166 = vld [vmem:[%s1154 + $0x2c] sm:$0xf]
      %v1167 = vld [vmem:[%s1154 + $0x30] sm:$0xf]
      %v1168 = vld [vmem:[%s1154 + $0x34] sm:$0xf]
      %v1169 = vld [vmem:[%s1154 + $0x38] sm:$0xf]
      %v1170 = vld [vmem:[%s1154 + $0x3c] sm:$0xf]
      %v1182 = vunpack.c.l.b16 %v1143
      %v1183 = vunpack.c.l.b16 %v1144
      %v1184 = vunpack.c.l.b16 %v1145
      %v1185 = vunpack.c.l.b16 %v1146
      %v1186 = vunpack.c.l.b16 %v1147
      %v1187 = vunpack.c.l.b16 %v1148
      %v1188 = vunpack.c.l.b16 %v1149
      %v1189 = vunpack.c.l.b16 %v1150
      %v1190 = vunpack.c.l.b16 %v1151
      %v1191 = vunpack.c.l.b16 %v1152
      %v1192 = vunpack.c.l.b16 %v1153
      %v1193 = vpack.c.b16 %v1183, %v1182
      %v1194 = vpack.c.b16 %v1185, %v1184
      %v1195 = vpack.c.b16 %v1187, %v1186
      %v1196 = vpack.c.b16 %v1189, %v1188
      %v1197 = vpack.c.b16 %v1191, %v1190
      %v1198 = vpack.c.b16 %v1192, %v1192
      %v1200 = vshrl.u32 %v1193, 16
      %v1202 = vrot.slane %v1200, 1
      %v1203 = vshll.u32 %v1193, 16
      %v1205 = vrot.slane %v1203, 2
      %v1206 = vor.u32 %v1202, %v1205
      %v1208 = vshrl.u32 %v1194, 16
      %v1210 = vrot.slane %v1208, 1
      %v1211 = vshll.u32 %v1194, 16
      %v1213 = vrot.slane %v1211, 2
      %v1214 = vor.u32 %v1210, %v1213
      %v1215 = vsel %vm973, %v1206, %v1214
      %v1217 = vshrl.u32 %v1195, 16
      %v1219 = vrot.slane %v1217, 1
      %v1220 = vshll.u32 %v1195, 16
      %v1222 = vrot.slane %v1220, 2
      %v1223 = vor.u32 %v1219, %v1222
      %v1224 = vsel %vm973, %v1214, %v1223
      %v1226 = vshrl.u32 %v1196, 16
      %v1228 = vrot.slane %v1226, 1
      %v1229 = vshll.u32 %v1196, 16
      %v1231 = vrot.slane %v1229, 2
      %v1232 = vor.u32 %v1228, %v1231
      %v1233 = vsel %vm973, %v1223, %v1232
      %v1235 = vshrl.u32 %v1197, 16
      %v1237 = vrot.slane %v1235, 1
      %v1238 = vshll.u32 %v1197, 16
      %v1240 = vrot.slane %v1238, 2
      %v1241 = vor.u32 %v1237, %v1240
      %v1242 = vsel %vm973, %v1232, %v1241
      %v1244 = vshrl.u32 %v1198, 16
      %v1246 = vrot.slane %v1244, 1
      %v1247 = vshll.u32 %v1198, 16
      %v1249 = vrot.slane %v1247, 2
      %v1250 = vor.u32 %v1246, %v1249
      %v1251 = vsel %vm973, %v1241, %v1250
      %v1273 = vunpack.c.l.b16 %v1155
      %v1274 = vunpack.c.l.b16 %v1156
      %v1275 = vunpack.c.l.b16 %v1157
      %v1276 = vunpack.c.l.b16 %v1158
      %v1277 = vunpack.c.l.b16 %v1159
      %v1278 = vunpack.c.l.b16 %v1160
      %v1279 = vunpack.c.l.b16 %v1161
      %v1280 = vunpack.c.l.b16 %v1162
      %v1281 = vunpack.c.l.b16 %v1163
      %v1282 = vunpack.c.l.b16 %v1164
      %v1283 = vunpack.c.l.b16 %v1165
      %v1284 = vunpack.c.l.b16 %v1166
      %v1285 = vunpack.c.l.b16 %v1167
      %v1286 = vunpack.c.l.b16 %v1168
      %v1287 = vunpack.c.l.b16 %v1169
      %v1288 = vunpack.c.l.b16 %v1170
      %v1289 = vpack.c.b16 %v1274, %v1273
      %v1290 = vpack.c.b16 %v1276, %v1275
      %v1291 = vpack.c.b16 %v1278, %v1277
      %v1292 = vpack.c.b16 %v1280, %v1279
      %v1293 = vpack.c.b16 %v1282, %v1281
      %v1294 = vpack.c.b16 %v1284, %v1283
      %v1295 = vpack.c.b16 %v1286, %v1285
      %v1296 = vpack.c.b16 %v1288, %v1287
      %1305 = vmatprep.subr.bf16.mxu0 0
      %1306 = vmatpush1.bf16.msra.mxu0 %v1289
      %1307 = vmatprep.subr.bf16.mxu0 0
      %1308 = vmatpush1.bf16.msra.mxu0 %v1290
      %1309 = vmatprep.subr.bf16.mxu0 0
      %1310 = vmatpush1.bf16.msra.mxu0 %v1291
      %1311 = vmatprep.subr.bf16.mxu0 0
      %1312 = vmatpush1.bf16.msra.mxu0 %v1292
      %1313 = vmatprep.subr.bf16.mxu0 0
      %1314 = vmatpush1.bf16.msra.mxu0 %v1293
      %1315 = vmatprep.subr.bf16.mxu0 0
      %1316 = vmatpush1.bf16.msra.mxu0 %v1294
      %1317 = vmatprep.subr.bf16.mxu0 0
      %1318 = vmatpush1.bf16.msra.mxu0 %v1295
      %1319 = vmatprep.subr.bf16.mxu0 0
      %1320 = vmatpush1.bf16.msra.mxu0 %v1296
      %1321 = vmatprep.subr.bf16.mxu0 0
      %1322 = vmatpush1.bf16.msra.mxu0 0
      %1323 = vmatprep.subr.bf16.mxu0 0
      %1324 = vmatpush1.bf16.msra.mxu0 0
      %1325 = vmatprep.subr.bf16.mxu0 0
      %1326 = vmatpush1.bf16.msra.mxu0 0
      %1327 = vmatprep.subr.bf16.mxu0 0
      %1328 = vmatpush1.bf16.msra.mxu0 0
      %1329 = vmatprep.subr.bf16.mxu0 0
      %1330 = vmatpush1.bf16.msra.mxu0 0
      %1331 = vmatprep.subr.bf16.mxu0 0
      %1332 = vmatpush1.bf16.msra.mxu0 0
      %1333 = vmatprep.subr.bf16.mxu0 0
      %1334 = vmatpush1.bf16.msra.mxu0 0
      %1335 = vmatprep.subr.bf16.mxu0 0
      %1336 = vmatpush1.bf16.msra.mxu0 0
      %1337 = vmatprep.mubr.bf16.mxu0 0
      %1338 = vmatmul.mubr.bf16.gmra.mrb[0].mxu0 %v1215
      %v1339 = vpop.f32.mrb[0].mxu0
      %v1340 = vadd.f32 0.0, %v1339
      %v1341 = vpop.f32.mrb[0].mxu0
      %v1342 = vpop.f32.mrb[0].mxu0
      %v1343 = vadd.f32 0.0, %v1342
      %v1344 = vpop.f32.mrb[0].mxu0
      %1345 = vmatprep.mubr.bf16.mxu0 0
      %1346 = vmatmul.mubr.bf16.gmra.mrb[0].mxu0 %v1224
      %v1347 = vpop.f32.mrb[0].mxu0
      %v1348 = vadd.f32 0.0, %v1347
      %v1349 = vpop.f32.mrb[0].mxu0
      %v1350 = vpop.f32.mrb[0].mxu0
      %v1351 = vadd.f32 0.0, %v1350
      %v1352 = vpop.f32.mrb[0].mxu0
      %1353 = vmatprep.mubr.bf16.mxu0 0
      %1354 = vmatmul.mubr.bf16.gmra.mrb[0].mxu0 %v1233
      %v1355 = vpop.f32.mrb[0].mxu0
      %v1356 = vadd.f32 0.0, %v1355
      %v1357 = vpop.f32.mrb[0].mxu0
      %v1358 = vpop.f32.mrb[0].mxu0
      %v1359 = vadd.f32 0.0, %v1358
      %v1360 = vpop.f32.mrb[0].mxu0
      %1361 = vmatprep.mubr.bf16.mxu0 0
      %1362 = vmatmul.mubr.bf16.gmra.mrb[0].mxu0 %v1242
      %v1363 = vpop.f32.mrb[0].mxu0
      %v1364 = vadd.f32 0.0, %v1363
      %v1365 = vpop.f32.mrb[0].mxu0
      %v1366 = vpop.f32.mrb[0].mxu0
      %v1367 = vadd.f32 0.0, %v1366
      %v1368 = vpop.f32.mrb[0].mxu0
      %1369 = vmatprep.mubr.bf16.mxu0 0
      %1370 = vmatmul.mubr.bf16.gmra.mrb[0].mxu0 %v1251
      %v1371 = vpop.f32.mrb[0].mxu0
      %v1372 = vadd.f32 0.0, %v1371
      %v1373 = vpop.f32.mrb[0].mxu0
      %v1374 = vpop.f32.mrb[0].mxu0
      %v1375 = vadd.f32 0.0, %v1374
      %v1376 = vpop.f32.mrb[0].mxu0
      %1377 = vdwg.mxu0
      %v1378 = vadd.f32 %v1133, %v1340
      %v1379 = vadd.f32 %v1134, %v1343
      %v1380 = vadd.f32 %v1135, %v1348
      %v1381 = vadd.f32 %v1136, %v1351
      %v1382 = vadd.f32 %v1137, %v1356
      %v1383 = vadd.f32 %v1138, %v1359
      %v1384 = vadd.f32 %v1139, %v1364
      %v1385 = vadd.f32 %v1140, %v1367
      %v1386 = vadd.f32 %v1141, %v1372
      %v1387 = vadd.f32 %v1142, %v1375
      %v1388 = vld [vmem:[#allocation2 + $0x8] sm:$0xc]
      %s1389 = scalar_lea.vmem %s1, 256
      %v1390 = vld [vmem:[%s1389] sm:$0xf]
      %v1391 = vld [vmem:[%s1389 + $0x4] sm:$0xf]
      %v1392 = vld [vmem:[%s1389 + $0x8] sm:$0xf]
      %v1393 = vld [vmem:[%s1389 + $0xc] sm:$0xf]
      %v1394 = vld [vmem:[%s1389 + $0x10] sm:$0xf]
      %v1395 = vld [vmem:[%s1389 + $0x14] sm:$0xf]
      %v1396 = vld [vmem:[%s1389 + $0x18] sm:$0xf]
      %v1397 = vld [vmem:[%s1389 + $0x1c] sm:$0xf]
      %v1398 = vld [vmem:[%s1389 + $0x20] sm:$0xf]
      %v1399 = vld [vmem:[%s1389 + $0x24] sm:$0xf]
      %v1400 = vld [vmem:[%s1389 + $0x28] sm:$0xf]
      %v1401 = vld [vmem:[%s1389 + $0x2c] sm:$0xf]
      %v1402 = vld [vmem:[%s1389 + $0x30] sm:$0xf]
      %v1403 = vld [vmem:[%s1389 + $0x34] sm:$0xf]
      %v1404 = vld [vmem:[%s1389 + $0x38] sm:$0xf]
      %v1405 = vld [vmem:[%s1389 + $0x3c] sm:$0xf]
      %v1407 = vunpack.c.l.b16 %v1388
      %v1408 = vpack.c.b16 %v1183, %v1407
      %vm1409 = vcmask 1045504
      %v1410 = vrot.slane %v1408, 2
      %v1411 = vrot.slane %v1194, 2
      %v1412 = vsel %vm1409, %v1410, %v1411
      %v1413 = vrot.slane %v1195, 2
      %v1414 = vsel %vm1409, %v1411, %v1413
      %v1415 = vrot.slane %v1196, 2
      %v1416 = vsel %vm1409, %v1413, %v1415
      %v1417 = vrot.slane %v1197, 2
      %v1418 = vsel %vm1409, %v1415, %v1417
      %v1419 = vrot.slane %v1198, 2
      %v1420 = vsel %vm1409, %v1417, %v1419
      %v1442 = vunpack.c.l.b16 %v1390
      %v1443 = vunpack.c.l.b16 %v1391
      %v1444 = vunpack.c.l.b16 %v1392
      %v1445 = vunpack.c.l.b16 %v1393
      %v1446 = vunpack.c.l.b16 %v1394
      %v1447 = vunpack.c.l.b16 %v1395
      %v1448 = vunpack.c.l.b16 %v1396
      %v1449 = vunpack.c.l.b16 %v1397
      %v1450 = vunpack.c.l.b16 %v1398
      %v1451 = vunpack.c.l.b16 %v1399
      %v1452 = vunpack.c.l.b16 %v1400
      %v1453 = vunpack.c.l.b16 %v1401
      %v1454 = vunpack.c.l.b16 %v1402
      %v1455 = vunpack.c.l.b16 %v1403
      %v1456 = vunpack.c.l.b16 %v1404
      %v1457 = vunpack.c.l.b16 %v1405
      %v1458 = vpack.c.b16 %v1443, %v1442
      %v1459 = vpack.c.b16 %v1445, %v1444
      %v1460 = vpack.c.b16 %v1447, %v1446
      %v1461 = vpack.c.b16 %v1449, %v1448
      %v1462 = vpack.c.b16 %v1451, %v1450
      %v1463 = vpack.c.b16 %v1453, %v1452
      %v1464 = vpack.c.b16 %v1455, %v1454
      %v1465 = vpack.c.b16 %v1457, %v1456
      %1474 = vmatprep.subr.bf16.mxu0 0
      %1475 = vmatpush1.bf16.msra.mxu0 %v1458
      %1476 = vmatprep.subr.bf16.mxu0 0
      %1477 = vmatpush1.bf16.msra.mxu0 %v1459
      %1478 = vmatprep.subr.bf16.mxu0 0
      %1479 = vmatpush1.bf16.msra.mxu0 %v1460
      %1480 = vmatprep.subr.bf16.mxu0 0
      %1481 = vmatpush1.bf16.msra.mxu0 %v1461
      %1482 = vmatprep.subr.bf16.mxu0 0
      %1483 = vmatpush1.bf16.msra.mxu0 %v1462
      %1484 = vmatprep.subr.bf16.mxu0 0
      %1485 = vmatpush1.bf16.msra.mxu0 %v1463
      %1486 = vmatprep.subr.bf16.mxu0 0
      %1487 = vmatpush1.bf16.msra.mxu0 %v1464
      %1488 = vmatprep.subr.bf16.mxu0 0
      %1489 = vmatpush1.bf16.msra.mxu0 %v1465
      %1490 = vmatprep.subr.bf16.mxu0 0
      %1491 = vmatpush1.bf16.msra.mxu0 0
      %1492 = vmatprep.subr.bf16.mxu0 0
      %1493 = vmatpush1.bf16.msra.mxu0 0
      %1494 = vmatprep.subr.bf16.mxu0 0
      %1495 = vmatpush1.bf16.msra.mxu0 0
      %1496 = vmatprep.subr.bf16.mxu0 0
      %1497 = vmatpush1.bf16.msra.mxu0 0
      %1498 = vmatprep.subr.bf16.mxu0 0
      %1499 = vmatpush1.bf16.msra.mxu0 0
      %1500 = vmatprep.subr.bf16.mxu0 0
      %1501 = vmatpush1.bf16.msra.mxu0 0
      %1502 = vmatprep.subr.bf16.mxu0 0
      %1503 = vmatpush1.bf16.msra.mxu0 0
      %1504 = vmatprep.subr.bf16.mxu0 0
      %1505 = vmatpush1.bf16.msra.mxu0 0
      %1506 = vmatprep.mubr.bf16.mxu0 0
      %1507 = vmatmul.mubr.bf16.gmra.mrb[0].mxu0 %v1412
      %v1508 = vpop.f32.mrb[0].mxu0
      %v1509 = vadd.f32 0.0, %v1508
      %v1510 = vpop.f32.mrb[0].mxu0
      %v1511 = vpop.f32.mrb[0].mxu0
      %v1512 = vadd.f32 0.0, %v1511
      %v1513 = vpop.f32.mrb[0].mxu0
      %1514 = vmatprep.mubr.bf16.mxu0 0
      %1515 = vmatmul.mubr.bf16.gmra.mrb[0].mxu0 %v1414
      %v1516 = vpop.f32.mrb[0].mxu0
      %v1517 = vadd.f32 0.0, %v1516
      %v1518 = vpop.f32.mrb[0].mxu0
      %v1519 = vpop.f32.mrb[0].mxu0
      %v1520 = vadd.f32 0.0, %v1519
      %v1521 = vpop.f32.mrb[0].mxu0
      %1522 = vmatprep.mubr.bf16.mxu0 0
      %1523 = vmatmul.mubr.bf16.gmra.mrb[0].mxu0 %v1416
      %v1524 = vpop.f32.mrb[0].mxu0
      %v1525 = vadd.f32 0.0, %v1524
      %v1526 = vpop.f32.mrb[0].mxu0
      %v1527 = vpop.f32.mrb[0].mxu0
      %v1528 = vadd.f32 0.0, %v1527
      %v1529 = vpop.f32.mrb[0].mxu0
      %1530 = vmatprep.mubr.bf16.mxu0 0
      %1531 = vmatmul.mubr.bf16.gmra.mrb[0].mxu0 %v1418
      %v1532 = vpop.f32.mrb[0].mxu0
      %v1533 = vadd.f32 0.0, %v1532
      %v1534 = vpop.f32.mrb[0].mxu0
      %v1535 = vpop.f32.mrb[0].mxu0
      %v1536 = vadd.f32 0.0, %v1535
      %v1537 = vpop.f32.mrb[0].mxu0
      %1538 = vmatprep.mubr.bf16.mxu0 0
      %1539 = vmatmul.mubr.bf16.gmra.mrb[0].mxu0 %v1420
      %v1540 = vpop.f32.mrb[0].mxu0
      %v1541 = vadd.f32 0.0, %v1540
      %v1542 = vpop.f32.mrb[0].mxu0
      %v1543 = vpop.f32.mrb[0].mxu0
      %v1544 = vadd.f32 0.0, %v1543
      %v1545 = vpop.f32.mrb[0].mxu0
      %1546 = vdwg.mxu0
      %v1547 = vadd.f32 %v1378, %v1509
      %v1548 = vadd.f32 %v1379, %v1512
      %v1549 = vadd.f32 %v1380, %v1517
      %v1550 = vadd.f32 %v1381, %v1520
      %v1551 = vadd.f32 %v1382, %v1525
      %v1552 = vadd.f32 %v1383, %v1528
      %v1553 = vadd.f32 %v1384, %v1533
      %v1554 = vadd.f32 %v1385, %v1536
      %v1555 = vadd.f32 %v1386, %v1541
      %v1556 = vadd.f32 %v1387, %v1544
      %v1557 = vld [vmem:[#allocation2 + $0x30] sm:$0x7]
      %s1558 = scalar_lea.vmem %s1, 320
      %v1559 = vld [vmem:[%s1558] sm:$0xf]
      %v1560 = vld [vmem:[%s1558 + $0x4] sm:$0xf]
      %v1561 = vld [vmem:[%s1558 + $0x8] sm:$0xf]
      %v1562 = vld [vmem:[%s1558 + $0xc] sm:$0xf]
      %v1563 = vld [vmem:[%s1558 + $0x10] sm:$0xf]
      %v1564 = vld [vmem:[%s1558 + $0x14] sm:$0xf]
      %v1565 = vld [vmem:[%s1558 + $0x18] sm:$0xf]
      %v1566 = vld [vmem:[%s1558 + $0x1c] sm:$0xf]
      %v1567 = vld [vmem:[%s1558 + $0x20] sm:$0xf]
      %v1568 = vld [vmem:[%s1558 + $0x24] sm:$0xf]
      %v1569 = vld [vmem:[%s1558 + $0x28] sm:$0xf]
      %v1570 = vld [vmem:[%s1558 + $0x2c] sm:$0xf]
      %v1571 = vld [vmem:[%s1558 + $0x30] sm:$0xf]
      %v1572 = vld [vmem:[%s1558 + $0x34] sm:$0xf]
      %v1573 = vld [vmem:[%s1558 + $0x38] sm:$0xf]
      %v1574 = vld [vmem:[%s1558 + $0x3c] sm:$0xf]
      %v1576 = vunpack.c.l.b16 %v1557
      %v1577 = vpack.c.b16 %v1576, %v1576
      %vm1578 = vsmask.f32 5376
      %v1580 = vshrl.u32 %v1408, 16
      %v1582 = vrot.slane %v1580, 2
      %v1583 = vshll.u32 %v1408, 16
      %v1585 = vrot.slane %v1583, 3
      %v1586 = vor.u32 %v1582, %v1585
      %v1587 = vrot.slane %v1208, 2
      %v1588 = vrot.slane %v1211, 3
      %v1589 = vor.u32 %v1587, %v1588
      %v1590 = vsel %vm1578, %v1586, %v1589
      %v1591 = vrot.slane %v1217, 2
      %v1592 = vrot.slane %v1220, 3
      %v1593 = vor.u32 %v1591, %v1592
      %v1594 = vsel %vm1578, %v1589, %v1593
      %v1595 = vrot.slane %v1226, 2
      %v1596 = vrot.slane %v1229, 3
      %v1597 = vor.u32 %v1595, %v1596
      %v1598 = vsel %vm1578, %v1593, %v1597
      %v1599 = vrot.slane %v1235, 2
      %v1600 = vrot.slane %v1238, 3
      %v1601 = vor.u32 %v1599, %v1600
      %v1602 = vsel %vm1578, %v1597, %v1601
      %v1604 = vshrl.u32 %v1577, 16
      %v1606 = vrot.slane %v1604, 2
      %v1607 = vshll.u32 %v1577, 16
      %v1609 = vrot.slane %v1607, 3
      %v1610 = vor.u32 %v1606, %v1609
      %v1611 = vsel %vm1578, %v1601, %v1610
      %v1633 = vunpack.c.l.b16 %v1559
      %v1634 = vunpack.c.l.b16 %v1560
      %v1635 = vunpack.c.l.b16 %v1561
      %v1636 = vunpack.c.l.b16 %v1562
      %v1637 = vunpack.c.l.b16 %v1563
      %v1638 = vunpack.c.l.b16 %v1564
      %v1639 = vunpack.c.l.b16 %v1565
      %v1640 = vunpack.c.l.b16 %v1566
      %v1641 = vunpack.c.l.b16 %v1567
      %v1642 = vunpack.c.l.b16 %v1568
      %v1643 = vunpack.c.l.b16 %v1569
      %v1644 = vunpack.c.l.b16 %v1570
      %v1645 = vunpack.c.l.b16 %v1571
      %v1646 = vunpack.c.l.b16 %v1572
      %v1647 = vunpack.c.l.b16 %v1573
      %v1648 = vunpack.c.l.b16 %v1574
      %v1649 = vpack.c.b16 %v1634, %v1633
      %v1650 = vpack.c.b16 %v1636, %v1635
      %v1651 = vpack.c.b16 %v1638, %v1637
      %v1652 = vpack.c.b16 %v1640, %v1639
      %v1653 = vpack.c.b16 %v1642, %v1641
      %v1654 = vpack.c.b16 %v1644, %v1643
      %v1655 = vpack.c.b16 %v1646, %v1645
      %v1656 = vpack.c.b16 %v1648, %v1647
      %1665 = vmatprep.subr.bf16.mxu0 0
      %1666 = vmatpush1.bf16.msra.mxu0 %v1649
      %1667 = vmatprep.subr.bf16.mxu0 0
      %1668 = vmatpush1.bf16.msra.mxu0 %v1650
      %1669 = vmatprep.subr.bf16.mxu0 0
      %1670 = vmatpush1.bf16.msra.mxu0 %v1651
      %1671 = vmatprep.subr.bf16.mxu0 0
      %1672 = vmatpush1.bf16.msra.mxu0 %v1652
      %1673 = vmatprep.subr.bf16.mxu0 0
      %1674 = vmatpush1.bf16.msra.mxu0 %v1653
      %1675 = vmatprep.subr.bf16.mxu0 0
      %1676 = vmatpush1.bf16.msra.mxu0 %v1654
      %1677 = vmatprep.subr.bf16.mxu0 0
      %1678 = vmatpush1.bf16.msra.mxu0 %v1655
      %1679 = vmatprep.subr.bf16.mxu0 0
      %1680 = vmatpush1.bf16.msra.mxu0 %v1656
      %1681 = vmatprep.subr.bf16.mxu0 0
      %1682 = vmatpush1.bf16.msra.mxu0 0
      %1683 = vmatprep.subr.bf16.mxu0 0
      %1684 = vmatpush1.bf16.msra.mxu0 0
      %1685 = vmatprep.subr.bf16.mxu0 0
      %1686 = vmatpush1.bf16.msra.mxu0 0
      %1687 = vmatprep.subr.bf16.mxu0 0
      %1688 = vmatpush1.bf16.msra.mxu0 0
      %1689 = vmatprep.subr.bf16.mxu0 0
      %1690 = vmatpush1.bf16.msra.mxu0 0
      %1691 = vmatprep.subr.bf16.mxu0 0
      %1692 = vmatpush1.bf16.msra.mxu0 0
      %1693 = vmatprep.subr.bf16.mxu0 0
      %1694 = vmatpush1.bf16.msra.mxu0 0
      %1695 = vmatprep.subr.bf16.mxu0 0
      %1696 = vmatpush1.bf16.msra.mxu0 0
      %1697 = vmatprep.mubr.bf16.mxu0 0
      %1698 = vmatmul.mubr.bf16.gmra.mrb[0].mxu0 %v1590
      %v1699 = vpop.f32.mrb[0].mxu0
      %v1700 = vadd.f32 0.0, %v1699
      %v1701 = vpop.f32.mrb[0].mxu0
      %v1702 = vpop.f32.mrb[0].mxu0
      %v1703 = vadd.f32 0.0, %v1702
      %v1704 = vpop.f32.mrb[0].mxu0
      %1705 = vmatprep.mubr.bf16.mxu0 0
      %1706 = vmatmul.mubr.bf16.gmra.mrb[0].mxu0 %v1594
      %v1707 = vpop.f32.mrb[0].mxu0
      %v1708 = vadd.f32 0.0, %v1707
      %v1709 = vpop.f32.mrb[0].mxu0
      %v1710 = vpop.f32.mrb[0].mxu0
      %v1711 = vadd.f32 0.0, %v1710
      %v1712 = vpop.f32.mrb[0].mxu0
      %1713 = vmatprep.mubr.bf16.mxu0 0
      %1714 = vmatmul.mubr.bf16.gmra.mrb[0].mxu0 %v1598
      %v1715 = vpop.f32.mrb[0].mxu0
      %v1716 = vadd.f32 0.0, %v1715
      %v1717 = vpop.f32.mrb[0].mxu0
      %v1718 = vpop.f32.mrb[0].mxu0
      %v1719 = vadd.f32 0.0, %v1718
      %v1720 = vpop.f32.mrb[0].mxu0
      %1721 = vmatprep.mubr.bf16.mxu0 0
      %1722 = vmatmul.mubr.bf16.gmra.mrb[0].mxu0 %v1602
      %v1723 = vpop.f32.mrb[0].mxu0
      %v1724 = vadd.f32 0.0, %v1723
      %v1725 = vpop.f32.mrb[0].mxu0
      %v1726 = vpop.f32.mrb[0].mxu0
      %v1727 = vadd.f32 0.0, %v1726
      %v1728 = vpop.f32.mrb[0].mxu0
      %1729 = vmatprep.mubr.bf16.mxu0 0
      %1730 = vmatmul.mubr.bf16.gmra.mrb[0].mxu0 %v1611
      %v1731 = vpop.f32.mrb[0].mxu0
      %v1732 = vadd.f32 0.0, %v1731
      %v1733 = vpop.f32.mrb[0].mxu0
      %v1734 = vpop.f32.mrb[0].mxu0
      %v1735 = vadd.f32 0.0, %v1734
      %v1736 = vpop.f32.mrb[0].mxu0
      %1737 = vdwg.mxu0
      %v1738 = vadd.f32 %v1547, %v1700
      %v1739 = vadd.f32 %v1548, %v1703
      %v1740 = vadd.f32 %v1549, %v1708
      %v1741 = vadd.f32 %v1550, %v1711
      %v1742 = vadd.f32 %v1551, %v1716
      %v1743 = vadd.f32 %v1552, %v1719
      %v1744 = vadd.f32 %v1553, %v1724
      %v1745 = vadd.f32 %v1554, %v1727
      %v1746 = vadd.f32 %v1555, %v1732
      %v1747 = vadd.f32 %v1556, %v1735
      %v1748 = vld [vmem:[#allocation2 + $0xc] sm:$0xc]
      %v1749 = vld [vmem:[#allocation2 + $0x10] sm:$0xf]
      %v1750 = vld [vmem:[#allocation2 + $0x14] sm:$0xf]
      %v1751 = vld [vmem:[#allocation2 + $0x18] sm:$0xf]
      %v1752 = vld [vmem:[#allocation2 + $0x1c] sm:$0xf]
      %v1753 = vld [vmem:[#allocation2 + $0x20] sm:$0xf]
      %v1754 = vld [vmem:[#allocation2 + $0x24] sm:$0xf]
      %v1755 = vld [vmem:[#allocation2 + $0x28] sm:$0xf]
      %v1756 = vld [vmem:[#allocation2 + $0x2c] sm:$0xf]
      %v1757 = vld [vmem:[#allocation2 + $0x30] sm:$0xf]
      %v1758 = vld [vmem:[#allocation2 + $0x34] sm:$0x7]
      %s1759 = scalar_lea.vmem %s1, 384
      %v1760 = vld [vmem:[%s1759] sm:$0xf]
      %v1761 = vld [vmem:[%s1759 + $0x4] sm:$0xf]
      %v1762 = vld [vmem:[%s1759 + $0x8] sm:$0xf]
      %v1763 = vld [vmem:[%s1759 + $0xc] sm:$0xf]
      %v1764 = vld [vmem:[%s1759 + $0x10] sm:$0xf]
      %v1765 = vld [vmem:[%s1759 + $0x14] sm:$0xf]
      %v1766 = vld [vmem:[%s1759 + $0x18] sm:$0xf]
      %v1767 = vld [vmem:[%s1759 + $0x1c] sm:$0xf]
      %v1768 = vld [vmem:[%s1759 + $0x20] sm:$0xf]
      %v1769 = vld [vmem:[%s1759 + $0x24] sm:$0xf]
      %v1770 = vld [vmem:[%s1759 + $0x28] sm:$0xf]
      %v1771 = vld [vmem:[%s1759 + $0x2c] sm:$0xf]
      %v1772 = vld [vmem:[%s1759 + $0x30] sm:$0xf]
      %v1773 = vld [vmem:[%s1759 + $0x34] sm:$0xf]
      %v1774 = vld [vmem:[%s1759 + $0x38] sm:$0xf]
      %v1775 = vld [vmem:[%s1759 + $0x3c] sm:$0xf]
      %v1787 = vunpack.c.l.b16 %v1748
      %v1788 = vunpack.c.l.b16 %v1749
      %v1789 = vunpack.c.l.b16 %v1750
      %v1790 = vunpack.c.l.b16 %v1751
      %v1791 = vunpack.c.l.b16 %v1752
      %v1792 = vunpack.c.l.b16 %v1753
      %v1793 = vunpack.c.l.b16 %v1754
      %v1794 = vunpack.c.l.b16 %v1755
      %v1795 = vunpack.c.l.b16 %v1756
      %v1796 = vunpack.c.l.b16 %v1757
      %v1797 = vunpack.c.l.b16 %v1758
      %v1798 = vpack.c.b16 %v1788, %v1787
      %v1799 = vpack.c.b16 %v1790, %v1789
      %v1800 = vpack.c.b16 %v1792, %v1791
      %v1801 = vpack.c.b16 %v1794, %v1793
      %v1802 = vpack.c.b16 %v1796, %v1795
      %v1803 = vpack.c.b16 %v1797, %v1797
      %v1805 = vshrl.u32 %v1798, 16
      %v1807 = vrot.slane %v1805, 2
      %v1808 = vshll.u32 %v1798, 16
      %v1810 = vrot.slane %v1808, 3
      %v1811 = vor.u32 %v1807, %v1810
      %v1813 = vshrl.u32 %v1799, 16
      %v1815 = vrot.slane %v1813, 2
      %v1816 = vshll.u32 %v1799, 16
      %v1818 = vrot.slane %v1816, 3
      %v1819 = vor.u32 %v1815, %v1818
      %v1820 = vsel %vm1578, %v1811, %v1819
      %v1822 = vshrl.u32 %v1800, 16
      %v1824 = vrot.slane %v1822, 2
      %v1825 = vshll.u32 %v1800, 16
      %v1827 = vrot.slane %v1825, 3
      %v1828 = vor.u32 %v1824, %v1827
      %v1829 = vsel %vm1578, %v1819, %v1828
      %v1831 = vshrl.u32 %v1801, 16
      %v1833 = vrot.slane %v1831, 2
      %v1834 = vshll.u32 %v1801, 16
      %v1836 = vrot.slane %v1834, 3
      %v1837 = vor.u32 %v1833, %v1836
      %v1838 = vsel %vm1578, %v1828, %v1837
      %v1840 = vshrl.u32 %v1802, 16
      %v1842 = vrot.slane %v1840, 2
      %v1843 = vshll.u32 %v1802, 16
      %v1845 = vrot.slane %v1843, 3
      %v1846 = vor.u32 %v1842, %v1845
      %v1847 = vsel %vm1578, %v1837, %v1846
      %v1849 = vshrl.u32 %v1803, 16
      %v1851 = vrot.slane %v1849, 2
      %v1852 = vshll.u32 %v1803, 16
      %v1854 = vrot.slane %v1852, 3
      %v1855 = vor.u32 %v1851, %v1854
      %v1856 = vsel %vm1578, %v1846, %v1855
      %v1878 = vunpack.c.l.b16 %v1760
      %v1879 = vunpack.c.l.b16 %v1761
      %v1880 = vunpack.c.l.b16 %v1762
      %v1881 = vunpack.c.l.b16 %v1763
      %v1882 = vunpack.c.l.b16 %v1764
      %v1883 = vunpack.c.l.b16 %v1765
      %v1884 = vunpack.c.l.b16 %v1766
      %v1885 = vunpack.c.l.b16 %v1767
      %v1886 = vunpack.c.l.b16 %v1768
      %v1887 = vunpack.c.l.b16 %v1769
      %v1888 = vunpack.c.l.b16 %v1770
      %v1889 = vunpack.c.l.b16 %v1771
      %v1890 = vunpack.c.l.b16 %v1772
      %v1891 = vunpack.c.l.b16 %v1773
      %v1892 = vunpack.c.l.b16 %v1774
      %v1893 = vunpack.c.l.b16 %v1775
      %v1894 = vpack.c.b16 %v1879, %v1878
      %v1895 = vpack.c.b16 %v1881, %v1880
      %v1896 = vpack.c.b16 %v1883, %v1882
      %v1897 = vpack.c.b16 %v1885, %v1884
      %v1898 = vpack.c.b16 %v1887, %v1886
      %v1899 = vpack.c.b16 %v1889, %v1888
      %v1900 = vpack.c.b16 %v1891, %v1890
      %v1901 = vpack.c.b16 %v1893, %v1892
      %1910 = vmatprep.subr.bf16.mxu0 0
      %1911 = vmatpush1.bf16.msra.mxu0 %v1894
      %1912 = vmatprep.subr.bf16.mxu0 0
      %1913 = vmatpush1.bf16.msra.mxu0 %v1895
      %1914 = vmatprep.subr.bf16.mxu0 0
      %1915 = vmatpush1.bf16.msra.mxu0 %v1896
      %1916 = vmatprep.subr.bf16.mxu0 0
      %1917 = vmatpush1.bf16.msra.mxu0 %v1897
      %1918 = vmatprep.subr.bf16.mxu0 0
      %1919 = vmatpush1.bf16.msra.mxu0 %v1898
      %1920 = vmatprep.subr.bf16.mxu0 0
      %1921 = vmatpush1.bf16.msra.mxu0 %v1899
      %1922 = vmatprep.subr.bf16.mxu0 0
      %1923 = vmatpush1.bf16.msra.mxu0 %v1900
      %1924 = vmatprep.subr.bf16.mxu0 0
      %1925 = vmatpush1.bf16.msra.mxu0 %v1901
      %1926 = vmatprep.subr.bf16.mxu0 0
      %1927 = vmatpush1.bf16.msra.mxu0 0
      %1928 = vmatprep.subr.bf16.mxu0 0
      %1929 = vmatpush1.bf16.msra.mxu0 0
      %1930 = vmatprep.subr.bf16.mxu0 0
      %1931 = vmatpush1.bf16.msra.mxu0 0
      %1932 = vmatprep.subr.bf16.mxu0 0
      %1933 = vmatpush1.bf16.msra.mxu0 0
      %1934 = vmatprep.subr.bf16.mxu0 0
      %1935 = vmatpush1.bf16.msra.mxu0 0
      %1936 = vmatprep.subr.bf16.mxu0 0
      %1937 = vmatpush1.bf16.msra.mxu0 0
      %1938 = vmatprep.subr.bf16.mxu0 0
      %1939 = vmatpush1.bf16.msra.mxu0 0
      %1940 = vmatprep.subr.bf16.mxu0 0
      %1941 = vmatpush1.bf16.msra.mxu0 0
      %1942 = vmatprep.mubr.bf16.mxu0 0
      %1943 = vmatmul.mubr.bf16.gmra.mrb[0].mxu0 %v1820
      %v1944 = vpop.f32.mrb[0].mxu0
      %v1945 = vadd.f32 0.0, %v1944
      %v1946 = vpop.f32.mrb[0].mxu0
      %v1947 = vpop.f32.mrb[0].mxu0
      %v1948 = vadd.f32 0.0, %v1947
      %v1949 = vpop.f32.mrb[0].mxu0
      %1950 = vmatprep.mubr.bf16.mxu0 0
      %1951 = vmatmul.mubr.bf16.gmra.mrb[0].mxu0 %v1829
      %v1952 = vpop.f32.mrb[0].mxu0
      %v1953 = vadd.f32 0.0, %v1952
      %v1954 = vpop.f32.mrb[0].mxu0
      %v1955 = vpop.f32.mrb[0].mxu0
      %v1956 = vadd.f32 0.0, %v1955
      %v1957 = vpop.f32.mrb[0].mxu0
      %1958 = vmatprep.mubr.bf16.mxu0 0
      %1959 = vmatmul.mubr.bf16.gmra.mrb[0].mxu0 %v1838
      %v1960 = vpop.f32.mrb[0].mxu0
      %v1961 = vadd.f32 0.0, %v1960
      %v1962 = vpop.f32.mrb[0].mxu0
      %v1963 = vpop.f32.mrb[0].mxu0
      %v1964 = vadd.f32 0.0, %v1963
      %v1965 = vpop.f32.mrb[0].mxu0
      %1966 = vmatprep.mubr.bf16.mxu0 0
      %1967 = vmatmul.mubr.bf16.gmra.mrb[0].mxu0 %v1847
      %v1968 = vpop.f32.mrb[0].mxu0
      %v1969 = vadd.f32 0.0, %v1968
      %v1970 = vpop.f32.mrb[0].mxu0
      %v1971 = vpop.f32.mrb[0].mxu0
      %v1972 = vadd.f32 0.0, %v1971
      %v1973 = vpop.f32.mrb[0].mxu0
      %1974 = vmatprep.mubr.bf16.mxu0 0
      %1975 = vmatmul.mubr.bf16.gmra.mrb[0].mxu0 %v1856
      %v1976 = vpop.f32.mrb[0].mxu0
      %v1977 = vadd.f32 0.0, %v1976
      %v1978 = vpop.f32.mrb[0].mxu0
      %v1979 = vpop.f32.mrb[0].mxu0
      %v1980 = vadd.f32 0.0, %v1979
      %v1981 = vpop.f32.mrb[0].mxu0
      %1982 = vdwg.mxu0
      %v1983 = vadd.f32 %v1738, %v1945
      %v1984 = vadd.f32 %v1739, %v1948
      %v1985 = vadd.f32 %v1740, %v1953
      %v1986 = vadd.f32 %v1741, %v1956
      %v1987 = vadd.f32 %v1742, %v1961
      %v1988 = vadd.f32 %v1743, %v1964
      %v1989 = vadd.f32 %v1744, %v1969
      %v1990 = vadd.f32 %v1745, %v1972
      %v1991 = vadd.f32 %v1746, %v1977
      %v1992 = vadd.f32 %v1747, %v1980
      %v1993 = vld [vmem:[#allocation2 + $0xc] sm:$0x8]
      %s1994 = scalar_lea.vmem %s1, 448
      %v1995 = vld [vmem:[%s1994] sm:$0xf]
      %v1996 = vld [vmem:[%s1994 + $0x4] sm:$0xf]
      %v1997 = vld [vmem:[%s1994 + $0x8] sm:$0xf]
      %v1998 = vld [vmem:[%s1994 + $0xc] sm:$0xf]
      %v1999 = vld [vmem:[%s1994 + $0x10] sm:$0xf]
      %v2000 = vld [vmem:[%s1994 + $0x14] sm:$0xf]
      %v2001 = vld [vmem:[%s1994 + $0x18] sm:$0xf]
      %v2002 = vld [vmem:[%s1994 + $0x1c] sm:$0xf]
      %v2003 = vld [vmem:[%s1994 + $0x20] sm:$0xf]
      %v2004 = vld [vmem:[%s1994 + $0x24] sm:$0xf]
      %v2005 = vld [vmem:[%s1994 + $0x28] sm:$0xf]
      %v2006 = vld [vmem:[%s1994 + $0x2c] sm:$0xf]
      %v2007 = vld [vmem:[%s1994 + $0x30] sm:$0xf]
      %v2008 = vld [vmem:[%s1994 + $0x34] sm:$0xf]
      %v2009 = vld [vmem:[%s1994 + $0x38] sm:$0xf]
      %v2010 = vld [vmem:[%s1994 + $0x3c] sm:$0xf]
      %v2012 = vunpack.c.l.b16 %v1993
      %v2013 = vpack.c.b16 %v1788, %v2012
      %vm2014 = vcmask 1044480
      %v2015 = vrot.slane %v2013, 3
      %v2016 = vrot.slane %v1799, 3
      %v2017 = vsel %vm2014, %v2015, %v2016
      %v2018 = vrot.slane %v1800, 3
      %v2019 = vsel %vm2014, %v2016, %v2018
      %v2020 = vrot.slane %v1801, 3
      %v2021 = vsel %vm2014, %v2018, %v2020
      %v2022 = vrot.slane %v1802, 3
      %v2023 = vsel %vm2014, %v2020, %v2022
      %v2024 = vrot.slane %v1803, 3
      %v2025 = vsel %vm2014, %v2022, %v2024
      %v2047 = vunpack.c.l.b16 %v1995
      %v2048 = vunpack.c.l.b16 %v1996
      %v2049 = vunpack.c.l.b16 %v1997
      %v2050 = vunpack.c.l.b16 %v1998
      %v2051 = vunpack.c.l.b16 %v1999
      %v2052 = vunpack.c.l.b16 %v2000
      %v2053 = vunpack.c.l.b16 %v2001
      %v2054 = vunpack.c.l.b16 %v2002
      %v2055 = vunpack.c.l.b16 %v2003
      %v2056 = vunpack.c.l.b16 %v2004
      %v2057 = vunpack.c.l.b16 %v2005
      %v2058 = vunpack.c.l.b16 %v2006
      %v2059 = vunpack.c.l.b16 %v2007
      %v2060 = vunpack.c.l.b16 %v2008
      %v2061 = vunpack.c.l.b16 %v2009
      %v2062 = vunpack.c.l.b16 %v2010
      %v2063 = vpack.c.b16 %v2048, %v2047
      %v2064 = vpack.c.b16 %v2050, %v2049
      %v2065 = vpack.c.b16 %v2052, %v2051
      %v2066 = vpack.c.b16 %v2054, %v2053
      %v2067 = vpack.c.b16 %v2056, %v2055
      %v2068 = vpack.c.b16 %v2058, %v2057
      %v2069 = vpack.c.b16 %v2060, %v2059
      %v2070 = vpack.c.b16 %v2062, %v2061
      %2079 = vmatprep.subr.bf16.mxu0 0
      %2080 = vmatpush1.bf16.msra.mxu0 %v2063
      %2081 = vmatprep.subr.bf16.mxu0 0
      %2082 = vmatpush1.bf16.msra.mxu0 %v2064
      %2083 = vmatprep.subr.bf16.mxu0 0
      %2084 = vmatpush1.bf16.msra.mxu0 %v2065
      %2085 = vmatprep.subr.bf16.mxu0 0
      %2086 = vmatpush1.bf16.msra.mxu0 %v2066
      %2087 = vmatprep.subr.bf16.mxu0 0
      %2088 = vmatpush1.bf16.msra.mxu0 %v2067
      %2089 = vmatprep.subr.bf16.mxu0 0
      %2090 = vmatpush1.bf16.msra.mxu0 %v2068
      %2091 = vmatprep.subr.bf16.mxu0 0
      %2092 = vmatpush1.bf16.msra.mxu0 %v2069
      %2093 = vmatprep.subr.bf16.mxu0 0
      %2094 = vmatpush1.bf16.msra.mxu0 %v2070
      %2095 = vmatprep.subr.bf16.mxu0 0
      %2096 = vmatpush1.bf16.msra.mxu0 0
      %2097 = vmatprep.subr.bf16.mxu0 0
      %2098 = vmatpush1.bf16.msra.mxu0 0
      %2099 = vmatprep.subr.bf16.mxu0 0
      %2100 = vmatpush1.bf16.msra.mxu0 0
      %2101 = vmatprep.subr.bf16.mxu0 0
      %2102 = vmatpush1.bf16.msra.mxu0 0
      %2103 = vmatprep.subr.bf16.mxu0 0
      %2104 = vmatpush1.bf16.msra.mxu0 0
      %2105 = vmatprep.subr.bf16.mxu0 0
      %2106 = vmatpush1.bf16.msra.mxu0 0
      %2107 = vmatprep.subr.bf16.mxu0 0
      %2108 = vmatpush1.bf16.msra.mxu0 0
      %2109 = vmatprep.subr.bf16.mxu0 0
      %2110 = vmatpush1.bf16.msra.mxu0 0
      %2111 = vmatprep.mubr.bf16.mxu0 0
      %2112 = vmatmul.mubr.bf16.gmra.mrb[0].mxu0 %v2017
      %v2113 = vpop.f32.mrb[0].mxu0
      %v2114 = vadd.f32 0.0, %v2113
      %v2115 = vpop.f32.mrb[0].mxu0
      %v2116 = vpop.f32.mrb[0].mxu0
      %v2117 = vadd.f32 0.0, %v2116
      %v2118 = vpop.f32.mrb[0].mxu0
      %2119 = vmatprep.mubr.bf16.mxu0 0
      %2120 = vmatmul.mubr.bf16.gmra.mrb[0].mxu0 %v2019
      %v2121 = vpop.f32.mrb[0].mxu0
      %v2122 = vadd.f32 0.0, %v2121
      %v2123 = vpop.f32.mrb[0].mxu0
      %v2124 = vpop.f32.mrb[0].mxu0
      %v2125 = vadd.f32 0.0, %v2124
      %v2126 = vpop.f32.mrb[0].mxu0
      %2127 = vmatprep.mubr.bf16.mxu0 0
      %2128 = vmatmul.mubr.bf16.gmra.mrb[0].mxu0 %v2021
      %v2129 = vpop.f32.mrb[0].mxu0
      %v2130 = vadd.f32 0.0, %v2129
      %v2131 = vpop.f32.mrb[0].mxu0
      %v2132 = vpop.f32.mrb[0].mxu0
      %v2133 = vadd.f32 0.0, %v2132
      %v2134 = vpop.f32.mrb[0].mxu0
      %2135 = vmatprep.mubr.bf16.mxu0 0
      %2136 = vmatmul.mubr.bf16.gmra.mrb[0].mxu0 %v2023
      %v2137 = vpop.f32.mrb[0].mxu0
      %v2138 = vadd.f32 0.0, %v2137
      %v2139 = vpop.f32.mrb[0].mxu0
      %v2140 = vpop.f32.mrb[0].mxu0
      %v2141 = vadd.f32 0.0, %v2140
      %v2142 = vpop.f32.mrb[0].mxu0
      %2143 = vmatprep.mubr.bf16.mxu0 0
      %2144 = vmatmul.mubr.bf16.gmra.mrb[0].mxu0 %v2025
      %v2145 = vpop.f32.mrb[0].mxu0
      %v2146 = vadd.f32 0.0, %v2145
      %v2147 = vpop.f32.mrb[0].mxu0
      %v2148 = vpop.f32.mrb[0].mxu0
      %v2149 = vadd.f32 0.0, %v2148
      %v2150 = vpop.f32.mrb[0].mxu0
      %2151 = vdwg.mxu0
      %v2152 = vadd.f32 %v1983, %v2114
      %v2153 = vadd.f32 %v1984, %v2117
      %v2154 = vadd.f32 %v1985, %v2122
      %v2155 = vadd.f32 %v1986, %v2125
      %v2156 = vadd.f32 %v1987, %v2130
      %v2157 = vadd.f32 %v1988, %v2133
      %v2158 = vadd.f32 %v1989, %v2138
      %v2159 = vadd.f32 %v1990, %v2141
      %v2160 = vadd.f32 %v1991, %v2146
      %v2161 = vadd.f32 %v1992, %v2149
      %v2162 = vld [vmem:[#allocation2 + $0x34] sm:$0xf]
      %s2163 = scalar_lea.vmem %s1, 512
      %v2164 = vld [vmem:[%s2163] sm:$0xf]
      %v2165 = vld [vmem:[%s2163 + $0x4] sm:$0xf]
      %v2166 = vld [vmem:[%s2163 + $0x8] sm:$0xf]
      %v2167 = vld [vmem:[%s2163 + $0xc] sm:$0xf]
      %v2168 = vld [vmem:[%s2163 + $0x10] sm:$0xf]
      %v2169 = vld [vmem:[%s2163 + $0x14] sm:$0xf]
      %v2170 = vld [vmem:[%s2163 + $0x18] sm:$0xf]
      %v2171 = vld [vmem:[%s2163 + $0x1c] sm:$0xf]
      %v2172 = vld [vmem:[%s2163 + $0x20] sm:$0xf]
      %v2173 = vld [vmem:[%s2163 + $0x24] sm:$0xf]
      %v2174 = vld [vmem:[%s2163 + $0x28] sm:$0xf]
      %v2175 = vld [vmem:[%s2163 + $0x2c] sm:$0xf]
      %v2176 = vld [vmem:[%s2163 + $0x30] sm:$0xf]
      %v2177 = vld [vmem:[%s2163 + $0x34] sm:$0xf]
      %v2178 = vld [vmem:[%s2163 + $0x38] sm:$0xf]
      %v2179 = vld [vmem:[%s2163 + $0x3c] sm:$0xf]
      %v2181 = vunpack.c.l.b16 %v2162
      %v2182 = vpack.c.b16 %v2181, %v2181
      %vm2183 = vsmask.f32 4352
      %v2185 = vshrl.u32 %v2013, 16
      %v2187 = vrot.slane %v2185, 3
      %v2188 = vshll.u32 %v2013, 16
      %v2190 = vrot.slane %v2188, 4
      %v2191 = vor.u32 %v2187, %v2190
      %v2192 = vrot.slane %v1813, 3
      %v2193 = vrot.slane %v1816, 4
      %v2194 = vor.u32 %v2192, %v2193
      %v2195 = vsel %vm2183, %v2191, %v2194
      %v2196 = vrot.slane %v1822, 3
      %v2197 = vrot.slane %v1825, 4
      %v2198 = vor.u32 %v2196, %v2197
      %v2199 = vsel %vm2183, %v2194, %v2198
      %v2200 = vrot.slane %v1831, 3
      %v2201 = vrot.slane %v1834, 4
      %v2202 = vor.u32 %v2200, %v2201
      %v2203 = vsel %vm2183, %v2198, %v2202
      %v2204 = vrot.slane %v1840, 3
      %v2205 = vrot.slane %v1843, 4
      %v2206 = vor.u32 %v2204, %v2205
      %v2207 = vsel %vm2183, %v2202, %v2206
      %v2209 = vshrl.u32 %v2182, 16
      %v2211 = vrot.slane %v2209, 3
      %v2212 = vshll.u32 %v2182, 16
      %v2214 = vrot.slane %v2212, 4
      %v2215 = vor.u32 %v2211, %v2214
      %v2216 = vsel %vm2183, %v2206, %v2215
      %v2238 = vunpack.c.l.b16 %v2164
      %v2239 = vunpack.c.l.b16 %v2165
      %v2240 = vunpack.c.l.b16 %v2166
      %v2241 = vunpack.c.l.b16 %v2167
      %v2242 = vunpack.c.l.b16 %v2168
      %v2243 = vunpack.c.l.b16 %v2169
      %v2244 = vunpack.c.l.b16 %v2170
      %v2245 = vunpack.c.l.b16 %v2171
      %v2246 = vunpack.c.l.b16 %v2172
      %v2247 = vunpack.c.l.b16 %v2173
      %v2248 = vunpack.c.l.b16 %v2174
      %v2249 = vunpack.c.l.b16 %v2175
      %v2250 = vunpack.c.l.b16 %v2176
      %v2251 = vunpack.c.l.b16 %v2177
      %v2252 = vunpack.c.l.b16 %v2178
      %v2253 = vunpack.c.l.b16 %v2179
      %v2254 = vpack.c.b16 %v2239, %v2238
      %v2255 = vpack.c.b16 %v2241, %v2240
      %v2256 = vpack.c.b16 %v2243, %v2242
      %v2257 = vpack.c.b16 %v2245, %v2244
      %v2258 = vpack.c.b16 %v2247, %v2246
      %v2259 = vpack.c.b16 %v2249, %v2248
      %v2260 = vpack.c.b16 %v2251, %v2250
      %v2261 = vpack.c.b16 %v2253, %v2252
      %2270 = vmatprep.subr.bf16.mxu0 0
      %2271 = vmatpush1.bf16.msra.mxu0 %v2254
      %2272 = vmatprep.subr.bf16.mxu0 0
      %2273 = vmatpush1.bf16.msra.mxu0 %v2255
      %2274 = vmatprep.subr.bf16.mxu0 0
      %2275 = vmatpush1.bf16.msra.mxu0 %v2256
      %2276 = vmatprep.subr.bf16.mxu0 0
      %2277 = vmatpush1.bf16.msra.mxu0 %v2257
      %2278 = vmatprep.subr.bf16.mxu0 0
      %2279 = vmatpush1.bf16.msra.mxu0 %v2258
      %2280 = vmatprep.subr.bf16.mxu0 0
      %2281 = vmatpush1.bf16.msra.mxu0 %v2259
      %2282 = vmatprep.subr.bf16.mxu0 0
      %2283 = vmatpush1.bf16.msra.mxu0 %v2260
      %2284 = vmatprep.subr.bf16.mxu0 0
      %2285 = vmatpush1.bf16.msra.mxu0 %v2261
      %2286 = vmatprep.subr.bf16.mxu0 0
      %2287 = vmatpush1.bf16.msra.mxu0 0
      %2288 = vmatprep.subr.bf16.mxu0 0
      %2289 = vmatpush1.bf16.msra.mxu0 0
      %2290 = vmatprep.subr.bf16.mxu0 0
      %2291 = vmatpush1.bf16.msra.mxu0 0
      %2292 = vmatprep.subr.bf16.mxu0 0
      %2293 = vmatpush1.bf16.msra.mxu0 0
      %2294 = vmatprep.subr.bf16.mxu0 0
      %2295 = vmatpush1.bf16.msra.mxu0 0
      %2296 = vmatprep.subr.bf16.mxu0 0
      %2297 = vmatpush1.bf16.msra.mxu0 0
      %2298 = vmatprep.subr.bf16.mxu0 0
      %2299 = vmatpush1.bf16.msra.mxu0 0
      %2300 = vmatprep.subr.bf16.mxu0 0
      %2301 = vmatpush1.bf16.msra.mxu0 0
      %2302 = vmatprep.mubr.bf16.mxu0 0
      %2303 = vmatmul.mubr.bf16.gmra.mrb[0].mxu0 %v2195
      %v2304 = vpop.f32.mrb[0].mxu0
      %v2305 = vadd.f32 0.0, %v2304
      %v2306 = vpop.f32.mrb[0].mxu0
      %v2307 = vpop.f32.mrb[0].mxu0
      %v2308 = vadd.f32 0.0, %v2307
      %v2309 = vpop.f32.mrb[0].mxu0
      %2310 = vmatprep.mubr.bf16.mxu0 0
      %2311 = vmatmul.mubr.bf16.gmra.mrb[0].mxu0 %v2199
      %v2312 = vpop.f32.mrb[0].mxu0
      %v2313 = vadd.f32 0.0, %v2312
      %v2314 = vpop.f32.mrb[0].mxu0
      %v2315 = vpop.f32.mrb[0].mxu0
      %v2316 = vadd.f32 0.0, %v2315
      %v2317 = vpop.f32.mrb[0].mxu0
      %2318 = vmatprep.mubr.bf16.mxu0 0
      %2319 = vmatmul.mubr.bf16.gmra.mrb[0].mxu0 %v2203
      %v2320 = vpop.f32.mrb[0].mxu0
      %v2321 = vadd.f32 0.0, %v2320
      %v2322 = vpop.f32.mrb[0].mxu0
      %v2323 = vpop.f32.mrb[0].mxu0
      %v2324 = vadd.f32 0.0, %v2323
      %v2325 = vpop.f32.mrb[0].mxu0
      %2326 = vmatprep.mubr.bf16.mxu0 0
      %2327 = vmatmul.mubr.bf16.gmra.mrb[0].mxu0 %v2207
      %v2328 = vpop.f32.mrb[0].mxu0
      %v2329 = vadd.f32 0.0, %v2328
      %v2330 = vpop.f32.mrb[0].mxu0
      %v2331 = vpop.f32.mrb[0].mxu0
      %v2332 = vadd.f32 0.0, %v2331
      %v2333 = vpop.f32.mrb[0].mxu0
      %2334 = vmatprep.mubr.bf16.mxu0 0
      %2335 = vmatmul.mubr.bf16.gmra.mrb[0].mxu0 %v2216
      %v2336 = vpop.f32.mrb[0].mxu0
      %v2337 = vadd.f32 0.0, %v2336
      %v2338 = vpop.f32.mrb[0].mxu0
      %v2339 = vpop.f32.mrb[0].mxu0
      %v2340 = vadd.f32 0.0, %v2339
      %v2341 = vpop.f32.mrb[0].mxu0
      %2342 = vdwg.mxu0
      %v2343 = vadd.f32 %v2152, %v2305
      %v2344 = vadd.f32 %v2153, %v2308
      %v2345 = vadd.f32 %v2154, %v2313
      %v2346 = vadd.f32 %v2155, %v2316
      %v2347 = vadd.f32 %v2156, %v2321
      %v2348 = vadd.f32 %v2157, %v2324
      %v2349 = vadd.f32 %v2158, %v2329
      %v2350 = vadd.f32 %v2159, %v2332
      %v2351 = vadd.f32 %v2160, %v2337
      %v2352 = vadd.f32 %v2161, %v2340
      %v2353 = vld [vmem:[%s2] sm:$0x1]
      %v2355 = vlaneseq
      %v2356 = vshrl.u32 %v2355, 7
      %v2357 = vsub.s32 0, %v2356
      %v2358 = vrot.slane %v2353, %v2357
      %v2360 = vadd.f32 %v2343, %v2358
      %v2361 = vadd.f32 %v2344, %v2358
      %v2362 = vadd.f32 %v2345, %v2358
      %v2363 = vadd.f32 %v2346, %v2358
      %v2364 = vadd.f32 %v2347, %v2358
      %v2365 = vadd.f32 %v2348, %v2358
      %v2366 = vadd.f32 %v2349, %v2358
      %v2367 = vadd.f32 %v2350, %v2358
      %v2368 = vadd.f32 %v2351, %v2358
      %v2369 = vadd.f32 %v2352, %v2358
      %vm2370 = vcmp.ge.f32.partialorder %v2360, 0.0
      %vm2371 = vcmp.ge.f32.partialorder %v2361, 0.0
      %vm2372 = vcmp.ge.f32.partialorder %v2362, 0.0
      %vm2373 = vcmp.ge.f32.partialorder %v2363, 0.0
      %vm2374 = vcmp.ge.f32.partialorder %v2364, 0.0
      %vm2375 = vcmp.ge.f32.partialorder %v2365, 0.0
      %vm2376 = vcmp.ge.f32.partialorder %v2366, 0.0
      %vm2377 = vcmp.ge.f32.partialorder %v2367, 0.0
      %vm2378 = vcmp.ge.f32.partialorder %v2368, 0.0
      %vm2379 = vcmp.ge.f32.partialorder %v2369, 0.0
      %v2380 = vmul.f32 %v2360, 0.01
      %v2381 = vmul.f32 %v2361, 0.01
      %v2382 = vmul.f32 %v2362, 0.01
      %v2383 = vmul.f32 %v2363, 0.01
      %v2384 = vmul.f32 %v2364, 0.01
      %v2385 = vmul.f32 %v2365, 0.01
      %v2386 = vmul.f32 %v2366, 0.01
      %v2387 = vmul.f32 %v2367, 0.01
      %v2388 = vmul.f32 %v2368, 0.01
      %v2389 = vmul.f32 %v2369, 0.01
      %v2390 = vsel %vm2370, %v2360, %v2380
      %v2391 = vsel %vm2371, %v2361, %v2381
      %v2392 = vsel %vm2372, %v2362, %v2382
      %v2393 = vsel %vm2373, %v2363, %v2383
      %v2394 = vsel %vm2374, %v2364, %v2384
      %v2395 = vsel %vm2375, %v2365, %v2385
      %v2396 = vsel %vm2376, %v2366, %v2386
      %v2397 = vsel %vm2377, %v2367, %v2387
      %v2398 = vsel %vm2378, %v2368, %v2388
      %v2399 = vsel %vm2379, %v2369, %v2389
      %v2400 = vsel %vm471, %v2390, 0.0
      %v2401 = vsel %vm472, %v2391, 0.0
      %v2402 = vsel %vm473, %v2392, 0.0
      %v2403 = vsel %vm474, %v2393, 0.0
      %v2404 = vsel %vm475, %v2394, 0.0
      %v2405 = vsel %vm476, %v2395, 0.0
      %v2406 = vsel %vm477, %v2396, 0.0
      %v2407 = vsel %vm478, %v2397, 0.0
      %v2408 = vsel %vm479, %v2398, 0.0
      %v2409 = vsel %vm480, %v2399, 0.0
      %v2410 = vadd.f32 %v2400, %v2401
      %v2411 = vadd.f32 %v2410, %v2402
      %v2412 = vadd.f32 %v2411, %v2403
      %v2413 = vadd.f32 %v2412, %v2404
      %v2414 = vadd.f32 %v2413, %v2405
      %v2415 = vadd.f32 %v2414, %v2406
      %v2416 = vadd.f32 %v2415, %v2407
      %v2417 = vadd.f32 %v2416, %v2408
      %v2418 = vadd.f32 %v2417, %v2409
      %v2419 = vrot.slane %v2418, 4
      %v2420 = vadd.f32 %v2418, %v2419
      %v2421 = vrot.slane %v2420, 2
      %v2422 = vadd.f32 %v2420, %v2421
      %v2423 = vrot.slane %v2422, 1
      %v2424 = vadd.f32 %v2422, %v2423
      %v2425 = vmul.f32 %v2424, 0.015625
      %v2426 = vsub.f32 %v2390, %v2425
      %v2427 = vsub.f32 %v2391, %v2425
      %v2428 = vsub.f32 %v2392, %v2425
      %v2429 = vsub.f32 %v2393, %v2425
      %v2430 = vsub.f32 %v2394, %v2425
      %v2431 = vsub.f32 %v2395, %v2425
      %v2432 = vsub.f32 %v2396, %v2425
      %v2433 = vsub.f32 %v2397, %v2425
      %v2434 = vsub.f32 %v2398, %v2425
      %v2435 = vsub.f32 %v2399, %v2425
      %v2436 = vmul.f32 %v2426, %v2426
      %v2437 = vmul.f32 %v2427, %v2427
      %v2438 = vmul.f32 %v2428, %v2428
      %v2439 = vmul.f32 %v2429, %v2429
      %v2440 = vmul.f32 %v2430, %v2430
      %v2441 = vmul.f32 %v2431, %v2431
      %v2442 = vmul.f32 %v2432, %v2432
      %v2443 = vmul.f32 %v2433, %v2433
      %v2444 = vmul.f32 %v2434, %v2434
      %v2445 = vmul.f32 %v2435, %v2435
      %v2446 = vsel %vm471, %v2436, 0.0
      %v2447 = vsel %vm472, %v2437, 0.0
      %v2448 = vsel %vm473, %v2438, 0.0
      %v2449 = vsel %vm474, %v2439, 0.0
      %v2450 = vsel %vm475, %v2440, 0.0
      %v2451 = vsel %vm476, %v2441, 0.0
      %v2452 = vsel %vm477, %v2442, 0.0
      %v2453 = vsel %vm478, %v2443, 0.0
      %v2454 = vsel %vm479, %v2444, 0.0
      %v2455 = vsel %vm480, %v2445, 0.0
      %v2456 = vadd.f32 %v2446, %v2447
      %v2457 = vadd.f32 %v2456, %v2448
      %v2458 = vadd.f32 %v2457, %v2449
      %v2459 = vadd.f32 %v2458, %v2450
      %v2460 = vadd.f32 %v2459, %v2451
      %v2461 = vadd.f32 %v2460, %v2452
      %v2462 = vadd.f32 %v2461, %v2453
      %v2463 = vadd.f32 %v2462, %v2454
      %v2464 = vadd.f32 %v2463, %v2455
      %v2465 = vrot.slane %v2464, 4
      %v2466 = vadd.f32 %v2464, %v2465
      %v2467 = vrot.slane %v2466, 2
      %v2468 = vadd.f32 %v2466, %v2467
      %v2469 = vrot.slane %v2468, 1
      %v2470 = vadd.f32 %v2468, %v2469
      %v2471 = vmul.f32 %v2470, 0.015625
      %v2472 = vadd.f32 %v2471, 1e-05
      %v2473 = vrsqrt.pop %v2472
      %v2474 = vmul.f32 %v2426, %v2473
      %v2475 = vmul.f32 %v2427, %v2473
      %v2476 = vmul.f32 %v2428, %v2473
      %v2477 = vmul.f32 %v2429, %v2473
      %v2478 = vmul.f32 %v2430, %v2473
      %v2479 = vmul.f32 %v2431, %v2473
      %v2480 = vmul.f32 %v2432, %v2473
      %v2481 = vmul.f32 %v2433, %v2473
      %v2482 = vmul.f32 %v2434, %v2473
      %v2483 = vmul.f32 %v2435, %v2473
      %v2484 = vsel %vm471, %v2474, 0.0
      %v2485 = vsel %vm472, %v2475, 0.0
      %v2486 = vsel %vm473, %v2476, 0.0
      %v2487 = vsel %vm474, %v2477, 0.0
      %v2488 = vsel %vm475, %v2478, 0.0
      %v2489 = vsel %vm476, %v2479, 0.0
      %v2490 = vsel %vm477, %v2480, 0.0
      %v2491 = vsel %vm478, %v2481, 0.0
      %v2492 = vsel %vm479, %v2482, 0.0
      %v2493 = vsel %vm480, %v2483, 0.0
      %v2494 = vpack.c.bf16 %v2485, %v2484
      %v2495 = vpack.c.bf16 %v2487, %v2486
      %v2496 = vpack.c.bf16 %v2489, %v2488
      %v2497 = vpack.c.bf16 %v2491, %v2490
      %v2498 = vpack.c.bf16 %v2493, %v2492
      %v2504 = vunpack.c.l.b16 %v2494
      %v2505 = vunpack.c.h.b16 %v2494
      %v2506 = vunpack.c.l.b16 %v2495
      %v2507 = vunpack.c.h.b16 %v2495
      %v2508 = vunpack.c.l.b16 %v2496
      %v2509 = vunpack.c.h.b16 %v2496
      %v2510 = vunpack.c.l.b16 %v2497
      %v2511 = vunpack.c.h.b16 %v2497
      %v2512 = vunpack.c.l.b16 %v2498
      %v2513 = vunpack.c.h.b16 %v2498
      %v2514 = vpack.c.b16 %v2504, %v2504
      %v2515 = vpack.c.b16 %v2505, %v2505
      %v2516 = vpack.c.b16 %v2506, %v2506
      %v2517 = vpack.c.b16 %v2507, %v2507
      %v2518 = vpack.c.b16 %v2508, %v2508
      %v2519 = vpack.c.b16 %v2509, %v2509
      %v2520 = vpack.c.b16 %v2510, %v2510
      %v2521 = vpack.c.b16 %v2511, %v2511
      %v2522 = vpack.c.b16 %v2512, %v2512
      %v2523 = vpack.c.b16 %v2513, %v2513
      %v2524 = vrot.slane %v2514, 6
      %v2525 = vrot.slane %v2524, 4
      %v2526 = vrot.slane %v2515, 6
      %v2527 = vsel %vm515, %v2525, %v2526
      %v2528 = vrot.slane %v2526, 4
      %v2529 = vrot.slane %v2516, 6
      %v2530 = vsel %vm515, %v2528, %v2529
      %v2531 = vrot.slane %v2529, 4
      %v2532 = vrot.slane %v2517, 6
      %v2533 = vsel %vm515, %v2531, %v2532
      %v2534 = vrot.slane %v2532, 4
      %v2535 = vrot.slane %v2518, 6
      %v2536 = vsel %vm515, %v2534, %v2535
      %v2537 = vrot.slane %v2535, 4
      %v2538 = vrot.slane %v2519, 6
      %v2539 = vsel %vm515, %v2537, %v2538
      %v2540 = vrot.slane %v2538, 4
      %v2541 = vrot.slane %v2520, 6
      %v2542 = vsel %vm515, %v2540, %v2541
      %v2543 = vrot.slane %v2541, 4
      %v2544 = vrot.slane %v2521, 6
      %v2545 = vsel %vm515, %v2543, %v2544
      %v2546 = vrot.slane %v2544, 4
      %v2547 = vrot.slane %v2522, 6
      %v2548 = vsel %vm515, %v2546, %v2547
      %v2549 = vrot.slane %v2547, 4
      %v2550 = vrot.slane %v2523, 6
      %v2551 = vsel %vm515, %v2549, %v2550
      %v2552 = vrot.slane %v2550, 4
      %2564 = vst [vmem:[#allocation3 + $0x8] sm:$0xc] %v2524
      %2565 = vst [vmem:[#allocation3 + $0xc] sm:$0xf] %v2527
      %2566 = vst [vmem:[#allocation3 + $0x10] sm:$0xf] %v2530
      %2567 = vst [vmem:[#allocation3 + $0x14] sm:$0xf] %v2533
      %2568 = vst [vmem:[#allocation3 + $0x18] sm:$0xf] %v2536
      %2569 = vst [vmem:[#allocation3 + $0x1c] sm:$0xf] %v2539
      %2570 = vst [vmem:[#allocation3 + $0x20] sm:$0xf] %v2542
      %2571 = vst [vmem:[#allocation3 + $0x24] sm:$0xf] %v2545
      %2572 = vst [vmem:[#allocation3 + $0x28] sm:$0xf] %v2548
      %2573 = vst [vmem:[#allocation3 + $0x2c] sm:$0xf] %v2551
      %2574 = vst [vmem:[#allocation3 + $0x30] sm:$0x3] %v2552
      %v2575 = vld [vmem:[#allocation3 + $0x4] sm:$0xf]
      %v2576 = vld [vmem:[#allocation3 + $0x8] sm:$0xf]
      %v2577 = vld [vmem:[#allocation3 + $0xc] sm:$0xf]
      %v2578 = vld [vmem:[#allocation3 + $0x10] sm:$0xf]
      %v2579 = vld [vmem:[#allocation3 + $0x14] sm:$0xf]
      %v2580 = vld [vmem:[#allocation3 + $0x18] sm:$0xf]
      %v2581 = vld [vmem:[#allocation3 + $0x1c] sm:$0xf]
      %v2582 = vld [vmem:[#allocation3 + $0x20] sm:$0xf]
      %v2583 = vld [vmem:[#allocation3 + $0x24] sm:$0xf]
      %v2584 = vld [vmem:[#allocation3 + $0x28] sm:$0xf]
      %v2585 = vld [vmem:[#allocation3 + $0x2c] sm:$0x1]
      %v2586 = vld [vmem:[%s3] sm:$0xf]
      %v2587 = vld [vmem:[%s3 + $0x4] sm:$0xf]
      %v2588 = vld [vmem:[%s3 + $0x8] sm:$0xf]
      %v2589 = vld [vmem:[%s3 + $0xc] sm:$0xf]
      %v2590 = vld [vmem:[%s3 + $0x10] sm:$0xf]
      %v2591 = vld [vmem:[%s3 + $0x14] sm:$0xf]
      %v2592 = vld [vmem:[%s3 + $0x18] sm:$0xf]
      %v2593 = vld [vmem:[%s3 + $0x1c] sm:$0xf]
      %v2594 = vld [vmem:[%s3 + $0x20] sm:$0xf]
      %v2595 = vld [vmem:[%s3 + $0x24] sm:$0xf]
      %v2596 = vld [vmem:[%s3 + $0x28] sm:$0xf]
      %v2597 = vld [vmem:[%s3 + $0x2c] sm:$0xf]
      %v2598 = vld [vmem:[%s3 + $0x30] sm:$0xf]
      %v2599 = vld [vmem:[%s3 + $0x34] sm:$0xf]
      %v2600 = vld [vmem:[%s3 + $0x38] sm:$0xf]
      %v2601 = vld [vmem:[%s3 + $0x3c] sm:$0xf]
      %v2602 = vld [vmem:[#allocation3 + $0x4] sm:$0xe]
      %s2603 = scalar_lea.vmem %s3, 64
      %v2604 = vld [vmem:[%s2603] sm:$0xf]
      %v2605 = vld [vmem:[%s2603 + $0x4] sm:$0xf]
      %v2606 = vld [vmem:[%s2603 + $0x8] sm:$0xf]
      %v2607 = vld [vmem:[%s2603 + $0xc] sm:$0xf]
      %v2608 = vld [vmem:[%s2603 + $0x10] sm:$0xf]
      %v2609 = vld [vmem:[%s2603 + $0x14] sm:$0xf]
      %v2610 = vld [vmem:[%s2603 + $0x18] sm:$0xf]
      %v2611 = vld [vmem:[%s2603 + $0x1c] sm:$0xf]
      %v2612 = vld [vmem:[%s2603 + $0x20] sm:$0xf]
      %v2613 = vld [vmem:[%s2603 + $0x24] sm:$0xf]
      %v2614 = vld [vmem:[%s2603 + $0x28] sm:$0xf]
      %v2615 = vld [vmem:[%s2603 + $0x2c] sm:$0xf]
      %v2616 = vld [vmem:[%s2603 + $0x30] sm:$0xf]
      %v2617 = vld [vmem:[%s2603 + $0x34] sm:$0xf]
      %v2618 = vld [vmem:[%s2603 + $0x38] sm:$0xf]
      %v2619 = vld [vmem:[%s2603 + $0x3c] sm:$0xf]
      %v2631 = vunpack.c.l.b16 %v2602
      %v2632 = vunpack.c.l.b16 %v2576
      %v2633 = vunpack.c.l.b16 %v2577
      %v2634 = vunpack.c.l.b16 %v2578
      %v2635 = vunpack.c.l.b16 %v2579
      %v2636 = vunpack.c.l.b16 %v2580
      %v2637 = vunpack.c.l.b16 %v2581
      %v2638 = vunpack.c.l.b16 %v2582
      %v2639 = vunpack.c.l.b16 %v2583
      %v2640 = vunpack.c.l.b16 %v2584
      %v2641 = vunpack.c.l.b16 %v2585
      %v2642 = vpack.c.b16 %v2632, %v2631
      %v2643 = vpack.c.b16 %v2634, %v2633
      %v2644 = vpack.c.b16 %v2636, %v2635
      %v2645 = vpack.c.b16 %v2638, %v2637
      %v2646 = vpack.c.b16 %v2640, %v2639
      %v2647 = vpack.c.b16 %v2641, %v2641
      %v2648 = vrot.slane %v2642, 1
      %v2649 = vrot.slane %v2643, 1
      %v2650 = vsel %vm640, %v2648, %v2649
      %v2651 = vrot.slane %v2644, 1
      %v2652 = vsel %vm640, %v2649, %v2651
      %v2653 = vrot.slane %v2645, 1
      %v2654 = vsel %vm640, %v2651, %v2653
      %v2655 = vrot.slane %v2646, 1
      %v2656 = vsel %vm640, %v2653, %v2655
      %v2657 = vrot.slane %v2647, 1
      %v2658 = vsel %vm640, %v2655, %v2657
      %v2680 = vunpack.c.l.b16 %v2604
      %v2681 = vunpack.c.l.b16 %v2605
      %v2682 = vunpack.c.l.b16 %v2606
      %v2683 = vunpack.c.l.b16 %v2607
      %v2684 = vunpack.c.l.b16 %v2608
      %v2685 = vunpack.c.l.b16 %v2609
      %v2686 = vunpack.c.l.b16 %v2610
      %v2687 = vunpack.c.l.b16 %v2611
      %v2688 = vunpack.c.l.b16 %v2612
      %v2689 = vunpack.c.l.b16 %v2613
      %v2690 = vunpack.c.l.b16 %v2614
      %v2691 = vunpack.c.l.b16 %v2615
      %v2692 = vunpack.c.l.b16 %v2616
      %v2693 = vunpack.c.l.b16 %v2617
      %v2694 = vunpack.c.l.b16 %v2618
      %v2695 = vunpack.c.l.b16 %v2619
      %v2696 = vpack.c.b16 %v2681, %v2680
      %v2697 = vpack.c.b16 %v2683, %v2682
      %v2698 = vpack.c.b16 %v2685, %v2684
      %v2699 = vpack.c.b16 %v2687, %v2686
      %v2700 = vpack.c.b16 %v2689, %v2688
      %v2701 = vpack.c.b16 %v2691, %v2690
      %v2702 = vpack.c.b16 %v2693, %v2692
      %v2703 = vpack.c.b16 %v2695, %v2694
      %2712 = vmatprep.subr.bf16.mxu0 0
      %2713 = vmatpush1.bf16.msra.mxu0 %v2696
      %2714 = vmatprep.subr.bf16.mxu0 0
      %2715 = vmatpush1.bf16.msra.mxu0 %v2697
      %2716 = vmatprep.subr.bf16.mxu0 0
      %2717 = vmatpush1.bf16.msra.mxu0 %v2698
      %2718 = vmatprep.subr.bf16.mxu0 0
      %2719 = vmatpush1.bf16.msra.mxu0 %v2699
      %2720 = vmatprep.subr.bf16.mxu0 0
      %2721 = vmatpush1.bf16.msra.mxu0 %v2700
      %2722 = vmatprep.subr.bf16.mxu0 0
      %2723 = vmatpush1.bf16.msra.mxu0 %v2701
      %2724 = vmatprep.subr.bf16.mxu0 0
      %2725 = vmatpush1.bf16.msra.mxu0 %v2702
      %2726 = vmatprep.subr.bf16.mxu0 0
      %2727 = vmatpush1.bf16.msra.mxu0 %v2703
      %2728 = vmatprep.subr.bf16.mxu0 0
      %2729 = vmatpush1.bf16.msra.mxu0 0
      %2730 = vmatprep.subr.bf16.mxu0 0
      %2731 = vmatpush1.bf16.msra.mxu0 0
      %2732 = vmatprep.subr.bf16.mxu0 0
      %2733 = vmatpush1.bf16.msra.mxu0 0
      %2734 = vmatprep.subr.bf16.mxu0 0
      %2735 = vmatpush1.bf16.msra.mxu0 0
      %2736 = vmatprep.subr.bf16.mxu0 0
      %2737 = vmatpush1.bf16.msra.mxu0 0
      %2738 = vmatprep.subr.bf16.mxu0 0
      %2739 = vmatpush1.bf16.msra.mxu0 0
      %2740 = vmatprep.subr.bf16.mxu0 0
      %2741 = vmatpush1.bf16.msra.mxu0 0
      %2742 = vmatprep.subr.bf16.mxu0 0
      %2743 = vmatpush1.bf16.msra.mxu0 0
      %2744 = vmatprep.mubr.bf16.mxu0 0
      %2745 = vmatmul.mubr.bf16.gmra.mrb[0].mxu0 %v2650
      %v2746 = vpop.f32.mrb[0].mxu0
      %v2747 = vadd.f32 0.0, %v2746
      %v2748 = vpop.f32.mrb[0].mxu0
      %v2749 = vpop.f32.mrb[0].mxu0
      %v2750 = vadd.f32 0.0, %v2749
      %v2751 = vpop.f32.mrb[0].mxu0
      %2752 = vmatprep.mubr.bf16.mxu0 0
      %2753 = vmatmul.mubr.bf16.gmra.mrb[0].mxu0 %v2652
      %v2754 = vpop.f32.mrb[0].mxu0
      %v2755 = vadd.f32 0.0, %v2754
      %v2756 = vpop.f32.mrb[0].mxu0
      %v2757 = vpop.f32.mrb[0].mxu0
      %v2758 = vadd.f32 0.0, %v2757
      %v2759 = vpop.f32.mrb[0].mxu0
      %2760 = vmatprep.mubr.bf16.mxu0 0
      %2761 = vmatmul.mubr.bf16.gmra.mrb[0].mxu0 %v2654
      %v2762 = vpop.f32.mrb[0].mxu0
      %v2763 = vadd.f32 0.0, %v2762
      %v2764 = vpop.f32.mrb[0].mxu0
      %v2765 = vpop.f32.mrb[0].mxu0
      %v2766 = vadd.f32 0.0, %v2765
      %v2767 = vpop.f32.mrb[0].mxu0
      %2768 = vmatprep.mubr.bf16.mxu0 0
      %2769 = vmatmul.mubr.bf16.gmra.mrb[0].mxu0 %v2656
      %v2770 = vpop.f32.mrb[0].mxu0
      %v2771 = vadd.f32 0.0, %v2770
      %v2772 = vpop.f32.mrb[0].mxu0
      %v2773 = vpop.f32.mrb[0].mxu0
      %v2774 = vadd.f32 0.0, %v2773
      %v2775 = vpop.f32.mrb[0].mxu0
      %2776 = vmatprep.mubr.bf16.mxu0 0
      %2777 = vmatmul.mubr.bf16.gmra.mrb[0].mxu0 %v2658
      %v2778 = vpop.f32.mrb[0].mxu0
      %v2779 = vadd.f32 0.0, %v2778
      %v2780 = vpop.f32.mrb[0].mxu0
      %v2781 = vpop.f32.mrb[0].mxu0
      %v2782 = vadd.f32 0.0, %v2781
      %v2783 = vpop.f32.mrb[0].mxu0
      %2784 = vdwg.mxu0
      %v2786 = vunpack.c.l.b16 %v2575
      %v2787 = vpack.c.b16 %v2632, %v2786
      %v2789 = vshrl.u32 %v2787, 16
      %v2791 = vshll.u32 %v2787, 16
      %v2793 = vrot.slane %v2791, 1
      %v2794 = vor.u32 %v2789, %v2793
      %v2796 = vshll.u32 %v2643, 16
      %v2798 = vrot.slane %v2796, 1
      %v2799 = vsel %vm781, %v2794, %v2798
      %v2800 = vshrl.u32 %v2643, 16
      %v2802 = vor.u32 %v2800, %v2798
      %v2804 = vshll.u32 %v2644, 16
      %v2806 = vrot.slane %v2804, 1
      %v2807 = vsel %vm781, %v2802, %v2806
      %v2808 = vshrl.u32 %v2644, 16
      %v2810 = vor.u32 %v2808, %v2806
      %v2812 = vshll.u32 %v2645, 16
      %v2814 = vrot.slane %v2812, 1
      %v2815 = vsel %vm781, %v2810, %v2814
      %v2816 = vshrl.u32 %v2645, 16
      %v2818 = vor.u32 %v2816, %v2814
      %v2820 = vshll.u32 %v2646, 16
      %v2822 = vrot.slane %v2820, 1
      %v2823 = vsel %vm781, %v2818, %v2822
      %v2824 = vshrl.u32 %v2646, 16
      %v2826 = vor.u32 %v2824, %v2822
      %v2828 = vshll.u32 %v2647, 16
      %v2830 = vrot.slane %v2828, 1
      %v2831 = vsel %vm781, %v2826, %v2830
      %v2853 = vunpack.c.l.b16 %v2586
      %v2854 = vunpack.c.l.b16 %v2587
      %v2855 = vunpack.c.l.b16 %v2588
      %v2856 = vunpack.c.l.b16 %v2589
      %v2857 = vunpack.c.l.b16 %v2590
      %v2858 = vunpack.c.l.b16 %v2591
      %v2859 = vunpack.c.l.b16 %v2592
      %v2860 = vunpack.c.l.b16 %v2593
      %v2861 = vunpack.c.l.b16 %v2594
      %v2862 = vunpack.c.l.b16 %v2595
      %v2863 = vunpack.c.l.b16 %v2596
      %v2864 = vunpack.c.l.b16 %v2597
      %v2865 = vunpack.c.l.b16 %v2598
      %v2866 = vunpack.c.l.b16 %v2599
      %v2867 = vunpack.c.l.b16 %v2600
      %v2868 = vunpack.c.l.b16 %v2601
      %v2869 = vpack.c.b16 %v2854, %v2853
      %v2870 = vpack.c.b16 %v2856, %v2855
      %v2871 = vpack.c.b16 %v2858, %v2857
      %v2872 = vpack.c.b16 %v2860, %v2859
      %v2873 = vpack.c.b16 %v2862, %v2861
      %v2874 = vpack.c.b16 %v2864, %v2863
      %v2875 = vpack.c.b16 %v2866, %v2865
      %v2876 = vpack.c.b16 %v2868, %v2867
      %2885 = vmatprep.subr.bf16.mxu0 0
      %2886 = vmatpush1.bf16.msra.mxu0 %v2869
      %2887 = vmatprep.subr.bf16.mxu0 0
      %2888 = vmatpush1.bf16.msra.mxu0 %v2870
      %2889 = vmatprep.subr.bf16.mxu0 0
      %2890 = vmatpush1.bf16.msra.mxu0 %v2871
      %2891 = vmatprep.subr.bf16.mxu0 0
      %2892 = vmatpush1.bf16.msra.mxu0 %v2872
      %2893 = vmatprep.subr.bf16.mxu0 0
      %2894 = vmatpush1.bf16.msra.mxu0 %v2873
      %2895 = vmatprep.subr.bf16.mxu0 0
      %2896 = vmatpush1.bf16.msra.mxu0 %v2874
      %2897 = vmatprep.subr.bf16.mxu0 0
      %2898 = vmatpush1.bf16.msra.mxu0 %v2875
      %2899 = vmatprep.subr.bf16.mxu0 0
      %2900 = vmatpush1.bf16.msra.mxu0 %v2876
      %2901 = vmatprep.subr.bf16.mxu0 0
      %2902 = vmatpush1.bf16.msra.mxu0 0
      %2903 = vmatprep.subr.bf16.mxu0 0
      %2904 = vmatpush1.bf16.msra.mxu0 0
      %2905 = vmatprep.subr.bf16.mxu0 0
      %2906 = vmatpush1.bf16.msra.mxu0 0
      %2907 = vmatprep.subr.bf16.mxu0 0
      %2908 = vmatpush1.bf16.msra.mxu0 0
      %2909 = vmatprep.subr.bf16.mxu0 0
      %2910 = vmatpush1.bf16.msra.mxu0 0
      %2911 = vmatprep.subr.bf16.mxu0 0
      %2912 = vmatpush1.bf16.msra.mxu0 0
      %2913 = vmatprep.subr.bf16.mxu0 0
      %2914 = vmatpush1.bf16.msra.mxu0 0
      %2915 = vmatprep.subr.bf16.mxu0 0
      %2916 = vmatpush1.bf16.msra.mxu0 0
      %2917 = vmatprep.mubr.bf16.mxu0 0
      %2918 = vmatmul.mubr.bf16.gmra.mrb[0].mxu0 %v2799
      %v2919 = vpop.f32.mrb[0].mxu0
      %v2920 = vadd.f32 %v2747, %v2919
      %v2921 = vpop.f32.mrb[0].mxu0
      %v2922 = vpop.f32.mrb[0].mxu0
      %v2923 = vadd.f32 %v2750, %v2922
      %v2924 = vpop.f32.mrb[0].mxu0
      %2925 = vmatprep.mubr.bf16.mxu0 0
      %2926 = vmatmul.mubr.bf16.gmra.mrb[0].mxu0 %v2807
      %v2927 = vpop.f32.mrb[0].mxu0
      %v2928 = vadd.f32 %v2755, %v2927
      %v2929 = vpop.f32.mrb[0].mxu0
      %v2930 = vpop.f32.mrb[0].mxu0
      %v2931 = vadd.f32 %v2758, %v2930
      %v2932 = vpop.f32.mrb[0].mxu0
      %2933 = vmatprep.mubr.bf16.mxu0 0
      %2934 = vmatmul.mubr.bf16.gmra.mrb[0].mxu0 %v2815
      %v2935 = vpop.f32.mrb[0].mxu0
      %v2936 = vadd.f32 %v2763, %v2935
      %v2937 = vpop.f32.mrb[0].mxu0
      %v2938 = vpop.f32.mrb[0].mxu0
      %v2939 = vadd.f32 %v2766, %v2938
      %v2940 = vpop.f32.mrb[0].mxu0
      %2941 = vmatprep.mubr.bf16.mxu0 0
      %2942 = vmatmul.mubr.bf16.gmra.mrb[0].mxu0 %v2823
      %v2943 = vpop.f32.mrb[0].mxu0
      %v2944 = vadd.f32 %v2771, %v2943
      %v2945 = vpop.f32.mrb[0].mxu0
      %v2946 = vpop.f32.mrb[0].mxu0
      %v2947 = vadd.f32 %v2774, %v2946
      %v2948 = vpop.f32.mrb[0].mxu0
      %2949 = vmatprep.mubr.bf16.mxu0 0
      %2950 = vmatmul.mubr.bf16.gmra.mrb[0].mxu0 %v2831
      %v2951 = vpop.f32.mrb[0].mxu0
      %v2952 = vadd.f32 %v2779, %v2951
      %v2953 = vpop.f32.mrb[0].mxu0
      %v2954 = vpop.f32.mrb[0].mxu0
      %v2955 = vadd.f32 %v2782, %v2954
      %v2956 = vpop.f32.mrb[0].mxu0
      %2957 = vdwg.mxu0
      %v2958 = vld [vmem:[#allocation3 + $0x2c] sm:$0x3]
      %s2959 = scalar_lea.vmem %s3, 128
      %v2960 = vld [vmem:[%s2959] sm:$0xf]
      %v2961 = vld [vmem:[%s2959 + $0x4] sm:$0xf]
      %v2962 = vld [vmem:[%s2959 + $0x8] sm:$0xf]
      %v2963 = vld [vmem:[%s2959 + $0xc] sm:$0xf]
      %v2964 = vld [vmem:[%s2959 + $0x10] sm:$0xf]
      %v2965 = vld [vmem:[%s2959 + $0x14] sm:$0xf]
      %v2966 = vld [vmem:[%s2959 + $0x18] sm:$0xf]
      %v2967 = vld [vmem:[%s2959 + $0x1c] sm:$0xf]
      %v2968 = vld [vmem:[%s2959 + $0x20] sm:$0xf]
      %v2969 = vld [vmem:[%s2959 + $0x24] sm:$0xf]
      %v2970 = vld [vmem:[%s2959 + $0x28] sm:$0xf]
      %v2971 = vld [vmem:[%s2959 + $0x2c] sm:$0xf]
      %v2972 = vld [vmem:[%s2959 + $0x30] sm:$0xf]
      %v2973 = vld [vmem:[%s2959 + $0x34] sm:$0xf]
      %v2974 = vld [vmem:[%s2959 + $0x38] sm:$0xf]
      %v2975 = vld [vmem:[%s2959 + $0x3c] sm:$0xf]
      %v2977 = vunpack.c.l.b16 %v2958
      %v2978 = vpack.c.b16 %v2977, %v2977
      %v2980 = vshrl.u32 %v2642, 16
      %v2982 = vrot.slane %v2980, 1
      %v2983 = vshll.u32 %v2642, 16
      %v2985 = vrot.slane %v2983, 2
      %v2986 = vor.u32 %v2982, %v2985
      %v2987 = vrot.slane %v2800, 1
      %v2988 = vrot.slane %v2796, 2
      %v2989 = vor.u32 %v2987, %v2988
      %v2990 = vsel %vm973, %v2986, %v2989
      %v2991 = vrot.slane %v2808, 1
      %v2992 = vrot.slane %v2804, 2
      %v2993 = vor.u32 %v2991, %v2992
      %v2994 = vsel %vm973, %v2989, %v2993
      %v2995 = vrot.slane %v2816, 1
      %v2996 = vrot.slane %v2812, 2
      %v2997 = vor.u32 %v2995, %v2996
      %v2998 = vsel %vm973, %v2993, %v2997
      %v2999 = vrot.slane %v2824, 1
      %v3000 = vrot.slane %v2820, 2
      %v3001 = vor.u32 %v2999, %v3000
      %v3002 = vsel %vm973, %v2997, %v3001
      %v3004 = vshrl.u32 %v2978, 16
      %v3006 = vrot.slane %v3004, 1
      %v3007 = vshll.u32 %v2978, 16
      %v3009 = vrot.slane %v3007, 2
      %v3010 = vor.u32 %v3006, %v3009
      %v3011 = vsel %vm973, %v3001, %v3010
      %v3033 = vunpack.c.l.b16 %v2960
      %v3034 = vunpack.c.l.b16 %v2961
      %v3035 = vunpack.c.l.b16 %v2962
      %v3036 = vunpack.c.l.b16 %v2963
      %v3037 = vunpack.c.l.b16 %v2964
      %v3038 = vunpack.c.l.b16 %v2965
      %v3039 = vunpack.c.l.b16 %v2966
      %v3040 = vunpack.c.l.b16 %v2967
      %v3041 = vunpack.c.l.b16 %v2968
      %v3042 = vunpack.c.l.b16 %v2969
      %v3043 = vunpack.c.l.b16 %v2970
      %v3044 = vunpack.c.l.b16 %v2971
      %v3045 = vunpack.c.l.b16 %v2972
      %v3046 = vunpack.c.l.b16 %v2973
      %v3047 = vunpack.c.l.b16 %v2974
      %v3048 = vunpack.c.l.b16 %v2975
      %v3049 = vpack.c.b16 %v3034, %v3033
      %v3050 = vpack.c.b16 %v3036, %v3035
      %v3051 = vpack.c.b16 %v3038, %v3037
      %v3052 = vpack.c.b16 %v3040, %v3039
      %v3053 = vpack.c.b16 %v3042, %v3041
      %v3054 = vpack.c.b16 %v3044, %v3043
      %v3055 = vpack.c.b16 %v3046, %v3045
      %v3056 = vpack.c.b16 %v3048, %v3047
      %3065 = vmatprep.subr.bf16.mxu0 0
      %3066 = vmatpush1.bf16.msra.mxu0 %v3049
      %3067 = vmatprep.subr.bf16.mxu0 0
      %3068 = vmatpush1.bf16.msra.mxu0 %v3050
      %3069 = vmatprep.subr.bf16.mxu0 0
      %3070 = vmatpush1.bf16.msra.mxu0 %v3051
      %3071 = vmatprep.subr.bf16.mxu0 0
      %3072 = vmatpush1.bf16.msra.mxu0 %v3052
      %3073 = vmatprep.subr.bf16.mxu0 0
      %3074 = vmatpush1.bf16.msra.mxu0 %v3053
      %3075 = vmatprep.subr.bf16.mxu0 0
      %3076 = vmatpush1.bf16.msra.mxu0 %v3054
      %3077 = vmatprep.subr.bf16.mxu0 0
      %3078 = vmatpush1.bf16.msra.mxu0 %v3055
      %3079 = vmatprep.subr.bf16.mxu0 0
      %3080 = vmatpush1.bf16.msra.mxu0 %v3056
      %3081 = vmatprep.subr.bf16.mxu0 0
      %3082 = vmatpush1.bf16.msra.mxu0 0
      %3083 = vmatprep.subr.bf16.mxu0 0
      %3084 = vmatpush1.bf16.msra.mxu0 0
      %3085 = vmatprep.subr.bf16.mxu0 0
      %3086 = vmatpush1.bf16.msra.mxu0 0
      %3087 = vmatprep.subr.bf16.mxu0 0
      %3088 = vmatpush1.bf16.msra.mxu0 0
      %3089 = vmatprep.subr.bf16.mxu0 0
      %3090 = vmatpush1.bf16.msra.mxu0 0
      %3091 = vmatprep.subr.bf16.mxu0 0
      %3092 = vmatpush1.bf16.msra.mxu0 0
      %3093 = vmatprep.subr.bf16.mxu0 0
      %3094 = vmatpush1.bf16.msra.mxu0 0
      %3095 = vmatprep.subr.bf16.mxu0 0
      %3096 = vmatpush1.bf16.msra.mxu0 0
      %3097 = vmatprep.mubr.bf16.mxu0 0
      %3098 = vmatmul.mubr.bf16.gmra.mrb[0].mxu0 %v2990
      %v3099 = vpop.f32.mrb[0].mxu0
      %v3100 = vadd.f32 0.0, %v3099
      %v3101 = vpop.f32.mrb[0].mxu0
      %v3102 = vpop.f32.mrb[0].mxu0
      %v3103 = vadd.f32 0.0, %v3102
      %v3104 = vpop.f32.mrb[0].mxu0
      %3105 = vmatprep.mubr.bf16.mxu0 0
      %3106 = vmatmul.mubr.bf16.gmra.mrb[0].mxu0 %v2994
      %v3107 = vpop.f32.mrb[0].mxu0
      %v3108 = vadd.f32 0.0, %v3107
      %v3109 = vpop.f32.mrb[0].mxu0
      %v3110 = vpop.f32.mrb[0].mxu0
      %v3111 = vadd.f32 0.0, %v3110
      %v3112 = vpop.f32.mrb[0].mxu0
      %3113 = vmatprep.mubr.bf16.mxu0 0
      %3114 = vmatmul.mubr.bf16.gmra.mrb[0].mxu0 %v2998
      %v3115 = vpop.f32.mrb[0].mxu0
      %v3116 = vadd.f32 0.0, %v3115
      %v3117 = vpop.f32.mrb[0].mxu0
      %v3118 = vpop.f32.mrb[0].mxu0
      %v3119 = vadd.f32 0.0, %v3118
      %v3120 = vpop.f32.mrb[0].mxu0
      %3121 = vmatprep.mubr.bf16.mxu0 0
      %3122 = vmatmul.mubr.bf16.gmra.mrb[0].mxu0 %v3002
      %v3123 = vpop.f32.mrb[0].mxu0
      %v3124 = vadd.f32 0.0, %v3123
      %v3125 = vpop.f32.mrb[0].mxu0
      %v3126 = vpop.f32.mrb[0].mxu0
      %v3127 = vadd.f32 0.0, %v3126
      %v3128 = vpop.f32.mrb[0].mxu0
      %3129 = vmatprep.mubr.bf16.mxu0 0
      %3130 = vmatmul.mubr.bf16.gmra.mrb[0].mxu0 %v3011
      %v3131 = vpop.f32.mrb[0].mxu0
      %v3132 = vadd.f32 0.0, %v3131
      %v3133 = vpop.f32.mrb[0].mxu0
      %v3134 = vpop.f32.mrb[0].mxu0
      %v3135 = vadd.f32 0.0, %v3134
      %v3136 = vpop.f32.mrb[0].mxu0
      %3137 = vdwg.mxu0
      %v3138 = vadd.f32 %v2920, %v3100
      %v3139 = vadd.f32 %v2923, %v3103
      %v3140 = vadd.f32 %v2928, %v3108
      %v3141 = vadd.f32 %v2931, %v3111
      %v3142 = vadd.f32 %v2936, %v3116
      %v3143 = vadd.f32 %v2939, %v3119
      %v3144 = vadd.f32 %v2944, %v3124
      %v3145 = vadd.f32 %v2947, %v3127
      %v3146 = vadd.f32 %v2952, %v3132
      %v3147 = vadd.f32 %v2955, %v3135
      %v3148 = vld [vmem:[#allocation3 + $0x8] sm:$0xe]
      %v3149 = vld [vmem:[#allocation3 + $0xc] sm:$0xf]
      %v3150 = vld [vmem:[#allocation3 + $0x10] sm:$0xf]
      %v3151 = vld [vmem:[#allocation3 + $0x14] sm:$0xf]
      %v3152 = vld [vmem:[#allocation3 + $0x18] sm:$0xf]
      %v3153 = vld [vmem:[#allocation3 + $0x1c] sm:$0xf]
      %v3154 = vld [vmem:[#allocation3 + $0x20] sm:$0xf]
      %v3155 = vld [vmem:[#allocation3 + $0x24] sm:$0xf]
      %v3156 = vld [vmem:[#allocation3 + $0x28] sm:$0xf]
      %v3157 = vld [vmem:[#allocation3 + $0x2c] sm:$0xf]
      %v3158 = vld [vmem:[#allocation3 + $0x30] sm:$0x3]
      %s3159 = scalar_lea.vmem %s3, 192
      %v3160 = vld [vmem:[%s3159] sm:$0xf]
      %v3161 = vld [vmem:[%s3159 + $0x4] sm:$0xf]
      %v3162 = vld [vmem:[%s3159 + $0x8] sm:$0xf]
      %v3163 = vld [vmem:[%s3159 + $0xc] sm:$0xf]
      %v3164 = vld [vmem:[%s3159 + $0x10] sm:$0xf]
      %v3165 = vld [vmem:[%s3159 + $0x14] sm:$0xf]
      %v3166 = vld [vmem:[%s3159 + $0x18] sm:$0xf]
      %v3167 = vld [vmem:[%s3159 + $0x1c] sm:$0xf]
      %v3168 = vld [vmem:[%s3159 + $0x20] sm:$0xf]
      %v3169 = vld [vmem:[%s3159 + $0x24] sm:$0xf]
      %v3170 = vld [vmem:[%s3159 + $0x28] sm:$0xf]
      %v3171 = vld [vmem:[%s3159 + $0x2c] sm:$0xf]
      %v3172 = vld [vmem:[%s3159 + $0x30] sm:$0xf]
      %v3173 = vld [vmem:[%s3159 + $0x34] sm:$0xf]
      %v3174 = vld [vmem:[%s3159 + $0x38] sm:$0xf]
      %v3175 = vld [vmem:[%s3159 + $0x3c] sm:$0xf]
      %v3187 = vunpack.c.l.b16 %v3148
      %v3188 = vunpack.c.l.b16 %v3149
      %v3189 = vunpack.c.l.b16 %v3150
      %v3190 = vunpack.c.l.b16 %v3151
      %v3191 = vunpack.c.l.b16 %v3152
      %v3192 = vunpack.c.l.b16 %v3153
      %v3193 = vunpack.c.l.b16 %v3154
      %v3194 = vunpack.c.l.b16 %v3155
      %v3195 = vunpack.c.l.b16 %v3156
      %v3196 = vunpack.c.l.b16 %v3157
      %v3197 = vunpack.c.l.b16 %v3158
      %v3198 = vpack.c.b16 %v3188, %v3187
      %v3199 = vpack.c.b16 %v3190, %v3189
      %v3200 = vpack.c.b16 %v3192, %v3191
      %v3201 = vpack.c.b16 %v3194, %v3193
      %v3202 = vpack.c.b16 %v3196, %v3195
      %v3203 = vpack.c.b16 %v3197, %v3197
      %v3205 = vshrl.u32 %v3198, 16
      %v3207 = vrot.slane %v3205, 1
      %v3208 = vshll.u32 %v3198, 16
      %v3210 = vrot.slane %v3208, 2
      %v3211 = vor.u32 %v3207, %v3210
      %v3213 = vshrl.u32 %v3199, 16
      %v3215 = vrot.slane %v3213, 1
      %v3216 = vshll.u32 %v3199, 16
      %v3218 = vrot.slane %v3216, 2
      %v3219 = vor.u32 %v3215, %v3218
      %v3220 = vsel %vm973, %v3211, %v3219
      %v3222 = vshrl.u32 %v3200, 16
      %v3224 = vrot.slane %v3222, 1
      %v3225 = vshll.u32 %v3200, 16
      %v3227 = vrot.slane %v3225, 2
      %v3228 = vor.u32 %v3224, %v3227
      %v3229 = vsel %vm973, %v3219, %v3228
      %v3231 = vshrl.u32 %v3201, 16
      %v3233 = vrot.slane %v3231, 1
      %v3234 = vshll.u32 %v3201, 16
      %v3236 = vrot.slane %v3234, 2
      %v3237 = vor.u32 %v3233, %v3236
      %v3238 = vsel %vm973, %v3228, %v3237
      %v3240 = vshrl.u32 %v3202, 16
      %v3242 = vrot.slane %v3240, 1
      %v3243 = vshll.u32 %v3202, 16
      %v3245 = vrot.slane %v3243, 2
      %v3246 = vor.u32 %v3242, %v3245
      %v3247 = vsel %vm973, %v3237, %v3246
      %v3249 = vshrl.u32 %v3203, 16
      %v3251 = vrot.slane %v3249, 1
      %v3252 = vshll.u32 %v3203, 16
      %v3254 = vrot.slane %v3252, 2
      %v3255 = vor.u32 %v3251, %v3254
      %v3256 = vsel %vm973, %v3246, %v3255
      %v3278 = vunpack.c.l.b16 %v3160
      %v3279 = vunpack.c.l.b16 %v3161
      %v3280 = vunpack.c.l.b16 %v3162
      %v3281 = vunpack.c.l.b16 %v3163
      %v3282 = vunpack.c.l.b16 %v3164
      %v3283 = vunpack.c.l.b16 %v3165
      %v3284 = vunpack.c.l.b16 %v3166
      %v3285 = vunpack.c.l.b16 %v3167
      %v3286 = vunpack.c.l.b16 %v3168
      %v3287 = vunpack.c.l.b16 %v3169
      %v3288 = vunpack.c.l.b16 %v3170
      %v3289 = vunpack.c.l.b16 %v3171
      %v3290 = vunpack.c.l.b16 %v3172
      %v3291 = vunpack.c.l.b16 %v3173
      %v3292 = vunpack.c.l.b16 %v3174
      %v3293 = vunpack.c.l.b16 %v3175
      %v3294 = vpack.c.b16 %v3279, %v3278
      %v3295 = vpack.c.b16 %v3281, %v3280
      %v3296 = vpack.c.b16 %v3283, %v3282
      %v3297 = vpack.c.b16 %v3285, %v3284
      %v3298 = vpack.c.b16 %v3287, %v3286
      %v3299 = vpack.c.b16 %v3289, %v3288
      %v3300 = vpack.c.b16 %v3291, %v3290
      %v3301 = vpack.c.b16 %v3293, %v3292
      %3310 = vmatprep.subr.bf16.mxu0 0
      %3311 = vmatpush1.bf16.msra.mxu0 %v3294
      %3312 = vmatprep.subr.bf16.mxu0 0
      %3313 = vmatpush1.bf16.msra.mxu0 %v3295
      %3314 = vmatprep.subr.bf16.mxu0 0
      %3315 = vmatpush1.bf16.msra.mxu0 %v3296
      %3316 = vmatprep.subr.bf16.mxu0 0
      %3317 = vmatpush1.bf16.msra.mxu0 %v3297
      %3318 = vmatprep.subr.bf16.mxu0 0
      %3319 = vmatpush1.bf16.msra.mxu0 %v3298
      %3320 = vmatprep.subr.bf16.mxu0 0
      %3321 = vmatpush1.bf16.msra.mxu0 %v3299
      %3322 = vmatprep.subr.bf16.mxu0 0
      %3323 = vmatpush1.bf16.msra.mxu0 %v3300
      %3324 = vmatprep.subr.bf16.mxu0 0
      %3325 = vmatpush1.bf16.msra.mxu0 %v3301
      %3326 = vmatprep.subr.bf16.mxu0 0
      %3327 = vmatpush1.bf16.msra.mxu0 0
      %3328 = vmatprep.subr.bf16.mxu0 0
      %3329 = vmatpush1.bf16.msra.mxu0 0
      %3330 = vmatprep.subr.bf16.mxu0 0
      %3331 = vmatpush1.bf16.msra.mxu0 0
      %3332 = vmatprep.subr.bf16.mxu0 0
      %3333 = vmatpush1.bf16.msra.mxu0 0
      %3334 = vmatprep.subr.bf16.mxu0 0
      %3335 = vmatpush1.bf16.msra.mxu0 0
      %3336 = vmatprep.subr.bf16.mxu0 0
      %3337 = vmatpush1.bf16.msra.mxu0 0
      %3338 = vmatprep.subr.bf16.mxu0 0
      %3339 = vmatpush1.bf16.msra.mxu0 0
      %3340 = vmatprep.subr.bf16.mxu0 0
      %3341 = vmatpush1.bf16.msra.mxu0 0
      %3342 = vmatprep.mubr.bf16.mxu0 0
      %3343 = vmatmul.mubr.bf16.gmra.mrb[0].mxu0 %v3220
      %v3344 = vpop.f32.mrb[0].mxu0
      %v3345 = vadd.f32 0.0, %v3344
      %v3346 = vpop.f32.mrb[0].mxu0
      %v3347 = vpop.f32.mrb[0].mxu0
      %v3348 = vadd.f32 0.0, %v3347
      %v3349 = vpop.f32.mrb[0].mxu0
      %3350 = vmatprep.mubr.bf16.mxu0 0
      %3351 = vmatmul.mubr.bf16.gmra.mrb[0].mxu0 %v3229
      %v3352 = vpop.f32.mrb[0].mxu0
      %v3353 = vadd.f32 0.0, %v3352
      %v3354 = vpop.f32.mrb[0].mxu0
      %v3355 = vpop.f32.mrb[0].mxu0
      %v3356 = vadd.f32 0.0, %v3355
      %v3357 = vpop.f32.mrb[0].mxu0
      %3358 = vmatprep.mubr.bf16.mxu0 0
      %3359 = vmatmul.mubr.bf16.gmra.mrb[0].mxu0 %v3238
      %v3360 = vpop.f32.mrb[0].mxu0
      %v3361 = vadd.f32 0.0, %v3360
      %v3362 = vpop.f32.mrb[0].mxu0
      %v3363 = vpop.f32.mrb[0].mxu0
      %v3364 = vadd.f32 0.0, %v3363
      %v3365 = vpop.f32.mrb[0].mxu0
      %3366 = vmatprep.mubr.bf16.mxu0 0
      %3367 = vmatmul.mubr.bf16.gmra.mrb[0].mxu0 %v3247
      %v3368 = vpop.f32.mrb[0].mxu0
      %v3369 = vadd.f32 0.0, %v3368
      %v3370 = vpop.f32.mrb[0].mxu0
      %v3371 = vpop.f32.mrb[0].mxu0
      %v3372 = vadd.f32 0.0, %v3371
      %v3373 = vpop.f32.mrb[0].mxu0
      %3374 = vmatprep.mubr.bf16.mxu0 0
      %3375 = vmatmul.mubr.bf16.gmra.mrb[0].mxu0 %v3256
      %v3376 = vpop.f32.mrb[0].mxu0
      %v3377 = vadd.f32 0.0, %v3376
      %v3378 = vpop.f32.mrb[0].mxu0
      %v3379 = vpop.f32.mrb[0].mxu0
      %v3380 = vadd.f32 0.0, %v3379
      %v3381 = vpop.f32.mrb[0].mxu0
      %3382 = vdwg.mxu0
      %v3383 = vadd.f32 %v3138, %v3345
      %v3384 = vadd.f32 %v3139, %v3348
      %v3385 = vadd.f32 %v3140, %v3353
      %v3386 = vadd.f32 %v3141, %v3356
      %v3387 = vadd.f32 %v3142, %v3361
      %v3388 = vadd.f32 %v3143, %v3364
      %v3389 = vadd.f32 %v3144, %v3369
      %v3390 = vadd.f32 %v3145, %v3372
      %v3391 = vadd.f32 %v3146, %v3377
      %v3392 = vadd.f32 %v3147, %v3380
      %v3393 = vld [vmem:[#allocation3 + $0x8] sm:$0xc]
      %s3394 = scalar_lea.vmem %s3, 256
      %v3395 = vld [vmem:[%s3394] sm:$0xf]
      %v3396 = vld [vmem:[%s3394 + $0x4] sm:$0xf]
      %v3397 = vld [vmem:[%s3394 + $0x8] sm:$0xf]
      %v3398 = vld [vmem:[%s3394 + $0xc] sm:$0xf]
      %v3399 = vld [vmem:[%s3394 + $0x10] sm:$0xf]
      %v3400 = vld [vmem:[%s3394 + $0x14] sm:$0xf]
      %v3401 = vld [vmem:[%s3394 + $0x18] sm:$0xf]
      %v3402 = vld [vmem:[%s3394 + $0x1c] sm:$0xf]
      %v3403 = vld [vmem:[%s3394 + $0x20] sm:$0xf]
      %v3404 = vld [vmem:[%s3394 + $0x24] sm:$0xf]
      %v3405 = vld [vmem:[%s3394 + $0x28] sm:$0xf]
      %v3406 = vld [vmem:[%s3394 + $0x2c] sm:$0xf]
      %v3407 = vld [vmem:[%s3394 + $0x30] sm:$0xf]
      %v3408 = vld [vmem:[%s3394 + $0x34] sm:$0xf]
      %v3409 = vld [vmem:[%s3394 + $0x38] sm:$0xf]
      %v3410 = vld [vmem:[%s3394 + $0x3c] sm:$0xf]
      %v3412 = vunpack.c.l.b16 %v3393
      %v3413 = vpack.c.b16 %v3188, %v3412
      %v3414 = vrot.slane %v3413, 2
      %v3415 = vrot.slane %v3199, 2
      %v3416 = vsel %vm1409, %v3414, %v3415
      %v3417 = vrot.slane %v3200, 2
      %v3418 = vsel %vm1409, %v3415, %v3417
      %v3419 = vrot.slane %v3201, 2
      %v3420 = vsel %vm1409, %v3417, %v3419
      %v3421 = vrot.slane %v3202, 2
      %v3422 = vsel %vm1409, %v3419, %v3421
      %v3423 = vrot.slane %v3203, 2
      %v3424 = vsel %vm1409, %v3421, %v3423
      %v3446 = vunpack.c.l.b16 %v3395
      %v3447 = vunpack.c.l.b16 %v3396
      %v3448 = vunpack.c.l.b16 %v3397
      %v3449 = vunpack.c.l.b16 %v3398
      %v3450 = vunpack.c.l.b16 %v3399
      %v3451 = vunpack.c.l.b16 %v3400
      %v3452 = vunpack.c.l.b16 %v3401
      %v3453 = vunpack.c.l.b16 %v3402
      %v3454 = vunpack.c.l.b16 %v3403
      %v3455 = vunpack.c.l.b16 %v3404
      %v3456 = vunpack.c.l.b16 %v3405
      %v3457 = vunpack.c.l.b16 %v3406
      %v3458 = vunpack.c.l.b16 %v3407
      %v3459 = vunpack.c.l.b16 %v3408
      %v3460 = vunpack.c.l.b16 %v3409
      %v3461 = vunpack.c.l.b16 %v3410
      %v3462 = vpack.c.b16 %v3447, %v3446
      %v3463 = vpack.c.b16 %v3449, %v3448
      %v3464 = vpack.c.b16 %v3451, %v3450
      %v3465 = vpack.c.b16 %v3453, %v3452
      %v3466 = vpack.c.b16 %v3455, %v3454
      %v3467 = vpack.c.b16 %v3457, %v3456
      %v3468 = vpack.c.b16 %v3459, %v3458
      %v3469 = vpack.c.b16 %v3461, %v3460
      %3478 = vmatprep.subr.bf16.mxu0 0
      %3479 = vmatpush1.bf16.msra.mxu0 %v3462
      %3480 = vmatprep.subr.bf16.mxu0 0
      %3481 = vmatpush1.bf16.msra.mxu0 %v3463
      %3482 = vmatprep.subr.bf16.mxu0 0
      %3483 = vmatpush1.bf16.msra.mxu0 %v3464
      %3484 = vmatprep.subr.bf16.mxu0 0
      %3485 = vmatpush1.bf16.msra.mxu0 %v3465
      %3486 = vmatprep.subr.bf16.mxu0 0
      %3487 = vmatpush1.bf16.msra.mxu0 %v3466
      %3488 = vmatprep.subr.bf16.mxu0 0
      %3489 = vmatpush1.bf16.msra.mxu0 %v3467
      %3490 = vmatprep.subr.bf16.mxu0 0
      %3491 = vmatpush1.bf16.msra.mxu0 %v3468
      %3492 = vmatprep.subr.bf16.mxu0 0
      %3493 = vmatpush1.bf16.msra.mxu0 %v3469
      %3494 = vmatprep.subr.bf16.mxu0 0
      %3495 = vmatpush1.bf16.msra.mxu0 0
      %3496 = vmatprep.subr.bf16.mxu0 0
      %3497 = vmatpush1.bf16.msra.mxu0 0
      %3498 = vmatprep.subr.bf16.mxu0 0
      %3499 = vmatpush1.bf16.msra.mxu0 0
      %3500 = vmatprep.subr.bf16.mxu0 0
      %3501 = vmatpush1.bf16.msra.mxu0 0
      %3502 = vmatprep.subr.bf16.mxu0 0
      %3503 = vmatpush1.bf16.msra.mxu0 0
      %3504 = vmatprep.subr.bf16.mxu0 0
      %3505 = vmatpush1.bf16.msra.mxu0 0
      %3506 = vmatprep.subr.bf16.mxu0 0
      %3507 = vmatpush1.bf16.msra.mxu0 0
      %3508 = vmatprep.subr.bf16.mxu0 0
      %3509 = vmatpush1.bf16.msra.mxu0 0
      %3510 = vmatprep.mubr.bf16.mxu0 0
      %3511 = vmatmul.mubr.bf16.gmra.mrb[0].mxu0 %v3416
      %v3512 = vpop.f32.mrb[0].mxu0
      %v3513 = vadd.f32 0.0, %v3512
      %v3514 = vpop.f32.mrb[0].mxu0
      %v3515 = vpop.f32.mrb[0].mxu0
      %v3516 = vadd.f32 0.0, %v3515
      %v3517 = vpop.f32.mrb[0].mxu0
      %3518 = vmatprep.mubr.bf16.mxu0 0
      %3519 = vmatmul.mubr.bf16.gmra.mrb[0].mxu0 %v3418
      %v3520 = vpop.f32.mrb[0].mxu0
      %v3521 = vadd.f32 0.0, %v3520
      %v3522 = vpop.f32.mrb[0].mxu0
      %v3523 = vpop.f32.mrb[0].mxu0
      %v3524 = vadd.f32 0.0, %v3523
      %v3525 = vpop.f32.mrb[0].mxu0
      %3526 = vmatprep.mubr.bf16.mxu0 0
      %3527 = vmatmul.mubr.bf16.gmra.mrb[0].mxu0 %v3420
      %v3528 = vpop.f32.mrb[0].mxu0
      %v3529 = vadd.f32 0.0, %v3528
      %v3530 = vpop.f32.mrb[0].mxu0
      %v3531 = vpop.f32.mrb[0].mxu0
      %v3532 = vadd.f32 0.0, %v3531
      %v3533 = vpop.f32.mrb[0].mxu0
      %3534 = vmatprep.mubr.bf16.mxu0 0
      %3535 = vmatmul.mubr.bf16.gmra.mrb[0].mxu0 %v3422
      %v3536 = vpop.f32.mrb[0].mxu0
      %v3537 = vadd.f32 0.0, %v3536
      %v3538 = vpop.f32.mrb[0].mxu0
      %v3539 = vpop.f32.mrb[0].mxu0
      %v3540 = vadd.f32 0.0, %v3539
      %v3541 = vpop.f32.mrb[0].mxu0
      %3542 = vmatprep.mubr.bf16.mxu0 0
      %3543 = vmatmul.mubr.bf16.gmra.mrb[0].mxu0 %v3424
      %v3544 = vpop.f32.mrb[0].mxu0
      %v3545 = vadd.f32 0.0, %v3544
      %v3546 = vpop.f32.mrb[0].mxu0
      %v3547 = vpop.f32.mrb[0].mxu0
      %v3548 = vadd.f32 0.0, %v3547
      %v3549 = vpop.f32.mrb[0].mxu0
      %3550 = vdwg.mxu0
      %v3551 = vadd.f32 %v3383, %v3513
      %v3552 = vadd.f32 %v3384, %v3516
      %v3553 = vadd.f32 %v3385, %v3521
      %v3554 = vadd.f32 %v3386, %v3524
      %v3555 = vadd.f32 %v3387, %v3529
      %v3556 = vadd.f32 %v3388, %v3532
      %v3557 = vadd.f32 %v3389, %v3537
      %v3558 = vadd.f32 %v3390, %v3540
      %v3559 = vadd.f32 %v3391, %v3545
      %v3560 = vadd.f32 %v3392, %v3548
      %v3561 = vld [vmem:[#allocation3 + $0x30] sm:$0x7]
      %s3562 = scalar_lea.vmem %s3, 320
      %v3563 = vld [vmem:[%s3562] sm:$0xf]
      %v3564 = vld [vmem:[%s3562 + $0x4] sm:$0xf]
      %v3565 = vld [vmem:[%s3562 + $0x8] sm:$0xf]
      %v3566 = vld [vmem:[%s3562 + $0xc] sm:$0xf]
      %v3567 = vld [vmem:[%s3562 + $0x10] sm:$0xf]
      %v3568 = vld [vmem:[%s3562 + $0x14] sm:$0xf]
      %v3569 = vld [vmem:[%s3562 + $0x18] sm:$0xf]
      %v3570 = vld [vmem:[%s3562 + $0x1c] sm:$0xf]
      %v3571 = vld [vmem:[%s3562 + $0x20] sm:$0xf]
      %v3572 = vld [vmem:[%s3562 + $0x24] sm:$0xf]
      %v3573 = vld [vmem:[%s3562 + $0x28] sm:$0xf]
      %v3574 = vld [vmem:[%s3562 + $0x2c] sm:$0xf]
      %v3575 = vld [vmem:[%s3562 + $0x30] sm:$0xf]
      %v3576 = vld [vmem:[%s3562 + $0x34] sm:$0xf]
      %v3577 = vld [vmem:[%s3562 + $0x38] sm:$0xf]
      %v3578 = vld [vmem:[%s3562 + $0x3c] sm:$0xf]
      %v3580 = vunpack.c.l.b16 %v3561
      %v3581 = vpack.c.b16 %v3580, %v3580
      %v3583 = vshrl.u32 %v3413, 16
      %v3585 = vrot.slane %v3583, 2
      %v3586 = vshll.u32 %v3413, 16
      %v3588 = vrot.slane %v3586, 3
      %v3589 = vor.u32 %v3585, %v3588
      %v3590 = vrot.slane %v3213, 2
      %v3591 = vrot.slane %v3216, 3
      %v3592 = vor.u32 %v3590, %v3591
      %v3593 = vsel %vm1578, %v3589, %v3592
      %v3594 = vrot.slane %v3222, 2
      %v3595 = vrot.slane %v3225, 3
      %v3596 = vor.u32 %v3594, %v3595
      %v3597 = vsel %vm1578, %v3592, %v3596
      %v3598 = vrot.slane %v3231, 2
      %v3599 = vrot.slane %v3234, 3
      %v3600 = vor.u32 %v3598, %v3599
      %v3601 = vsel %vm1578, %v3596, %v3600
      %v3602 = vrot.slane %v3240, 2
      %v3603 = vrot.slane %v3243, 3
      %v3604 = vor.u32 %v3602, %v3603
      %v3605 = vsel %vm1578, %v3600, %v3604
      %v3607 = vshrl.u32 %v3581, 16
      %v3609 = vrot.slane %v3607, 2
      %v3610 = vshll.u32 %v3581, 16
      %v3612 = vrot.slane %v3610, 3
      %v3613 = vor.u32 %v3609, %v3612
      %v3614 = vsel %vm1578, %v3604, %v3613
      %v3636 = vunpack.c.l.b16 %v3563
      %v3637 = vunpack.c.l.b16 %v3564
      %v3638 = vunpack.c.l.b16 %v3565
      %v3639 = vunpack.c.l.b16 %v3566
      %v3640 = vunpack.c.l.b16 %v3567
      %v3641 = vunpack.c.l.b16 %v3568
      %v3642 = vunpack.c.l.b16 %v3569
      %v3643 = vunpack.c.l.b16 %v3570
      %v3644 = vunpack.c.l.b16 %v3571
      %v3645 = vunpack.c.l.b16 %v3572
      %v3646 = vunpack.c.l.b16 %v3573
      %v3647 = vunpack.c.l.b16 %v3574
      %v3648 = vunpack.c.l.b16 %v3575
      %v3649 = vunpack.c.l.b16 %v3576
      %v3650 = vunpack.c.l.b16 %v3577
      %v3651 = vunpack.c.l.b16 %v3578
      %v3652 = vpack.c.b16 %v3637, %v3636
      %v3653 = vpack.c.b16 %v3639, %v3638
      %v3654 = vpack.c.b16 %v3641, %v3640
      %v3655 = vpack.c.b16 %v3643, %v3642
      %v3656 = vpack.c.b16 %v3645, %v3644
      %v3657 = vpack.c.b16 %v3647, %v3646
      %v3658 = vpack.c.b16 %v3649, %v3648
      %v3659 = vpack.c.b16 %v3651, %v3650
      %3668 = vmatprep.subr.bf16.mxu0 0
      %3669 = vmatpush1.bf16.msra.mxu0 %v3652
      %3670 = vmatprep.subr.bf16.mxu0 0
      %3671 = vmatpush1.bf16.msra.mxu0 %v3653
      %3672 = vmatprep.subr.bf16.mxu0 0
      %3673 = vmatpush1.bf16.msra.mxu0 %v3654
      %3674 = vmatprep.subr.bf16.mxu0 0
      %3675 = vmatpush1.bf16.msra.mxu0 %v3655
      %3676 = vmatprep.subr.bf16.mxu0 0
      %3677 = vmatpush1.bf16.msra.mxu0 %v3656
      %3678 = vmatprep.subr.bf16.mxu0 0
      %3679 = vmatpush1.bf16.msra.mxu0 %v3657
      %3680 = vmatprep.subr.bf16.mxu0 0
      %3681 = vmatpush1.bf16.msra.mxu0 %v3658
      %3682 = vmatprep.subr.bf16.mxu0 0
      %3683 = vmatpush1.bf16.msra.mxu0 %v3659
      %3684 = vmatprep.subr.bf16.mxu0 0
      %3685 = vmatpush1.bf16.msra.mxu0 0
      %3686 = vmatprep.subr.bf16.mxu0 0
      %3687 = vmatpush1.bf16.msra.mxu0 0
      %3688 = vmatprep.subr.bf16.mxu0 0
      %3689 = vmatpush1.bf16.msra.mxu0 0
      %3690 = vmatprep.subr.bf16.mxu0 0
      %3691 = vmatpush1.bf16.msra.mxu0 0
      %3692 = vmatprep.subr.bf16.mxu0 0
      %3693 = vmatpush1.bf16.msra.mxu0 0
      %3694 = vmatprep.subr.bf16.mxu0 0
      %3695 = vmatpush1.bf16.msra.mxu0 0
      %3696 = vmatprep.subr.bf16.mxu0 0
      %3697 = vmatpush1.bf16.msra.mxu0 0
      %3698 = vmatprep.subr.bf16.mxu0 0
      %3699 = vmatpush1.bf16.msra.mxu0 0
      %3700 = vmatprep.mubr.bf16.mxu0 0
      %3701 = vmatmul.mubr.bf16.gmra.mrb[0].mxu0 %v3593
      %v3702 = vpop.f32.mrb[0].mxu0
      %v3703 = vadd.f32 0.0, %v3702
      %v3704 = vpop.f32.mrb[0].mxu0
      %v3705 = vpop.f32.mrb[0].mxu0
      %v3706 = vadd.f32 0.0, %v3705
      %v3707 = vpop.f32.mrb[0].mxu0
      %3708 = vmatprep.mubr.bf16.mxu0 0
      %3709 = vmatmul.mubr.bf16.gmra.mrb[0].mxu0 %v3597
      %v3710 = vpop.f32.mrb[0].mxu0
      %v3711 = vadd.f32 0.0, %v3710
      %v3712 = vpop.f32.mrb[0].mxu0
      %v3713 = vpop.f32.mrb[0].mxu0
      %v3714 = vadd.f32 0.0, %v3713
      %v3715 = vpop.f32.mrb[0].mxu0
      %3716 = vmatprep.mubr.bf16.mxu0 0
      %3717 = vmatmul.mubr.bf16.gmra.mrb[0].mxu0 %v3601
      %v3718 = vpop.f32.mrb[0].mxu0
      %v3719 = vadd.f32 0.0, %v3718
      %v3720 = vpop.f32.mrb[0].mxu0
      %v3721 = vpop.f32.mrb[0].mxu0
      %v3722 = vadd.f32 0.0, %v3721
      %v3723 = vpop.f32.mrb[0].mxu0
      %3724 = vmatprep.mubr.bf16.mxu0 0
      %3725 = vmatmul.mubr.bf16.gmra.mrb[0].mxu0 %v3605
      %v3726 = vpop.f32.mrb[0].mxu0
      %v3727 = vadd.f32 0.0, %v3726
      %v3728 = vpop.f32.mrb[0].mxu0
      %v3729 = vpop.f32.mrb[0].mxu0
      %v3730 = vadd.f32 0.0, %v3729
      %v3731 = vpop.f32.mrb[0].mxu0
      %3732 = vmatprep.mubr.bf16.mxu0 0
      %3733 = vmatmul.mubr.bf16.gmra.mrb[0].mxu0 %v3614
      %v3734 = vpop.f32.mrb[0].mxu0
      %v3735 = vadd.f32 0.0, %v3734
      %v3736 = vpop.f32.mrb[0].mxu0
      %v3737 = vpop.f32.mrb[0].mxu0
      %v3738 = vadd.f32 0.0, %v3737
      %v3739 = vpop.f32.mrb[0].mxu0
      %3740 = vdwg.mxu0
      %v3741 = vadd.f32 %v3551, %v3703
      %v3742 = vadd.f32 %v3552, %v3706
      %v3743 = vadd.f32 %v3553, %v3711
      %v3744 = vadd.f32 %v3554, %v3714
      %v3745 = vadd.f32 %v3555, %v3719
      %v3746 = vadd.f32 %v3556, %v3722
      %v3747 = vadd.f32 %v3557, %v3727
      %v3748 = vadd.f32 %v3558, %v3730
      %v3749 = vadd.f32 %v3559, %v3735
      %v3750 = vadd.f32 %v3560, %v3738
      %v3751 = vld [vmem:[#allocation3 + $0xc] sm:$0xc]
      %v3752 = vld [vmem:[#allocation3 + $0x10] sm:$0xf]
      %v3753 = vld [vmem:[#allocation3 + $0x14] sm:$0xf]
      %v3754 = vld [vmem:[#allocation3 + $0x18] sm:$0xf]
      %v3755 = vld [vmem:[#allocation3 + $0x1c] sm:$0xf]
      %v3756 = vld [vmem:[#allocation3 + $0x20] sm:$0xf]
      %v3757 = vld [vmem:[#allocation3 + $0x24] sm:$0xf]
      %v3758 = vld [vmem:[#allocation3 + $0x28] sm:$0xf]
      %v3759 = vld [vmem:[#allocation3 + $0x2c] sm:$0xf]
      %v3760 = vld [vmem:[#allocation3 + $0x30] sm:$0xf]
      %v3761 = vld [vmem:[#allocation3 + $0x34] sm:$0x7]
      %s3762 = scalar_lea.vmem %s3, 384
      %v3763 = vld [vmem:[%s3762] sm:$0xf]
      %v3764 = vld [vmem:[%s3762 + $0x4] sm:$0xf]
      %v3765 = vld [vmem:[%s3762 + $0x8] sm:$0xf]
      %v3766 = vld [vmem:[%s3762 + $0xc] sm:$0xf]
      %v3767 = vld [vmem:[%s3762 + $0x10] sm:$0xf]
      %v3768 = vld [vmem:[%s3762 + $0x14] sm:$0xf]
      %v3769 = vld [vmem:[%s3762 + $0x18] sm:$0xf]
      %v3770 = vld [vmem:[%s3762 + $0x1c] sm:$0xf]
      %v3771 = vld [vmem:[%s3762 + $0x20] sm:$0xf]
      %v3772 = vld [vmem:[%s3762 + $0x24] sm:$0xf]
      %v3773 = vld [vmem:[%s3762 + $0x28] sm:$0xf]
      %v3774 = vld [vmem:[%s3762 + $0x2c] sm:$0xf]
      %v3775 = vld [vmem:[%s3762 + $0x30] sm:$0xf]
      %v3776 = vld [vmem:[%s3762 + $0x34] sm:$0xf]
      %v3777 = vld [vmem:[%s3762 + $0x38] sm:$0xf]
      %v3778 = vld [vmem:[%s3762 + $0x3c] sm:$0xf]
      %v3790 = vunpack.c.l.b16 %v3751
      %v3791 = vunpack.c.l.b16 %v3752
      %v3792 = vunpack.c.l.b16 %v3753
      %v3793 = vunpack.c.l.b16 %v3754
      %v3794 = vunpack.c.l.b16 %v3755
      %v3795 = vunpack.c.l.b16 %v3756
      %v3796 = vunpack.c.l.b16 %v3757
      %v3797 = vunpack.c.l.b16 %v3758
      %v3798 = vunpack.c.l.b16 %v3759
      %v3799 = vunpack.c.l.b16 %v3760
      %v3800 = vunpack.c.l.b16 %v3761
      %v3801 = vpack.c.b16 %v3791, %v3790
      %v3802 = vpack.c.b16 %v3793, %v3792
      %v3803 = vpack.c.b16 %v3795, %v3794
      %v3804 = vpack.c.b16 %v3797, %v3796
      %v3805 = vpack.c.b16 %v3799, %v3798
      %v3806 = vpack.c.b16 %v3800, %v3800
      %v3808 = vshrl.u32 %v3801, 16
      %v3810 = vrot.slane %v3808, 2
      %v3811 = vshll.u32 %v3801, 16
      %v3813 = vrot.slane %v3811, 3
      %v3814 = vor.u32 %v3810, %v3813
      %v3816 = vshrl.u32 %v3802, 16
      %v3818 = vrot.slane %v3816, 2
      %v3819 = vshll.u32 %v3802, 16
      %v3821 = vrot.slane %v3819, 3
      %v3822 = vor.u32 %v3818, %v3821
      %v3823 = vsel %vm1578, %v3814, %v3822
      %v3825 = vshrl.u32 %v3803, 16
      %v3827 = vrot.slane %v3825, 2
      %v3828 = vshll.u32 %v3803, 16
      %v3830 = vrot.slane %v3828, 3
      %v3831 = vor.u32 %v3827, %v3830
      %v3832 = vsel %vm1578, %v3822, %v3831
      %v3834 = vshrl.u32 %v3804, 16
      %v3836 = vrot.slane %v3834, 2
      %v3837 = vshll.u32 %v3804, 16
      %v3839 = vrot.slane %v3837, 3
      %v3840 = vor.u32 %v3836, %v3839
      %v3841 = vsel %vm1578, %v3831, %v3840
      %v3843 = vshrl.u32 %v3805, 16
      %v3845 = vrot.slane %v3843, 2
      %v3846 = vshll.u32 %v3805, 16
      %v3848 = vrot.slane %v3846, 3
      %v3849 = vor.u32 %v3845, %v3848
      %v3850 = vsel %vm1578, %v3840, %v3849
      %v3852 = vshrl.u32 %v3806, 16
      %v3854 = vrot.slane %v3852, 2
      %v3855 = vshll.u32 %v3806, 16
      %v3857 = vrot.slane %v3855, 3
      %v3858 = vor.u32 %v3854, %v3857
      %v3859 = vsel %vm1578, %v3849, %v3858
      %v3881 = vunpack.c.l.b16 %v3763
      %v3882 = vunpack.c.l.b16 %v3764
      %v3883 = vunpack.c.l.b16 %v3765
      %v3884 = vunpack.c.l.b16 %v3766
      %v3885 = vunpack.c.l.b16 %v3767
      %v3886 = vunpack.c.l.b16 %v3768
      %v3887 = vunpack.c.l.b16 %v3769
      %v3888 = vunpack.c.l.b16 %v3770
      %v3889 = vunpack.c.l.b16 %v3771
      %v3890 = vunpack.c.l.b16 %v3772
      %v3891 = vunpack.c.l.b16 %v3773
      %v3892 = vunpack.c.l.b16 %v3774
      %v3893 = vunpack.c.l.b16 %v3775
      %v3894 = vunpack.c.l.b16 %v3776
      %v3895 = vunpack.c.l.b16 %v3777
      %v3896 = vunpack.c.l.b16 %v3778
      %v3897 = vpack.c.b16 %v3882, %v3881
      %v3898 = vpack.c.b16 %v3884, %v3883
      %v3899 = vpack.c.b16 %v3886, %v3885
      %v3900 = vpack.c.b16 %v3888, %v3887
      %v3901 = vpack.c.b16 %v3890, %v3889
      %v3902 = vpack.c.b16 %v3892, %v3891
      %v3903 = vpack.c.b16 %v3894, %v3893
      %v3904 = vpack.c.b16 %v3896, %v3895
      %3913 = vmatprep.subr.bf16.mxu0 0
      %3914 = vmatpush1.bf16.msra.mxu0 %v3897
      %3915 = vmatprep.subr.bf16.mxu0 0
      %3916 = vmatpush1.bf16.msra.mxu0 %v3898
      %3917 = vmatprep.subr.bf16.mxu0 0
      %3918 = vmatpush1.bf16.msra.mxu0 %v3899
      %3919 = vmatprep.subr.bf16.mxu0 0
      %3920 = vmatpush1.bf16.msra.mxu0 %v3900
      %3921 = vmatprep.subr.bf16.mxu0 0
      %3922 = vmatpush1.bf16.msra.mxu0 %v3901
      %3923 = vmatprep.subr.bf16.mxu0 0
      %3924 = vmatpush1.bf16.msra.mxu0 %v3902
      %3925 = vmatprep.subr.bf16.mxu0 0
      %3926 = vmatpush1.bf16.msra.mxu0 %v3903
      %3927 = vmatprep.subr.bf16.mxu0 0
      %3928 = vmatpush1.bf16.msra.mxu0 %v3904
      %3929 = vmatprep.subr.bf16.mxu0 0
      %3930 = vmatpush1.bf16.msra.mxu0 0
      %3931 = vmatprep.subr.bf16.mxu0 0
      %3932 = vmatpush1.bf16.msra.mxu0 0
      %3933 = vmatprep.subr.bf16.mxu0 0
      %3934 = vmatpush1.bf16.msra.mxu0 0
      %3935 = vmatprep.subr.bf16.mxu0 0
      %3936 = vmatpush1.bf16.msra.mxu0 0
      %3937 = vmatprep.subr.bf16.mxu0 0
      %3938 = vmatpush1.bf16.msra.mxu0 0
      %3939 = vmatprep.subr.bf16.mxu0 0
      %3940 = vmatpush1.bf16.msra.mxu0 0
      %3941 = vmatprep.subr.bf16.mxu0 0
      %3942 = vmatpush1.bf16.msra.mxu0 0
      %3943 = vmatprep.subr.bf16.mxu0 0
      %3944 = vmatpush1.bf16.msra.mxu0 0
      %3945 = vmatprep.mubr.bf16.mxu0 0
      %3946 = vmatmul.mubr.bf16.gmra.mrb[0].mxu0 %v3823
      %v3947 = vpop.f32.mrb[0].mxu0
      %v3948 = vadd.f32 0.0, %v3947
      %v3949 = vpop.f32.mrb[0].mxu0
      %v3950 = vpop.f32.mrb[0].mxu0
      %v3951 = vadd.f32 0.0, %v3950
      %v3952 = vpop.f32.mrb[0].mxu0
      %3953 = vmatprep.mubr.bf16.mxu0 0
      %3954 = vmatmul.mubr.bf16.gmra.mrb[0].mxu0 %v3832
      %v3955 = vpop.f32.mrb[0].mxu0
      %v3956 = vadd.f32 0.0, %v3955
      %v3957 = vpop.f32.mrb[0].mxu0
      %v3958 = vpop.f32.mrb[0].mxu0
      %v3959 = vadd.f32 0.0, %v3958
      %v3960 = vpop.f32.mrb[0].mxu0
      %3961 = vmatprep.mubr.bf16.mxu0 0
      %3962 = vmatmul.mubr.bf16.gmra.mrb[0].mxu0 %v3841
      %v3963 = vpop.f32.mrb[0].mxu0
      %v3964 = vadd.f32 0.0, %v3963
      %v3965 = vpop.f32.mrb[0].mxu0
      %v3966 = vpop.f32.mrb[0].mxu0
      %v3967 = vadd.f32 0.0, %v3966
      %v3968 = vpop.f32.mrb[0].mxu0
      %3969 = vmatprep.mubr.bf16.mxu0 0
      %3970 = vmatmul.mubr.bf16.gmra.mrb[0].mxu0 %v3850
      %v3971 = vpop.f32.mrb[0].mxu0
      %v3972 = vadd.f32 0.0, %v3971
      %v3973 = vpop.f32.mrb[0].mxu0
      %v3974 = vpop.f32.mrb[0].mxu0
      %v3975 = vadd.f32 0.0, %v3974
      %v3976 = vpop.f32.mrb[0].mxu0
      %3977 = vmatprep.mubr.bf16.mxu0 0
      %3978 = vmatmul.mubr.bf16.gmra.mrb[0].mxu0 %v3859
      %v3979 = vpop.f32.mrb[0].mxu0
      %v3980 = vadd.f32 0.0, %v3979
      %v3981 = vpop.f32.mrb[0].mxu0
      %v3982 = vpop.f32.mrb[0].mxu0
      %v3983 = vadd.f32 0.0, %v3982
      %v3984 = vpop.f32.mrb[0].mxu0
      %3985 = vdwg.mxu0
      %v3986 = vadd.f32 %v3741, %v3948
      %v3987 = vadd.f32 %v3742, %v3951
      %v3988 = vadd.f32 %v3743, %v3956
      %v3989 = vadd.f32 %v3744, %v3959
      %v3990 = vadd.f32 %v3745, %v3964
      %v3991 = vadd.f32 %v3746, %v3967
      %v3992 = vadd.f32 %v3747, %v3972
      %v3993 = vadd.f32 %v3748, %v3975
      %v3994 = vadd.f32 %v3749, %v3980
      %v3995 = vadd.f32 %v3750, %v3983
      %v3996 = vld [vmem:[#allocation3 + $0xc] sm:$0x8]
      %s3997 = scalar_lea.vmem %s3, 448
      %v3998 = vld [vmem:[%s3997] sm:$0xf]
      %v3999 = vld [vmem:[%s3997 + $0x4] sm:$0xf]
      %v4000 = vld [vmem:[%s3997 + $0x8] sm:$0xf]
      %v4001 = vld [vmem:[%s3997 + $0xc] sm:$0xf]
      %v4002 = vld [vmem:[%s3997 + $0x10] sm:$0xf]
      %v4003 = vld [vmem:[%s3997 + $0x14] sm:$0xf]
      %v4004 = vld [vmem:[%s3997 + $0x18] sm:$0xf]
      %v4005 = vld [vmem:[%s3997 + $0x1c] sm:$0xf]
      %v4006 = vld [vmem:[%s3997 + $0x20] sm:$0xf]
      %v4007 = vld [vmem:[%s3997 + $0x24] sm:$0xf]
      %v4008 = vld [vmem:[%s3997 + $0x28] sm:$0xf]
      %v4009 = vld [vmem:[%s3997 + $0x2c] sm:$0xf]
      %v4010 = vld [vmem:[%s3997 + $0x30] sm:$0xf]
      %v4011 = vld [vmem:[%s3997 + $0x34] sm:$0xf]
      %v4012 = vld [vmem:[%s3997 + $0x38] sm:$0xf]
      %v4013 = vld [vmem:[%s3997 + $0x3c] sm:$0xf]
      %v4015 = vunpack.c.l.b16 %v3996
      %v4016 = vpack.c.b16 %v3791, %v4015
      %v4017 = vrot.slane %v4016, 3
      %v4018 = vrot.slane %v3802, 3
      %v4019 = vsel %vm2014, %v4017, %v4018
      %v4020 = vrot.slane %v3803, 3
      %v4021 = vsel %vm2014, %v4018, %v4020
      %v4022 = vrot.slane %v3804, 3
      %v4023 = vsel %vm2014, %v4020, %v4022
      %v4024 = vrot.slane %v3805, 3
      %v4025 = vsel %vm2014, %v4022, %v4024
      %v4026 = vrot.slane %v3806, 3
      %v4027 = vsel %vm2014, %v4024, %v4026
      %v4049 = vunpack.c.l.b16 %v3998
      %v4050 = vunpack.c.l.b16 %v3999
      %v4051 = vunpack.c.l.b16 %v4000
      %v4052 = vunpack.c.l.b16 %v4001
      %v4053 = vunpack.c.l.b16 %v4002
      %v4054 = vunpack.c.l.b16 %v4003
      %v4055 = vunpack.c.l.b16 %v4004
      %v4056 = vunpack.c.l.b16 %v4005
      %v4057 = vunpack.c.l.b16 %v4006
      %v4058 = vunpack.c.l.b16 %v4007
      %v4059 = vunpack.c.l.b16 %v4008
      %v4060 = vunpack.c.l.b16 %v4009
      %v4061 = vunpack.c.l.b16 %v4010
      %v4062 = vunpack.c.l.b16 %v4011
      %v4063 = vunpack.c.l.b16 %v4012
      %v4064 = vunpack.c.l.b16 %v4013
      %v4065 = vpack.c.b16 %v4050, %v4049
      %v4066 = vpack.c.b16 %v4052, %v4051
      %v4067 = vpack.c.b16 %v4054, %v4053
      %v4068 = vpack.c.b16 %v4056, %v4055
      %v4069 = vpack.c.b16 %v4058, %v4057
      %v4070 = vpack.c.b16 %v4060, %v4059
      %v4071 = vpack.c.b16 %v4062, %v4061
      %v4072 = vpack.c.b16 %v4064, %v4063
      %4081 = vmatprep.subr.bf16.mxu0 0
      %4082 = vmatpush1.bf16.msra.mxu0 %v4065
      %4083 = vmatprep.subr.bf16.mxu0 0
      %4084 = vmatpush1.bf16.msra.mxu0 %v4066
      %4085 = vmatprep.subr.bf16.mxu0 0
      %4086 = vmatpush1.bf16.msra.mxu0 %v4067
      %4087 = vmatprep.subr.bf16.mxu0 0
      %4088 = vmatpush1.bf16.msra.mxu0 %v4068
      %4089 = vmatprep.subr.bf16.mxu0 0
      %4090 = vmatpush1.bf16.msra.mxu0 %v4069
      %4091 = vmatprep.subr.bf16.mxu0 0
      %4092 = vmatpush1.bf16.msra.mxu0 %v4070
      %4093 = vmatprep.subr.bf16.mxu0 0
      %4094 = vmatpush1.bf16.msra.mxu0 %v4071
      %4095 = vmatprep.subr.bf16.mxu0 0
      %4096 = vmatpush1.bf16.msra.mxu0 %v4072
      %4097 = vmatprep.subr.bf16.mxu0 0
      %4098 = vmatpush1.bf16.msra.mxu0 0
      %4099 = vmatprep.subr.bf16.mxu0 0
      %4100 = vmatpush1.bf16.msra.mxu0 0
      %4101 = vmatprep.subr.bf16.mxu0 0
      %4102 = vmatpush1.bf16.msra.mxu0 0
      %4103 = vmatprep.subr.bf16.mxu0 0
      %4104 = vmatpush1.bf16.msra.mxu0 0
      %4105 = vmatprep.subr.bf16.mxu0 0
      %4106 = vmatpush1.bf16.msra.mxu0 0
      %4107 = vmatprep.subr.bf16.mxu0 0
      %4108 = vmatpush1.bf16.msra.mxu0 0
      %4109 = vmatprep.subr.bf16.mxu0 0
      %4110 = vmatpush1.bf16.msra.mxu0 0
      %4111 = vmatprep.subr.bf16.mxu0 0
      %4112 = vmatpush1.bf16.msra.mxu0 0
      %4113 = vmatprep.mubr.bf16.mxu0 0
      %4114 = vmatmul.mubr.bf16.gmra.mrb[0].mxu0 %v4019
      %v4115 = vpop.f32.mrb[0].mxu0
      %v4116 = vadd.f32 0.0, %v4115
      %v4117 = vpop.f32.mrb[0].mxu0
      %v4118 = vpop.f32.mrb[0].mxu0
      %v4119 = vadd.f32 0.0, %v4118
      %v4120 = vpop.f32.mrb[0].mxu0
      %4121 = vmatprep.mubr.bf16.mxu0 0
      %4122 = vmatmul.mubr.bf16.gmra.mrb[0].mxu0 %v4021
      %v4123 = vpop.f32.mrb[0].mxu0
      %v4124 = vadd.f32 0.0, %v4123
      %v4125 = vpop.f32.mrb[0].mxu0
      %v4126 = vpop.f32.mrb[0].mxu0
      %v4127 = vadd.f32 0.0, %v4126
      %v4128 = vpop.f32.mrb[0].mxu0
      %4129 = vmatprep.mubr.bf16.mxu0 0
      %4130 = vmatmul.mubr.bf16.gmra.mrb[0].mxu0 %v4023
      %v4131 = vpop.f32.mrb[0].mxu0
      %v4132 = vadd.f32 0.0, %v4131
      %v4133 = vpop.f32.mrb[0].mxu0
      %v4134 = vpop.f32.mrb[0].mxu0
      %v4135 = vadd.f32 0.0, %v4134
      %v4136 = vpop.f32.mrb[0].mxu0
      %4137 = vmatprep.mubr.bf16.mxu0 0
      %4138 = vmatmul.mubr.bf16.gmra.mrb[0].mxu0 %v4025
      %v4139 = vpop.f32.mrb[0].mxu0
      %v4140 = vadd.f32 0.0, %v4139
      %v4141 = vpop.f32.mrb[0].mxu0
      %v4142 = vpop.f32.mrb[0].mxu0
      %v4143 = vadd.f32 0.0, %v4142
      %v4144 = vpop.f32.mrb[0].mxu0
      %4145 = vmatprep.mubr.bf16.mxu0 0
      %4146 = vmatmul.mubr.bf16.gmra.mrb[0].mxu0 %v4027
      %v4147 = vpop.f32.mrb[0].mxu0
      %v4148 = vadd.f32 0.0, %v4147
      %v4149 = vpop.f32.mrb[0].mxu0
      %v4150 = vpop.f32.mrb[0].mxu0
      %v4151 = vadd.f32 0.0, %v4150
      %v4152 = vpop.f32.mrb[0].mxu0
      %4153 = vdwg.mxu0
      %v4154 = vadd.f32 %v3986, %v4116
      %v4155 = vadd.f32 %v3987, %v4119
      %v4156 = vadd.f32 %v3988, %v4124
      %v4157 = vadd.f32 %v3989, %v4127
      %v4158 = vadd.f32 %v3990, %v4132
      %v4159 = vadd.f32 %v3991, %v4135
      %v4160 = vadd.f32 %v3992, %v4140
      %v4161 = vadd.f32 %v3993, %v4143
      %v4162 = vadd.f32 %v3994, %v4148
      %v4163 = vadd.f32 %v3995, %v4151
      %v4164 = vld [vmem:[#allocation3 + $0x34] sm:$0xf]
      %s4165 = scalar_lea.vmem %s3, 512
      %v4166 = vld [vmem:[%s4165] sm:$0xf]
      %v4167 = vld [vmem:[%s4165 + $0x4] sm:$0xf]
      %v4168 = vld [vmem:[%s4165 + $0x8] sm:$0xf]
      %v4169 = vld [vmem:[%s4165 + $0xc] sm:$0xf]
      %v4170 = vld [vmem:[%s4165 + $0x10] sm:$0xf]
      %v4171 = vld [vmem:[%s4165 + $0x14] sm:$0xf]
      %v4172 = vld [vmem:[%s4165 + $0x18] sm:$0xf]
      %v4173 = vld [vmem:[%s4165 + $0x1c] sm:$0xf]
      %v4174 = vld [vmem:[%s4165 + $0x20] sm:$0xf]
      %v4175 = vld [vmem:[%s4165 + $0x24] sm:$0xf]
      %v4176 = vld [vmem:[%s4165 + $0x28] sm:$0xf]
      %v4177 = vld [vmem:[%s4165 + $0x2c] sm:$0xf]
      %v4178 = vld [vmem:[%s4165 + $0x30] sm:$0xf]
      %v4179 = vld [vmem:[%s4165 + $0x34] sm:$0xf]
      %v4180 = vld [vmem:[%s4165 + $0x38] sm:$0xf]
      %v4181 = vld [vmem:[%s4165 + $0x3c] sm:$0xf]
      %v4183 = vunpack.c.l.b16 %v4164
      %v4184 = vpack.c.b16 %v4183, %v4183
      %v4186 = vshrl.u32 %v4016, 16
      %v4188 = vrot.slane %v4186, 3
      %v4189 = vshll.u32 %v4016, 16
      %v4191 = vrot.slane %v4189, 4
      %v4192 = vor.u32 %v4188, %v4191
      %v4193 = vrot.slane %v3816, 3
      %v4194 = vrot.slane %v3819, 4
      %v4195 = vor.u32 %v4193, %v4194
      %v4196 = vsel %vm2183, %v4192, %v4195
      %v4197 = vrot.slane %v3825, 3
      %v4198 = vrot.slane %v3828, 4
      %v4199 = vor.u32 %v4197, %v4198
      %v4200 = vsel %vm2183, %v4195, %v4199
      %v4201 = vrot.slane %v3834, 3
      %v4202 = vrot.slane %v3837, 4
      %v4203 = vor.u32 %v4201, %v4202
      %v4204 = vsel %vm2183, %v4199, %v4203
      %v4205 = vrot.slane %v3843, 3
      %v4206 = vrot.slane %v3846, 4
      %v4207 = vor.u32 %v4205, %v4206
      %v4208 = vsel %vm2183, %v4203, %v4207
      %v4210 = vshrl.u32 %v4184, 16
      %v4212 = vrot.slane %v4210, 3
      %v4213 = vshll.u32 %v4184, 16
      %v4215 = vrot.slane %v4213, 4
      %v4216 = vor.u32 %v4212, %v4215
      %v4217 = vsel %vm2183, %v4207, %v4216
      %v4239 = vunpack.c.l.b16 %v4166
      %v4240 = vunpack.c.l.b16 %v4167
      %v4241 = vunpack.c.l.b16 %v4168
      %v4242 = vunpack.c.l.b16 %v4169
      %v4243 = vunpack.c.l.b16 %v4170
      %v4244 = vunpack.c.l.b16 %v4171
      %v4245 = vunpack.c.l.b16 %v4172
      %v4246 = vunpack.c.l.b16 %v4173
      %v4247 = vunpack.c.l.b16 %v4174
      %v4248 = vunpack.c.l.b16 %v4175
      %v4249 = vunpack.c.l.b16 %v4176
      %v4250 = vunpack.c.l.b16 %v4177
      %v4251 = vunpack.c.l.b16 %v4178
      %v4252 = vunpack.c.l.b16 %v4179
      %v4253 = vunpack.c.l.b16 %v4180
      %v4254 = vunpack.c.l.b16 %v4181
      %v4255 = vpack.c.b16 %v4240, %v4239
      %v4256 = vpack.c.b16 %v4242, %v4241
      %v4257 = vpack.c.b16 %v4244, %v4243
      %v4258 = vpack.c.b16 %v4246, %v4245
      %v4259 = vpack.c.b16 %v4248, %v4247
      %v4260 = vpack.c.b16 %v4250, %v4249
      %v4261 = vpack.c.b16 %v4252, %v4251
      %v4262 = vpack.c.b16 %v4254, %v4253
      %4271 = vmatprep.subr.bf16.mxu0 0
      %4272 = vmatpush1.bf16.msra.mxu0 %v4255
      %4273 = vmatprep.subr.bf16.mxu0 0
      %4274 = vmatpush1.bf16.msra.mxu0 %v4256
      %4275 = vmatprep.subr.bf16.mxu0 0
      %4276 = vmatpush1.bf16.msra.mxu0 %v4257
      %4277 = vmatprep.subr.bf16.mxu0 0
      %4278 = vmatpush1.bf16.msra.mxu0 %v4258
      %4279 = vmatprep.subr.bf16.mxu0 0
      %4280 = vmatpush1.bf16.msra.mxu0 %v4259
      %4281 = vmatprep.subr.bf16.mxu0 0
      %4282 = vmatpush1.bf16.msra.mxu0 %v4260
      %4283 = vmatprep.subr.bf16.mxu0 0
      %4284 = vmatpush1.bf16.msra.mxu0 %v4261
      %4285 = vmatprep.subr.bf16.mxu0 0
      %4286 = vmatpush1.bf16.msra.mxu0 %v4262
      %4287 = vmatprep.subr.bf16.mxu0 0
      %4288 = vmatpush1.bf16.msra.mxu0 0
      %4289 = vmatprep.subr.bf16.mxu0 0
      %4290 = vmatpush1.bf16.msra.mxu0 0
      %4291 = vmatprep.subr.bf16.mxu0 0
      %4292 = vmatpush1.bf16.msra.mxu0 0
      %4293 = vmatprep.subr.bf16.mxu0 0
      %4294 = vmatpush1.bf16.msra.mxu0 0
      %4295 = vmatprep.subr.bf16.mxu0 0
      %4296 = vmatpush1.bf16.msra.mxu0 0
      %4297 = vmatprep.subr.bf16.mxu0 0
      %4298 = vmatpush1.bf16.msra.mxu0 0
      %4299 = vmatprep.subr.bf16.mxu0 0
      %4300 = vmatpush1.bf16.msra.mxu0 0
      %4301 = vmatprep.subr.bf16.mxu0 0
      %4302 = vmatpush1.bf16.msra.mxu0 0
      %4303 = vmatprep.mubr.bf16.mxu0 0
      %4304 = vmatmul.mubr.bf16.gmra.mrb[0].mxu0 %v4196
      %v4305 = vpop.f32.mrb[0].mxu0
      %v4306 = vadd.f32 0.0, %v4305
      %v4307 = vpop.f32.mrb[0].mxu0
      %v4308 = vpop.f32.mrb[0].mxu0
      %v4309 = vadd.f32 0.0, %v4308
      %v4310 = vpop.f32.mrb[0].mxu0
      %4311 = vmatprep.mubr.bf16.mxu0 0
      %4312 = vmatmul.mubr.bf16.gmra.mrb[0].mxu0 %v4200
      %v4313 = vpop.f32.mrb[0].mxu0
      %v4314 = vadd.f32 0.0, %v4313
      %v4315 = vpop.f32.mrb[0].mxu0
      %v4316 = vpop.f32.mrb[0].mxu0
      %v4317 = vadd.f32 0.0, %v4316
      %v4318 = vpop.f32.mrb[0].mxu0
      %4319 = vmatprep.mubr.bf16.mxu0 0
      %4320 = vmatmul.mubr.bf16.gmra.mrb[0].mxu0 %v4204
      %v4321 = vpop.f32.mrb[0].mxu0
      %v4322 = vadd.f32 0.0, %v4321
      %v4323 = vpop.f32.mrb[0].mxu0
      %v4324 = vpop.f32.mrb[0].mxu0
      %v4325 = vadd.f32 0.0, %v4324
      %v4326 = vpop.f32.mrb[0].mxu0
      %4327 = vmatprep.mubr.bf16.mxu0 0
      %4328 = vmatmul.mubr.bf16.gmra.mrb[0].mxu0 %v4208
      %v4329 = vpop.f32.mrb[0].mxu0
      %v4330 = vadd.f32 0.0, %v4329
      %v4331 = vpop.f32.mrb[0].mxu0
      %v4332 = vpop.f32.mrb[0].mxu0
      %v4333 = vadd.f32 0.0, %v4332
      %v4334 = vpop.f32.mrb[0].mxu0
      %4335 = vmatprep.mubr.bf16.mxu0 0
      %4336 = vmatmul.mubr.bf16.gmra.mrb[0].mxu0 %v4217
      %v4337 = vpop.f32.mrb[0].mxu0
      %v4338 = vadd.f32 0.0, %v4337
      %v4339 = vpop.f32.mrb[0].mxu0
      %v4340 = vpop.f32.mrb[0].mxu0
      %v4341 = vadd.f32 0.0, %v4340
      %v4342 = vpop.f32.mrb[0].mxu0
      %4343 = vdwg.mxu0
      %v4344 = vadd.f32 %v4154, %v4306
      %v4345 = vadd.f32 %v4155, %v4309
      %v4346 = vadd.f32 %v4156, %v4314
      %v4347 = vadd.f32 %v4157, %v4317
      %v4348 = vadd.f32 %v4158, %v4322
      %v4349 = vadd.f32 %v4159, %v4325
      %v4350 = vadd.f32 %v4160, %v4330
      %v4351 = vadd.f32 %v4161, %v4333
      %v4352 = vadd.f32 %v4162, %v4338
      %v4353 = vadd.f32 %v4163, %v4341
      %v4354 = vld [vmem:[%s4] sm:$0x1]
      %v4356 = vlaneseq
      %v4357 = vshrl.u32 %v4356, 7
      %v4358 = vsub.s32 0, %v4357
      %v4359 = vrot.slane %v4354, %v4358
      %v4361 = vadd.f32 %v4344, %v4359
      %v4362 = vadd.f32 %v4345, %v4359
      %v4363 = vadd.f32 %v4346, %v4359
      %v4364 = vadd.f32 %v4347, %v4359
      %v4365 = vadd.f32 %v4348, %v4359
      %v4366 = vadd.f32 %v4349, %v4359
      %v4367 = vadd.f32 %v4350, %v4359
      %v4368 = vadd.f32 %v4351, %v4359
      %v4369 = vadd.f32 %v4352, %v4359
      %v4370 = vadd.f32 %v4353, %v4359
      %vm4371 = vcmp.ge.f32.partialorder %v4361, 0.0
      %vm4372 = vcmp.ge.f32.partialorder %v4362, 0.0
      %vm4373 = vcmp.ge.f32.partialorder %v4363, 0.0
      %vm4374 = vcmp.ge.f32.partialorder %v4364, 0.0
      %vm4375 = vcmp.ge.f32.partialorder %v4365, 0.0
      %vm4376 = vcmp.ge.f32.partialorder %v4366, 0.0
      %vm4377 = vcmp.ge.f32.partialorder %v4367, 0.0
      %vm4378 = vcmp.ge.f32.partialorder %v4368, 0.0
      %vm4379 = vcmp.ge.f32.partialorder %v4369, 0.0
      %vm4380 = vcmp.ge.f32.partialorder %v4370, 0.0
      %v4381 = vmul.f32 %v4361, 0.01
      %v4382 = vmul.f32 %v4362, 0.01
      %v4383 = vmul.f32 %v4363, 0.01
      %v4384 = vmul.f32 %v4364, 0.01
      %v4385 = vmul.f32 %v4365, 0.01
      %v4386 = vmul.f32 %v4366, 0.01
      %v4387 = vmul.f32 %v4367, 0.01
      %v4388 = vmul.f32 %v4368, 0.01
      %v4389 = vmul.f32 %v4369, 0.01
      %v4390 = vmul.f32 %v4370, 0.01
      %v4391 = vsel %vm4371, %v4361, %v4381
      %v4392 = vsel %vm4372, %v4362, %v4382
      %v4393 = vsel %vm4373, %v4363, %v4383
      %v4394 = vsel %vm4374, %v4364, %v4384
      %v4395 = vsel %vm4375, %v4365, %v4385
      %v4396 = vsel %vm4376, %v4366, %v4386
      %v4397 = vsel %vm4377, %v4367, %v4387
      %v4398 = vsel %vm4378, %v4368, %v4388
      %v4399 = vsel %vm4379, %v4369, %v4389
      %v4400 = vsel %vm4380, %v4370, %v4390
      %v4401 = vsel %vm471, %v4391, 0.0
      %v4402 = vsel %vm472, %v4392, 0.0
      %v4403 = vsel %vm473, %v4393, 0.0
      %v4404 = vsel %vm474, %v4394, 0.0
      %v4405 = vsel %vm475, %v4395, 0.0
      %v4406 = vsel %vm476, %v4396, 0.0
      %v4407 = vsel %vm477, %v4397, 0.0
      %v4408 = vsel %vm478, %v4398, 0.0
      %v4409 = vsel %vm479, %v4399, 0.0
      %v4410 = vsel %vm480, %v4400, 0.0
      %v4411 = vadd.f32 %v4401, %v4402
      %v4412 = vadd.f32 %v4411, %v4403
      %v4413 = vadd.f32 %v4412, %v4404
      %v4414 = vadd.f32 %v4413, %v4405
      %v4415 = vadd.f32 %v4414, %v4406
      %v4416 = vadd.f32 %v4415, %v4407
      %v4417 = vadd.f32 %v4416, %v4408
      %v4418 = vadd.f32 %v4417, %v4409
      %v4419 = vadd.f32 %v4418, %v4410
      %v4420 = vrot.slane %v4419, 4
      %v4421 = vadd.f32 %v4419, %v4420
      %v4422 = vrot.slane %v4421, 2
      %v4423 = vadd.f32 %v4421, %v4422
      %v4424 = vrot.slane %v4423, 1
      %v4425 = vadd.f32 %v4423, %v4424
      %v4426 = vmul.f32 %v4425, 0.015625
      %v4427 = vsub.f32 %v4391, %v4426
      %v4428 = vsub.f32 %v4392, %v4426
      %v4429 = vsub.f32 %v4393, %v4426
      %v4430 = vsub.f32 %v4394, %v4426
      %v4431 = vsub.f32 %v4395, %v4426
      %v4432 = vsub.f32 %v4396, %v4426
      %v4433 = vsub.f32 %v4397, %v4426
      %v4434 = vsub.f32 %v4398, %v4426
      %v4435 = vsub.f32 %v4399, %v4426
      %v4436 = vsub.f32 %v4400, %v4426
      %v4437 = vmul.f32 %v4427, %v4427
      %v4438 = vmul.f32 %v4428, %v4428
      %v4439 = vmul.f32 %v4429, %v4429
      %v4440 = vmul.f32 %v4430, %v4430
      %v4441 = vmul.f32 %v4431, %v4431
      %v4442 = vmul.f32 %v4432, %v4432
      %v4443 = vmul.f32 %v4433, %v4433
      %v4444 = vmul.f32 %v4434, %v4434
      %v4445 = vmul.f32 %v4435, %v4435
      %v4446 = vmul.f32 %v4436, %v4436
      %v4447 = vsel %vm471, %v4437, 0.0
      %v4448 = vsel %vm472, %v4438, 0.0
      %v4449 = vsel %vm473, %v4439, 0.0
      %v4450 = vsel %vm474, %v4440, 0.0
      %v4451 = vsel %vm475, %v4441, 0.0
      %v4452 = vsel %vm476, %v4442, 0.0
      %v4453 = vsel %vm477, %v4443, 0.0
      %v4454 = vsel %vm478, %v4444, 0.0
      %v4455 = vsel %vm479, %v4445, 0.0
      %v4456 = vsel %vm480, %v4446, 0.0
      %v4457 = vadd.f32 %v4447, %v4448
      %v4458 = vadd.f32 %v4457, %v4449
      %v4459 = vadd.f32 %v4458, %v4450
      %v4460 = vadd.f32 %v4459, %v4451
      %v4461 = vadd.f32 %v4460, %v4452
      %v4462 = vadd.f32 %v4461, %v4453
      %v4463 = vadd.f32 %v4462, %v4454
      %v4464 = vadd.f32 %v4463, %v4455
      %v4465 = vadd.f32 %v4464, %v4456
      %v4466 = vrot.slane %v4465, 4
      %v4467 = vadd.f32 %v4465, %v4466
      %v4468 = vrot.slane %v4467, 2
      %v4469 = vadd.f32 %v4467, %v4468
      %v4470 = vrot.slane %v4469, 1
      %v4471 = vadd.f32 %v4469, %v4470
      %v4472 = vmul.f32 %v4471, 0.015625
      %v4473 = vadd.f32 %v4472, 1e-05
      %v4474 = vrsqrt.pop %v4473
      %v4475 = vmul.f32 %v4427, %v4474
      %v4476 = vmul.f32 %v4428, %v4474
      %v4477 = vmul.f32 %v4429, %v4474
      %v4478 = vmul.f32 %v4430, %v4474
      %v4479 = vmul.f32 %v4431, %v4474
      %v4480 = vmul.f32 %v4432, %v4474
      %v4481 = vmul.f32 %v4433, %v4474
      %v4482 = vmul.f32 %v4434, %v4474
      %v4483 = vmul.f32 %v4435, %v4474
      %v4484 = vmul.f32 %v4436, %v4474
      %v4485 = vsel %vm471, %v4475, 0.0
      %v4486 = vsel %vm472, %v4476, 0.0
      %v4487 = vsel %vm473, %v4477, 0.0
      %v4488 = vsel %vm474, %v4478, 0.0
      %v4489 = vsel %vm475, %v4479, 0.0
      %v4490 = vsel %vm476, %v4480, 0.0
      %v4491 = vsel %vm477, %v4481, 0.0
      %v4492 = vsel %vm478, %v4482, 0.0
      %v4493 = vsel %vm479, %v4483, 0.0
      %v4494 = vsel %vm480, %v4484, 0.0
      %v4495 = vpack.c.bf16 %v4486, %v4485
      %v4496 = vpack.c.bf16 %v4488, %v4487
      %v4497 = vpack.c.bf16 %v4490, %v4489
      %v4498 = vpack.c.bf16 %v4492, %v4491
      %v4499 = vpack.c.bf16 %v4494, %v4493
      %v4505 = vunpack.c.l.b16 %v4495
      %v4506 = vunpack.c.h.b16 %v4495
      %v4507 = vunpack.c.l.b16 %v4496
      %v4508 = vunpack.c.h.b16 %v4496
      %v4509 = vunpack.c.l.b16 %v4497
      %v4510 = vunpack.c.h.b16 %v4497
      %v4511 = vunpack.c.l.b16 %v4498
      %v4512 = vunpack.c.h.b16 %v4498
      %v4513 = vunpack.c.l.b16 %v4499
      %v4514 = vunpack.c.h.b16 %v4499
      %v4515 = vpack.c.b16 %v4505, %v4505
      %v4516 = vpack.c.b16 %v4506, %v4506
      %v4517 = vpack.c.b16 %v4507, %v4507
      %v4518 = vpack.c.b16 %v4508, %v4508
      %v4519 = vpack.c.b16 %v4509, %v4509
      %v4520 = vpack.c.b16 %v4510, %v4510
      %v4521 = vpack.c.b16 %v4511, %v4511
      %v4522 = vpack.c.b16 %v4512, %v4512
      %v4523 = vpack.c.b16 %v4513, %v4513
      %v4524 = vpack.c.b16 %v4514, %v4514
      %v4525 = vrot.slane %v4515, 6
      %v4526 = vrot.slane %v4525, 4
      %v4527 = vrot.slane %v4516, 6
      %v4528 = vsel %vm515, %v4526, %v4527
      %v4529 = vrot.slane %v4527, 4
      %v4530 = vrot.slane %v4517, 6
      %v4531 = vsel %vm515, %v4529, %v4530
      %v4532 = vrot.slane %v4530, 4
      %v4533 = vrot.slane %v4518, 6
      %v4534 = vsel %vm515, %v4532, %v4533
      %v4535 = vrot.slane %v4533, 4
      %v4536 = vrot.slane %v4519, 6
      %v4537 = vsel %vm515, %v4535, %v4536
      %v4538 = vrot.slane %v4536, 4
      %v4539 = vrot.slane %v4520, 6
      %v4540 = vsel %vm515, %v4538, %v4539
      %v4541 = vrot.slane %v4539, 4
      %v4542 = vrot.slane %v4521, 6
      %v4543 = vsel %vm515, %v4541, %v4542
      %v4544 = vrot.slane %v4542, 4
      %v4545 = vrot.slane %v4522, 6
      %v4546 = vsel %vm515, %v4544, %v4545
      %v4547 = vrot.slane %v4545, 4
      %v4548 = vrot.slane %v4523, 6
      %v4549 = vsel %vm515, %v4547, %v4548
      %v4550 = vrot.slane %v4548, 4
      %v4551 = vrot.slane %v4524, 6
      %v4552 = vsel %vm515, %v4550, %v4551
      %v4553 = vrot.slane %v4551, 4
      %4565 = vst [vmem:[#allocation2 + $0x8] sm:$0xc] %v4525
      %4566 = vst [vmem:[#allocation2 + $0xc] sm:$0xf] %v4528
      %4567 = vst [vmem:[#allocation2 + $0x10] sm:$0xf] %v4531
      %4568 = vst [vmem:[#allocation2 + $0x14] sm:$0xf] %v4534
      %4569 = vst [vmem:[#allocation2 + $0x18] sm:$0xf] %v4537
      %4570 = vst [vmem:[#allocation2 + $0x1c] sm:$0xf] %v4540
      %4571 = vst [vmem:[#allocation2 + $0x20] sm:$0xf] %v4543
      %4572 = vst [vmem:[#allocation2 + $0x24] sm:$0xf] %v4546
      %4573 = vst [vmem:[#allocation2 + $0x28] sm:$0xf] %v4549
      %4574 = vst [vmem:[#allocation2 + $0x2c] sm:$0xf] %v4552
      %4575 = vst [vmem:[#allocation2 + $0x30] sm:$0x3] %v4553
      %v4576 = vld [vmem:[#allocation2 + $0x4] sm:$0xf]
      %v4577 = vld [vmem:[#allocation2 + $0x8] sm:$0xf]
      %v4578 = vld [vmem:[#allocation2 + $0xc] sm:$0xf]
      %v4579 = vld [vmem:[#allocation2 + $0x10] sm:$0xf]
      %v4580 = vld [vmem:[#allocation2 + $0x14] sm:$0xf]
      %v4581 = vld [vmem:[#allocation2 + $0x18] sm:$0xf]
      %v4582 = vld [vmem:[#allocation2 + $0x1c] sm:$0xf]
      %v4583 = vld [vmem:[#allocation2 + $0x20] sm:$0xf]
      %v4584 = vld [vmem:[#allocation2 + $0x24] sm:$0xf]
      %v4585 = vld [vmem:[#allocation2 + $0x28] sm:$0xf]
      %v4586 = vld [vmem:[#allocation2 + $0x2c] sm:$0x1]
      %v4587 = vld [vmem:[%s5] sm:$0xf]
      %v4588 = vld [vmem:[%s5 + $0x4] sm:$0xf]
      %v4589 = vld [vmem:[%s5 + $0x8] sm:$0xf]
      %v4590 = vld [vmem:[%s5 + $0xc] sm:$0xf]
      %v4591 = vld [vmem:[%s5 + $0x10] sm:$0xf]
      %v4592 = vld [vmem:[%s5 + $0x14] sm:$0xf]
      %v4593 = vld [vmem:[%s5 + $0x18] sm:$0xf]
      %v4594 = vld [vmem:[%s5 + $0x1c] sm:$0xf]
      %v4595 = vld [vmem:[%s5 + $0x20] sm:$0xf]
      %v4596 = vld [vmem:[%s5 + $0x24] sm:$0xf]
      %v4597 = vld [vmem:[%s5 + $0x28] sm:$0xf]
      %v4598 = vld [vmem:[%s5 + $0x2c] sm:$0xf]
      %v4599 = vld [vmem:[%s5 + $0x30] sm:$0xf]
      %v4600 = vld [vmem:[%s5 + $0x34] sm:$0xf]
      %v4601 = vld [vmem:[%s5 + $0x38] sm:$0xf]
      %v4602 = vld [vmem:[%s5 + $0x3c] sm:$0xf]
      %v4603 = vld [vmem:[#allocation2 + $0x4] sm:$0xe]
      %s4604 = scalar_lea.vmem %s5, 64
      %v4605 = vld [vmem:[%s4604] sm:$0xf]
      %v4606 = vld [vmem:[%s4604 + $0x4] sm:$0xf]
      %v4607 = vld [vmem:[%s4604 + $0x8] sm:$0xf]
      %v4608 = vld [vmem:[%s4604 + $0xc] sm:$0xf]
      %v4609 = vld [vmem:[%s4604 + $0x10] sm:$0xf]
      %v4610 = vld [vmem:[%s4604 + $0x14] sm:$0xf]
      %v4611 = vld [vmem:[%s4604 + $0x18] sm:$0xf]
      %v4612 = vld [vmem:[%s4604 + $0x1c] sm:$0xf]
      %v4613 = vld [vmem:[%s4604 + $0x20] sm:$0xf]
      %v4614 = vld [vmem:[%s4604 + $0x24] sm:$0xf]
      %v4615 = vld [vmem:[%s4604 + $0x28] sm:$0xf]
      %v4616 = vld [vmem:[%s4604 + $0x2c] sm:$0xf]
      %v4617 = vld [vmem:[%s4604 + $0x30] sm:$0xf]
      %v4618 = vld [vmem:[%s4604 + $0x34] sm:$0xf]
      %v4619 = vld [vmem:[%s4604 + $0x38] sm:$0xf]
      %v4620 = vld [vmem:[%s4604 + $0x3c] sm:$0xf]
      %v4632 = vunpack.c.l.b16 %v4603
      %v4633 = vunpack.c.l.b16 %v4577
      %v4634 = vunpack.c.l.b16 %v4578
      %v4635 = vunpack.c.l.b16 %v4579
      %v4636 = vunpack.c.l.b16 %v4580
      %v4637 = vunpack.c.l.b16 %v4581
      %v4638 = vunpack.c.l.b16 %v4582
      %v4639 = vunpack.c.l.b16 %v4583
      %v4640 = vunpack.c.l.b16 %v4584
      %v4641 = vunpack.c.l.b16 %v4585
      %v4642 = vunpack.c.l.b16 %v4586
      %v4643 = vpack.c.b16 %v4633, %v4632
      %v4644 = vpack.c.b16 %v4635, %v4634
      %v4645 = vpack.c.b16 %v4637, %v4636
      %v4646 = vpack.c.b16 %v4639, %v4638
      %v4647 = vpack.c.b16 %v4641, %v4640
      %v4648 = vpack.c.b16 %v4642, %v4642
      %v4649 = vrot.slane %v4643, 1
      %v4650 = vrot.slane %v4644, 1
      %v4651 = vsel %vm640, %v4649, %v4650
      %v4652 = vrot.slane %v4645, 1
      %v4653 = vsel %vm640, %v4650, %v4652
      %v4654 = vrot.slane %v4646, 1
      %v4655 = vsel %vm640, %v4652, %v4654
      %v4656 = vrot.slane %v4647, 1
      %v4657 = vsel %vm640, %v4654, %v4656
      %v4658 = vrot.slane %v4648, 1
      %v4659 = vsel %vm640, %v4656, %v4658
      %v4681 = vunpack.c.l.b16 %v4605
      %v4682 = vunpack.c.l.b16 %v4606
      %v4683 = vunpack.c.l.b16 %v4607
      %v4684 = vunpack.c.l.b16 %v4608
      %v4685 = vunpack.c.l.b16 %v4609
      %v4686 = vunpack.c.l.b16 %v4610
      %v4687 = vunpack.c.l.b16 %v4611
      %v4688 = vunpack.c.l.b16 %v4612
      %v4689 = vunpack.c.l.b16 %v4613
      %v4690 = vunpack.c.l.b16 %v4614
      %v4691 = vunpack.c.l.b16 %v4615
      %v4692 = vunpack.c.l.b16 %v4616
      %v4693 = vunpack.c.l.b16 %v4617
      %v4694 = vunpack.c.l.b16 %v4618
      %v4695 = vunpack.c.l.b16 %v4619
      %v4696 = vunpack.c.l.b16 %v4620
      %v4697 = vpack.c.b16 %v4682, %v4681
      %v4698 = vpack.c.b16 %v4684, %v4683
      %v4699 = vpack.c.b16 %v4686, %v4685
      %v4700 = vpack.c.b16 %v4688, %v4687
      %v4701 = vpack.c.b16 %v4690, %v4689
      %v4702 = vpack.c.b16 %v4692, %v4691
      %v4703 = vpack.c.b16 %v4694, %v4693
      %v4704 = vpack.c.b16 %v4696, %v4695
      %4713 = vmatprep.subr.bf16.mxu0 0
      %4714 = vmatpush1.bf16.msra.mxu0 %v4697
      %4715 = vmatprep.subr.bf16.mxu0 0
      %4716 = vmatpush1.bf16.msra.mxu0 %v4698
      %4717 = vmatprep.subr.bf16.mxu0 0
      %4718 = vmatpush1.bf16.msra.mxu0 %v4699
      %4719 = vmatprep.subr.bf16.mxu0 0
      %4720 = vmatpush1.bf16.msra.mxu0 %v4700
      %4721 = vmatprep.subr.bf16.mxu0 0
      %4722 = vmatpush1.bf16.msra.mxu0 %v4701
      %4723 = vmatprep.subr.bf16.mxu0 0
      %4724 = vmatpush1.bf16.msra.mxu0 %v4702
      %4725 = vmatprep.subr.bf16.mxu0 0
      %4726 = vmatpush1.bf16.msra.mxu0 %v4703
      %4727 = vmatprep.subr.bf16.mxu0 0
      %4728 = vmatpush1.bf16.msra.mxu0 %v4704
      %4729 = vmatprep.subr.bf16.mxu0 0
      %4730 = vmatpush1.bf16.msra.mxu0 0
      %4731 = vmatprep.subr.bf16.mxu0 0
      %4732 = vmatpush1.bf16.msra.mxu0 0
      %4733 = vmatprep.subr.bf16.mxu0 0
      %4734 = vmatpush1.bf16.msra.mxu0 0
      %4735 = vmatprep.subr.bf16.mxu0 0
      %4736 = vmatpush1.bf16.msra.mxu0 0
      %4737 = vmatprep.subr.bf16.mxu0 0
      %4738 = vmatpush1.bf16.msra.mxu0 0
      %4739 = vmatprep.subr.bf16.mxu0 0
      %4740 = vmatpush1.bf16.msra.mxu0 0
      %4741 = vmatprep.subr.bf16.mxu0 0
      %4742 = vmatpush1.bf16.msra.mxu0 0
      %4743 = vmatprep.subr.bf16.mxu0 0
      %4744 = vmatpush1.bf16.msra.mxu0 0
      %4745 = vmatprep.mubr.bf16.mxu0 0
      %4746 = vmatmul.mubr.bf16.gmra.mrb[0].mxu0 %v4651
      %v4747 = vpop.f32.mrb[0].mxu0
      %v4748 = vadd.f32 0.0, %v4747
      %v4749 = vpop.f32.mrb[0].mxu0
      %v4750 = vpop.f32.mrb[0].mxu0
      %v4751 = vadd.f32 0.0, %v4750
      %v4752 = vpop.f32.mrb[0].mxu0
      %4753 = vmatprep.mubr.bf16.mxu0 0
      %4754 = vmatmul.mubr.bf16.gmra.mrb[0].mxu0 %v4653
      %v4755 = vpop.f32.mrb[0].mxu0
      %v4756 = vadd.f32 0.0, %v4755
      %v4757 = vpop.f32.mrb[0].mxu0
      %v4758 = vpop.f32.mrb[0].mxu0
      %v4759 = vadd.f32 0.0, %v4758
      %v4760 = vpop.f32.mrb[0].mxu0
      %4761 = vmatprep.mubr.bf16.mxu0 0
      %4762 = vmatmul.mubr.bf16.gmra.mrb[0].mxu0 %v4655
      %v4763 = vpop.f32.mrb[0].mxu0
      %v4764 = vadd.f32 0.0, %v4763
      %v4765 = vpop.f32.mrb[0].mxu0
      %v4766 = vpop.f32.mrb[0].mxu0
      %v4767 = vadd.f32 0.0, %v4766
      %v4768 = vpop.f32.mrb[0].mxu0
      %4769 = vmatprep.mubr.bf16.mxu0 0
      %4770 = vmatmul.mubr.bf16.gmra.mrb[0].mxu0 %v4657
      %v4771 = vpop.f32.mrb[0].mxu0
      %v4772 = vadd.f32 0.0, %v4771
      %v4773 = vpop.f32.mrb[0].mxu0
      %v4774 = vpop.f32.mrb[0].mxu0
      %v4775 = vadd.f32 0.0, %v4774
      %v4776 = vpop.f32.mrb[0].mxu0
      %4777 = vmatprep.mubr.bf16.mxu0 0
      %4778 = vmatmul.mubr.bf16.gmra.mrb[0].mxu0 %v4659
      %v4779 = vpop.f32.mrb[0].mxu0
      %v4780 = vadd.f32 0.0, %v4779
      %v4781 = vpop.f32.mrb[0].mxu0
      %v4782 = vpop.f32.mrb[0].mxu0
      %v4783 = vadd.f32 0.0, %v4782
      %v4784 = vpop.f32.mrb[0].mxu0
      %4785 = vdwg.mxu0
      %v4787 = vunpack.c.l.b16 %v4576
      %v4788 = vpack.c.b16 %v4633, %v4787
      %v4790 = vshrl.u32 %v4788, 16
      %v4792 = vshll.u32 %v4788, 16
      %v4794 = vrot.slane %v4792, 1
      %v4795 = vor.u32 %v4790, %v4794
      %v4797 = vshll.u32 %v4644, 16
      %v4799 = vrot.slane %v4797, 1
      %v4800 = vsel %vm781, %v4795, %v4799
      %v4801 = vshrl.u32 %v4644, 16
      %v4803 = vor.u32 %v4801, %v4799
      %v4805 = vshll.u32 %v4645, 16
      %v4807 = vrot.slane %v4805, 1
      %v4808 = vsel %vm781, %v4803, %v4807
      %v4809 = vshrl.u32 %v4645, 16
      %v4811 = vor.u32 %v4809, %v4807
      %v4813 = vshll.u32 %v4646, 16
      %v4815 = vrot.slane %v4813, 1
      %v4816 = vsel %vm781, %v4811, %v4815
      %v4817 = vshrl.u32 %v4646, 16
      %v4819 = vor.u32 %v4817, %v4815
      %v4821 = vshll.u32 %v4647, 16
      %v4823 = vrot.slane %v4821, 1
      %v4824 = vsel %vm781, %v4819, %v4823
      %v4825 = vshrl.u32 %v4647, 16
      %v4827 = vor.u32 %v4825, %v4823
      %v4829 = vshll.u32 %v4648, 16
      %v4831 = vrot.slane %v4829, 1
      %v4832 = vsel %vm781, %v4827, %v4831
      %v4854 = vunpack.c.l.b16 %v4587
      %v4855 = vunpack.c.l.b16 %v4588
      %v4856 = vunpack.c.l.b16 %v4589
      %v4857 = vunpack.c.l.b16 %v4590
      %v4858 = vunpack.c.l.b16 %v4591
      %v4859 = vunpack.c.l.b16 %v4592
      %v4860 = vunpack.c.l.b16 %v4593
      %v4861 = vunpack.c.l.b16 %v4594
      %v4862 = vunpack.c.l.b16 %v4595
      %v4863 = vunpack.c.l.b16 %v4596
      %v4864 = vunpack.c.l.b16 %v4597
      %v4865 = vunpack.c.l.b16 %v4598
      %v4866 = vunpack.c.l.b16 %v4599
      %v4867 = vunpack.c.l.b16 %v4600
      %v4868 = vunpack.c.l.b16 %v4601
      %v4869 = vunpack.c.l.b16 %v4602
      %v4870 = vpack.c.b16 %v4855, %v4854
      %v4871 = vpack.c.b16 %v4857, %v4856
      %v4872 = vpack.c.b16 %v4859, %v4858
      %v4873 = vpack.c.b16 %v4861, %v4860
      %v4874 = vpack.c.b16 %v4863, %v4862
      %v4875 = vpack.c.b16 %v4865, %v4864
      %v4876 = vpack.c.b16 %v4867, %v4866
      %v4877 = vpack.c.b16 %v4869, %v4868
      %4886 = vmatprep.subr.bf16.mxu0 0
      %4887 = vmatpush1.bf16.msra.mxu0 %v4870
      %4888 = vmatprep.subr.bf16.mxu0 0
      %4889 = vmatpush1.bf16.msra.mxu0 %v4871
      %4890 = vmatprep.subr.bf16.mxu0 0
      %4891 = vmatpush1.bf16.msra.mxu0 %v4872
      %4892 = vmatprep.subr.bf16.mxu0 0
      %4893 = vmatpush1.bf16.msra.mxu0 %v4873
      %4894 = vmatprep.subr.bf16.mxu0 0
      %4895 = vmatpush1.bf16.msra.mxu0 %v4874
      %4896 = vmatprep.subr.bf16.mxu0 0
      %4897 = vmatpush1.bf16.msra.mxu0 %v4875
      %4898 = vmatprep.subr.bf16.mxu0 0
      %4899 = vmatpush1.bf16.msra.mxu0 %v4876
      %4900 = vmatprep.subr.bf16.mxu0 0
      %4901 = vmatpush1.bf16.msra.mxu0 %v4877
      %4902 = vmatprep.subr.bf16.mxu0 0
      %4903 = vmatpush1.bf16.msra.mxu0 0
      %4904 = vmatprep.subr.bf16.mxu0 0
      %4905 = vmatpush1.bf16.msra.mxu0 0
      %4906 = vmatprep.subr.bf16.mxu0 0
      %4907 = vmatpush1.bf16.msra.mxu0 0
      %4908 = vmatprep.subr.bf16.mxu0 0
      %4909 = vmatpush1.bf16.msra.mxu0 0
      %4910 = vmatprep.subr.bf16.mxu0 0
      %4911 = vmatpush1.bf16.msra.mxu0 0
      %4912 = vmatprep.subr.bf16.mxu0 0
      %4913 = vmatpush1.bf16.msra.mxu0 0
      %4914 = vmatprep.subr.bf16.mxu0 0
      %4915 = vmatpush1.bf16.msra.mxu0 0
      %4916 = vmatprep.subr.bf16.mxu0 0
      %4917 = vmatpush1.bf16.msra.mxu0 0
      %4918 = vmatprep.mubr.bf16.mxu0 0
      %4919 = vmatmul.mubr.bf16.gmra.mrb[0].mxu0 %v4800
      %v4920 = vpop.f32.mrb[0].mxu0
      %v4921 = vadd.f32 %v4748, %v4920
      %v4922 = vpop.f32.mrb[0].mxu0
      %v4923 = vpop.f32.mrb[0].mxu0
      %v4924 = vadd.f32 %v4751, %v4923
      %v4925 = vpop.f32.mrb[0].mxu0
      %4926 = vmatprep.mubr.bf16.mxu0 0
      %4927 = vmatmul.mubr.bf16.gmra.mrb[0].mxu0 %v4808
      %v4928 = vpop.f32.mrb[0].mxu0
      %v4929 = vadd.f32 %v4756, %v4928
      %v4930 = vpop.f32.mrb[0].mxu0
      %v4931 = vpop.f32.mrb[0].mxu0
      %v4932 = vadd.f32 %v4759, %v4931
      %v4933 = vpop.f32.mrb[0].mxu0
      %4934 = vmatprep.mubr.bf16.mxu0 0
      %4935 = vmatmul.mubr.bf16.gmra.mrb[0].mxu0 %v4816
      %v4936 = vpop.f32.mrb[0].mxu0
      %v4937 = vadd.f32 %v4764, %v4936
      %v4938 = vpop.f32.mrb[0].mxu0
      %v4939 = vpop.f32.mrb[0].mxu0
      %v4940 = vadd.f32 %v4767, %v4939
      %v4941 = vpop.f32.mrb[0].mxu0
      %4942 = vmatprep.mubr.bf16.mxu0 0
      %4943 = vmatmul.mubr.bf16.gmra.mrb[0].mxu0 %v4824
      %v4944 = vpop.f32.mrb[0].mxu0
      %v4945 = vadd.f32 %v4772, %v4944
      %v4946 = vpop.f32.mrb[0].mxu0
      %v4947 = vpop.f32.mrb[0].mxu0
      %v4948 = vadd.f32 %v4775, %v4947
      %v4949 = vpop.f32.mrb[0].mxu0
      %4950 = vmatprep.mubr.bf16.mxu0 0
      %4951 = vmatmul.mubr.bf16.gmra.mrb[0].mxu0 %v4832
      %v4952 = vpop.f32.mrb[0].mxu0
      %v4953 = vadd.f32 %v4780, %v4952
      %v4954 = vpop.f32.mrb[0].mxu0
      %v4955 = vpop.f32.mrb[0].mxu0
      %v4956 = vadd.f32 %v4783, %v4955
      %v4957 = vpop.f32.mrb[0].mxu0
      %4958 = vdwg.mxu0
      %v4959 = vld [vmem:[#allocation2 + $0x2c] sm:$0x3]
      %s4960 = scalar_lea.vmem %s5, 128
      %v4961 = vld [vmem:[%s4960] sm:$0xf]
      %v4962 = vld [vmem:[%s4960 + $0x4] sm:$0xf]
      %v4963 = vld [vmem:[%s4960 + $0x8] sm:$0xf]
      %v4964 = vld [vmem:[%s4960 + $0xc] sm:$0xf]
      %v4965 = vld [vmem:[%s4960 + $0x10] sm:$0xf]
      %v4966 = vld [vmem:[%s4960 + $0x14] sm:$0xf]
      %v4967 = vld [vmem:[%s4960 + $0x18] sm:$0xf]
      %v4968 = vld [vmem:[%s4960 + $0x1c] sm:$0xf]
      %v4969 = vld [vmem:[%s4960 + $0x20] sm:$0xf]
      %v4970 = vld [vmem:[%s4960 + $0x24] sm:$0xf]
      %v4971 = vld [vmem:[%s4960 + $0x28] sm:$0xf]
      %v4972 = vld [vmem:[%s4960 + $0x2c] sm:$0xf]
      %v4973 = vld [vmem:[%s4960 + $0x30] sm:$0xf]
      %v4974 = vld [vmem:[%s4960 + $0x34] sm:$0xf]
      %v4975 = vld [vmem:[%s4960 + $0x38] sm:$0xf]
      %v4976 = vld [vmem:[%s4960 + $0x3c] sm:$0xf]
      %v4978 = vunpack.c.l.b16 %v4959
      %v4979 = vpack.c.b16 %v4978, %v4978
      %v4981 = vshrl.u32 %v4643, 16
      %v4983 = vrot.slane %v4981, 1
      %v4984 = vshll.u32 %v4643, 16
      %v4986 = vrot.slane %v4984, 2
      %v4987 = vor.u32 %v4983, %v4986
      %v4988 = vrot.slane %v4801, 1
      %v4989 = vrot.slane %v4797, 2
      %v4990 = vor.u32 %v4988, %v4989
      %v4991 = vsel %vm973, %v4987, %v4990
      %v4992 = vrot.slane %v4809, 1
      %v4993 = vrot.slane %v4805, 2
      %v4994 = vor.u32 %v4992, %v4993
      %v4995 = vsel %vm973, %v4990, %v4994
      %v4996 = vrot.slane %v4817, 1
      %v4997 = vrot.slane %v4813, 2
      %v4998 = vor.u32 %v4996, %v4997
      %v4999 = vsel %vm973, %v4994, %v4998
      %v5000 = vrot.slane %v4825, 1
      %v5001 = vrot.slane %v4821, 2
      %v5002 = vor.u32 %v5000, %v5001
      %v5003 = vsel %vm973, %v4998, %v5002
      %v5005 = vshrl.u32 %v4979, 16
      %v5007 = vrot.slane %v5005, 1
      %v5008 = vshll.u32 %v4979, 16
      %v5010 = vrot.slane %v5008, 2
      %v5011 = vor.u32 %v5007, %v5010
      %v5012 = vsel %vm973, %v5002, %v5011
      %v5034 = vunpack.c.l.b16 %v4961
      %v5035 = vunpack.c.l.b16 %v4962
      %v5036 = vunpack.c.l.b16 %v4963
      %v5037 = vunpack.c.l.b16 %v4964
      %v5038 = vunpack.c.l.b16 %v4965
      %v5039 = vunpack.c.l.b16 %v4966
      %v5040 = vunpack.c.l.b16 %v4967
      %v5041 = vunpack.c.l.b16 %v4968
      %v5042 = vunpack.c.l.b16 %v4969
      %v5043 = vunpack.c.l.b16 %v4970
      %v5044 = vunpack.c.l.b16 %v4971
      %v5045 = vunpack.c.l.b16 %v4972
      %v5046 = vunpack.c.l.b16 %v4973
      %v5047 = vunpack.c.l.b16 %v4974
      %v5048 = vunpack.c.l.b16 %v4975
      %v5049 = vunpack.c.l.b16 %v4976
      %v5050 = vpack.c.b16 %v5035, %v5034
      %v5051 = vpack.c.b16 %v5037, %v5036
      %v5052 = vpack.c.b16 %v5039, %v5038
      %v5053 = vpack.c.b16 %v5041, %v5040
      %v5054 = vpack.c.b16 %v5043, %v5042
      %v5055 = vpack.c.b16 %v5045, %v5044
      %v5056 = vpack.c.b16 %v5047, %v5046
      %v5057 = vpack.c.b16 %v5049, %v5048
      %5066 = vmatprep.subr.bf16.mxu0 0
      %5067 = vmatpush1.bf16.msra.mxu0 %v5050
      %5068 = vmatprep.subr.bf16.mxu0 0
      %5069 = vmatpush1.bf16.msra.mxu0 %v5051
      %5070 = vmatprep.subr.bf16.mxu0 0
      %5071 = vmatpush1.bf16.msra.mxu0 %v5052
      %5072 = vmatprep.subr.bf16.mxu0 0
      %5073 = vmatpush1.bf16.msra.mxu0 %v5053
      %5074 = vmatprep.subr.bf16.mxu0 0
      %5075 = vmatpush1.bf16.msra.mxu0 %v5054
      %5076 = vmatprep.subr.bf16.mxu0 0
      %5077 = vmatpush1.bf16.msra.mxu0 %v5055
      %5078 = vmatprep.subr.bf16.mxu0 0
      %5079 = vmatpush1.bf16.msra.mxu0 %v5056
      %5080 = vmatprep.subr.bf16.mxu0 0
      %5081 = vmatpush1.bf16.msra.mxu0 %v5057
      %5082 = vmatprep.subr.bf16.mxu0 0
      %5083 = vmatpush1.bf16.msra.mxu0 0
      %5084 = vmatprep.subr.bf16.mxu0 0
      %5085 = vmatpush1.bf16.msra.mxu0 0
      %5086 = vmatprep.subr.bf16.mxu0 0
      %5087 = vmatpush1.bf16.msra.mxu0 0
      %5088 = vmatprep.subr.bf16.mxu0 0
      %5089 = vmatpush1.bf16.msra.mxu0 0
      %5090 = vmatprep.subr.bf16.mxu0 0
      %5091 = vmatpush1.bf16.msra.mxu0 0
      %5092 = vmatprep.subr.bf16.mxu0 0
      %5093 = vmatpush1.bf16.msra.mxu0 0
      %5094 = vmatprep.subr.bf16.mxu0 0
      %5095 = vmatpush1.bf16.msra.mxu0 0
      %5096 = vmatprep.subr.bf16.mxu0 0
      %5097 = vmatpush1.bf16.msra.mxu0 0
      %5098 = vmatprep.mubr.bf16.mxu0 0
      %5099 = vmatmul.mubr.bf16.gmra.mrb[0].mxu0 %v4991
      %v5100 = vpop.f32.mrb[0].mxu0
      %v5101 = vadd.f32 0.0, %v5100
      %v5102 = vpop.f32.mrb[0].mxu0
      %v5103 = vpop.f32.mrb[0].mxu0
      %v5104 = vadd.f32 0.0, %v5103
      %v5105 = vpop.f32.mrb[0].mxu0
      %5106 = vmatprep.mubr.bf16.mxu0 0
      %5107 = vmatmul.mubr.bf16.gmra.mrb[0].mxu0 %v4995
      %v5108 = vpop.f32.mrb[0].mxu0
      %v5109 = vadd.f32 0.0, %v5108
      %v5110 = vpop.f32.mrb[0].mxu0
      %v5111 = vpop.f32.mrb[0].mxu0
      %v5112 = vadd.f32 0.0, %v5111
      %v5113 = vpop.f32.mrb[0].mxu0
      %5114 = vmatprep.mubr.bf16.mxu0 0
      %5115 = vmatmul.mubr.bf16.gmra.mrb[0].mxu0 %v4999
      %v5116 = vpop.f32.mrb[0].mxu0
      %v5117 = vadd.f32 0.0, %v5116
      %v5118 = vpop.f32.mrb[0].mxu0
      %v5119 = vpop.f32.mrb[0].mxu0
      %v5120 = vadd.f32 0.0, %v5119
      %v5121 = vpop.f32.mrb[0].mxu0
      %5122 = vmatprep.mubr.bf16.mxu0 0
      %5123 = vmatmul.mubr.bf16.gmra.mrb[0].mxu0 %v5003
      %v5124 = vpop.f32.mrb[0].mxu0
      %v5125 = vadd.f32 0.0, %v5124
      %v5126 = vpop.f32.mrb[0].mxu0
      %v5127 = vpop.f32.mrb[0].mxu0
      %v5128 = vadd.f32 0.0, %v5127
      %v5129 = vpop.f32.mrb[0].mxu0
      %5130 = vmatprep.mubr.bf16.mxu0 0
      %5131 = vmatmul.mubr.bf16.gmra.mrb[0].mxu0 %v5012
      %v5132 = vpop.f32.mrb[0].mxu0
      %v5133 = vadd.f32 0.0, %v5132
      %v5134 = vpop.f32.mrb[0].mxu0
      %v5135 = vpop.f32.mrb[0].mxu0
      %v5136 = vadd.f32 0.0, %v5135
      %v5137 = vpop.f32.mrb[0].mxu0
      %5138 = vdwg.mxu0
      %v5139 = vadd.f32 %v4921, %v5101
      %v5140 = vadd.f32 %v4924, %v5104
      %v5141 = vadd.f32 %v4929, %v5109
      %v5142 = vadd.f32 %v4932, %v5112
      %v5143 = vadd.f32 %v4937, %v5117
      %v5144 = vadd.f32 %v4940, %v5120
      %v5145 = vadd.f32 %v4945, %v5125
      %v5146 = vadd.f32 %v4948, %v5128
      %v5147 = vadd.f32 %v4953, %v5133
      %v5148 = vadd.f32 %v4956, %v5136
      %v5149 = vld [vmem:[#allocation2 + $0x8] sm:$0xe]
      %v5150 = vld [vmem:[#allocation2 + $0xc] sm:$0xf]
      %v5151 = vld [vmem:[#allocation2 + $0x10] sm:$0xf]
      %v5152 = vld [vmem:[#allocation2 + $0x14] sm:$0xf]
      %v5153 = vld [vmem:[#allocation2 + $0x18] sm:$0xf]
      %v5154 = vld [vmem:[#allocation2 + $0x1c] sm:$0xf]
      %v5155 = vld [vmem:[#allocation2 + $0x20] sm:$0xf]
      %v5156 = vld [vmem:[#allocation2 + $0x24] sm:$0xf]
      %v5157 = vld [vmem:[#allocation2 + $0x28] sm:$0xf]
      %v5158 = vld [vmem:[#allocation2 + $0x2c] sm:$0xf]
      %v5159 = vld [vmem:[#allocation2 + $0x30] sm:$0x3]
      %s5160 = scalar_lea.vmem %s5, 192
      %v5161 = vld [vmem:[%s5160] sm:$0xf]
      %v5162 = vld [vmem:[%s5160 + $0x4] sm:$0xf]
      %v5163 = vld [vmem:[%s5160 + $0x8] sm:$0xf]
      %v5164 = vld [vmem:[%s5160 + $0xc] sm:$0xf]
      %v5165 = vld [vmem:[%s5160 + $0x10] sm:$0xf]
      %v5166 = vld [vmem:[%s5160 + $0x14] sm:$0xf]
      %v5167 = vld [vmem:[%s5160 + $0x18] sm:$0xf]
      %v5168 = vld [vmem:[%s5160 + $0x1c] sm:$0xf]
      %v5169 = vld [vmem:[%s5160 + $0x20] sm:$0xf]
      %v5170 = vld [vmem:[%s5160 + $0x24] sm:$0xf]
      %v5171 = vld [vmem:[%s5160 + $0x28] sm:$0xf]
      %v5172 = vld [vmem:[%s5160 + $0x2c] sm:$0xf]
      %v5173 = vld [vmem:[%s5160 + $0x30] sm:$0xf]
      %v5174 = vld [vmem:[%s5160 + $0x34] sm:$0xf]
      %v5175 = vld [vmem:[%s5160 + $0x38] sm:$0xf]
      %v5176 = vld [vmem:[%s5160 + $0x3c] sm:$0xf]
      %v5188 = vunpack.c.l.b16 %v5149
      %v5189 = vunpack.c.l.b16 %v5150
      %v5190 = vunpack.c.l.b16 %v5151
      %v5191 = vunpack.c.l.b16 %v5152
      %v5192 = vunpack.c.l.b16 %v5153
      %v5193 = vunpack.c.l.b16 %v5154
      %v5194 = vunpack.c.l.b16 %v5155
      %v5195 = vunpack.c.l.b16 %v5156
      %v5196 = vunpack.c.l.b16 %v5157
      %v5197 = vunpack.c.l.b16 %v5158
      %v5198 = vunpack.c.l.b16 %v5159
      %v5199 = vpack.c.b16 %v5189, %v5188
      %v5200 = vpack.c.b16 %v5191, %v5190
      %v5201 = vpack.c.b16 %v5193, %v5192
      %v5202 = vpack.c.b16 %v5195, %v5194
      %v5203 = vpack.c.b16 %v5197, %v5196
      %v5204 = vpack.c.b16 %v5198, %v5198
      %v5206 = vshrl.u32 %v5199, 16
      %v5208 = vrot.slane %v5206, 1
      %v5209 = vshll.u32 %v5199, 16
      %v5211 = vrot.slane %v5209, 2
      %v5212 = vor.u32 %v5208, %v5211
      %v5214 = vshrl.u32 %v5200, 16
      %v5216 = vrot.slane %v5214, 1
      %v5217 = vshll.u32 %v5200, 16
      %v5219 = vrot.slane %v5217, 2
      %v5220 = vor.u32 %v5216, %v5219
      %v5221 = vsel %vm973, %v5212, %v5220
      %v5223 = vshrl.u32 %v5201, 16
      %v5225 = vrot.slane %v5223, 1
      %v5226 = vshll.u32 %v5201, 16
      %v5228 = vrot.slane %v5226, 2
      %v5229 = vor.u32 %v5225, %v5228
      %v5230 = vsel %vm973, %v5220, %v5229
      %v5232 = vshrl.u32 %v5202, 16
      %v5234 = vrot.slane %v5232, 1
      %v5235 = vshll.u32 %v5202, 16
      %v5237 = vrot.slane %v5235, 2
      %v5238 = vor.u32 %v5234, %v5237
      %v5239 = vsel %vm973, %v5229, %v5238
      %v5241 = vshrl.u32 %v5203, 16
      %v5243 = vrot.slane %v5241, 1
      %v5244 = vshll.u32 %v5203, 16
      %v5246 = vrot.slane %v5244, 2
      %v5247 = vor.u32 %v5243, %v5246
      %v5248 = vsel %vm973, %v5238, %v5247
      %v5250 = vshrl.u32 %v5204, 16
      %v5252 = vrot.slane %v5250, 1
      %v5253 = vshll.u32 %v5204, 16
      %v5255 = vrot.slane %v5253, 2
      %v5256 = vor.u32 %v5252, %v5255
      %v5257 = vsel %vm973, %v5247, %v5256
      %v5279 = vunpack.c.l.b16 %v5161
      %v5280 = vunpack.c.l.b16 %v5162
      %v5281 = vunpack.c.l.b16 %v5163
      %v5282 = vunpack.c.l.b16 %v5164
      %v5283 = vunpack.c.l.b16 %v5165
      %v5284 = vunpack.c.l.b16 %v5166
      %v5285 = vunpack.c.l.b16 %v5167
      %v5286 = vunpack.c.l.b16 %v5168
      %v5287 = vunpack.c.l.b16 %v5169
      %v5288 = vunpack.c.l.b16 %v5170
      %v5289 = vunpack.c.l.b16 %v5171
      %v5290 = vunpack.c.l.b16 %v5172
      %v5291 = vunpack.c.l.b16 %v5173
      %v5292 = vunpack.c.l.b16 %v5174
      %v5293 = vunpack.c.l.b16 %v5175
      %v5294 = vunpack.c.l.b16 %v5176
      %v5295 = vpack.c.b16 %v5280, %v5279
      %v5296 = vpack.c.b16 %v5282, %v5281
      %v5297 = vpack.c.b16 %v5284, %v5283
      %v5298 = vpack.c.b16 %v5286, %v5285
      %v5299 = vpack.c.b16 %v5288, %v5287
      %v5300 = vpack.c.b16 %v5290, %v5289
      %v5301 = vpack.c.b16 %v5292, %v5291
      %v5302 = vpack.c.b16 %v5294, %v5293
      %5311 = vmatprep.subr.bf16.mxu0 0
      %5312 = vmatpush1.bf16.msra.mxu0 %v5295
      %5313 = vmatprep.subr.bf16.mxu0 0
      %5314 = vmatpush1.bf16.msra.mxu0 %v5296
      %5315 = vmatprep.subr.bf16.mxu0 0
      %5316 = vmatpush1.bf16.msra.mxu0 %v5297
      %5317 = vmatprep.subr.bf16.mxu0 0
      %5318 = vmatpush1.bf16.msra.mxu0 %v5298
      %5319 = vmatprep.subr.bf16.mxu0 0
      %5320 = vmatpush1.bf16.msra.mxu0 %v5299
      %5321 = vmatprep.subr.bf16.mxu0 0
      %5322 = vmatpush1.bf16.msra.mxu0 %v5300
      %5323 = vmatprep.subr.bf16.mxu0 0
      %5324 = vmatpush1.bf16.msra.mxu0 %v5301
      %5325 = vmatprep.subr.bf16.mxu0 0
      %5326 = vmatpush1.bf16.msra.mxu0 %v5302
      %5327 = vmatprep.subr.bf16.mxu0 0
      %5328 = vmatpush1.bf16.msra.mxu0 0
      %5329 = vmatprep.subr.bf16.mxu0 0
      %5330 = vmatpush1.bf16.msra.mxu0 0
      %5331 = vmatprep.subr.bf16.mxu0 0
      %5332 = vmatpush1.bf16.msra.mxu0 0
      %5333 = vmatprep.subr.bf16.mxu0 0
      %5334 = vmatpush1.bf16.msra.mxu0 0
      %5335 = vmatprep.subr.bf16.mxu0 0
      %5336 = vmatpush1.bf16.msra.mxu0 0
      %5337 = vmatprep.subr.bf16.mxu0 0
      %5338 = vmatpush1.bf16.msra.mxu0 0
      %5339 = vmatprep.subr.bf16.mxu0 0
      %5340 = vmatpush1.bf16.msra.mxu0 0
      %5341 = vmatprep.subr.bf16.mxu0 0
      %5342 = vmatpush1.bf16.msra.mxu0 0
      %5343 = vmatprep.mubr.bf16.mxu0 0
      %5344 = vmatmul.mubr.bf16.gmra.mrb[0].mxu0 %v5221
      %v5345 = vpop.f32.mrb[0].mxu0
      %v5346 = vadd.f32 0.0, %v5345
      %v5347 = vpop.f32.mrb[0].mxu0
      %v5348 = vpop.f32.mrb[0].mxu0
      %v5349 = vadd.f32 0.0, %v5348
      %v5350 = vpop.f32.mrb[0].mxu0
      %5351 = vmatprep.mubr.bf16.mxu0 0
      %5352 = vmatmul.mubr.bf16.gmra.mrb[0].mxu0 %v5230
      %v5353 = vpop.f32.mrb[0].mxu0
      %v5354 = vadd.f32 0.0, %v5353
      %v5355 = vpop.f32.mrb[0].mxu0
      %v5356 = vpop.f32.mrb[0].mxu0
      %v5357 = vadd.f32 0.0, %v5356
      %v5358 = vpop.f32.mrb[0].mxu0
      %5359 = vmatprep.mubr.bf16.mxu0 0
      %5360 = vmatmul.mubr.bf16.gmra.mrb[0].mxu0 %v5239
      %v5361 = vpop.f32.mrb[0].mxu0
      %v5362 = vadd.f32 0.0, %v5361
      %v5363 = vpop.f32.mrb[0].mxu0
      %v5364 = vpop.f32.mrb[0].mxu0
      %v5365 = vadd.f32 0.0, %v5364
      %v5366 = vpop.f32.mrb[0].mxu0
      %5367 = vmatprep.mubr.bf16.mxu0 0
      %5368 = vmatmul.mubr.bf16.gmra.mrb[0].mxu0 %v5248
      %v5369 = vpop.f32.mrb[0].mxu0
      %v5370 = vadd.f32 0.0, %v5369
      %v5371 = vpop.f32.mrb[0].mxu0
      %v5372 = vpop.f32.mrb[0].mxu0
      %v5373 = vadd.f32 0.0, %v5372
      %v5374 = vpop.f32.mrb[0].mxu0
      %5375 = vmatprep.mubr.bf16.mxu0 0
      %5376 = vmatmul.mubr.bf16.gmra.mrb[0].mxu0 %v5257
      %v5377 = vpop.f32.mrb[0].mxu0
      %v5378 = vadd.f32 0.0, %v5377
      %v5379 = vpop.f32.mrb[0].mxu0
      %v5380 = vpop.f32.mrb[0].mxu0
      %v5381 = vadd.f32 0.0, %v5380
      %v5382 = vpop.f32.mrb[0].mxu0
      %5383 = vdwg.mxu0
      %v5384 = vadd.f32 %v5139, %v5346
      %v5385 = vadd.f32 %v5140, %v5349
      %v5386 = vadd.f32 %v5141, %v5354
      %v5387 = vadd.f32 %v5142, %v5357
      %v5388 = vadd.f32 %v5143, %v5362
      %v5389 = vadd.f32 %v5144, %v5365
      %v5390 = vadd.f32 %v5145, %v5370
      %v5391 = vadd.f32 %v5146, %v5373
      %v5392 = vadd.f32 %v5147, %v5378
      %v5393 = vadd.f32 %v5148, %v5381
      %v5394 = vld [vmem:[#allocation2 + $0x8] sm:$0xc]
      %s5395 = scalar_lea.vmem %s5, 256
      %v5396 = vld [vmem:[%s5395] sm:$0xf]
      %v5397 = vld [vmem:[%s5395 + $0x4] sm:$0xf]
      %v5398 = vld [vmem:[%s5395 + $0x8] sm:$0xf]
      %v5399 = vld [vmem:[%s5395 + $0xc] sm:$0xf]
      %v5400 = vld [vmem:[%s5395 + $0x10] sm:$0xf]
      %v5401 = vld [vmem:[%s5395 + $0x14] sm:$0xf]
      %v5402 = vld [vmem:[%s5395 + $0x18] sm:$0xf]
      %v5403 = vld [vmem:[%s5395 + $0x1c] sm:$0xf]
      %v5404 = vld [vmem:[%s5395 + $0x20] sm:$0xf]
      %v5405 = vld [vmem:[%s5395 + $0x24] sm:$0xf]
      %v5406 = vld [vmem:[%s5395 + $0x28] sm:$0xf]
      %v5407 = vld [vmem:[%s5395 + $0x2c] sm:$0xf]
      %v5408 = vld [vmem:[%s5395 + $0x30] sm:$0xf]
      %v5409 = vld [vmem:[%s5395 + $0x34] sm:$0xf]
      %v5410 = vld [vmem:[%s5395 + $0x38] sm:$0xf]
      %v5411 = vld [vmem:[%s5395 + $0x3c] sm:$0xf]
      %v5413 = vunpack.c.l.b16 %v5394
      %v5414 = vpack.c.b16 %v5189, %v5413
      %v5415 = vrot.slane %v5414, 2
      %v5416 = vrot.slane %v5200, 2
      %v5417 = vsel %vm1409, %v5415, %v5416
      %v5418 = vrot.slane %v5201, 2
      %v5419 = vsel %vm1409, %v5416, %v5418
      %v5420 = vrot.slane %v5202, 2
      %v5421 = vsel %vm1409, %v5418, %v5420
      %v5422 = vrot.slane %v5203, 2
      %v5423 = vsel %vm1409, %v5420, %v5422
      %v5424 = vrot.slane %v5204, 2
      %v5425 = vsel %vm1409, %v5422, %v5424
      %v5447 = vunpack.c.l.b16 %v5396
      %v5448 = vunpack.c.l.b16 %v5397
      %v5449 = vunpack.c.l.b16 %v5398
      %v5450 = vunpack.c.l.b16 %v5399
      %v5451 = vunpack.c.l.b16 %v5400
      %v5452 = vunpack.c.l.b16 %v5401
      %v5453 = vunpack.c.l.b16 %v5402
      %v5454 = vunpack.c.l.b16 %v5403
      %v5455 = vunpack.c.l.b16 %v5404
      %v5456 = vunpack.c.l.b16 %v5405
      %v5457 = vunpack.c.l.b16 %v5406
      %v5458 = vunpack.c.l.b16 %v5407
      %v5459 = vunpack.c.l.b16 %v5408
      %v5460 = vunpack.c.l.b16 %v5409
      %v5461 = vunpack.c.l.b16 %v5410
      %v5462 = vunpack.c.l.b16 %v5411
      %v5463 = vpack.c.b16 %v5448, %v5447
      %v5464 = vpack.c.b16 %v5450, %v5449
      %v5465 = vpack.c.b16 %v5452, %v5451
      %v5466 = vpack.c.b16 %v5454, %v5453
      %v5467 = vpack.c.b16 %v5456, %v5455
      %v5468 = vpack.c.b16 %v5458, %v5457
      %v5469 = vpack.c.b16 %v5460, %v5459
      %v5470 = vpack.c.b16 %v5462, %v5461
      %5479 = vmatprep.subr.bf16.mxu0 0
      %5480 = vmatpush1.bf16.msra.mxu0 %v5463
      %5481 = vmatprep.subr.bf16.mxu0 0
      %5482 = vmatpush1.bf16.msra.mxu0 %v5464
      %5483 = vmatprep.subr.bf16.mxu0 0
      %5484 = vmatpush1.bf16.msra.mxu0 %v5465
      %5485 = vmatprep.subr.bf16.mxu0 0
      %5486 = vmatpush1.bf16.msra.mxu0 %v5466
      %5487 = vmatprep.subr.bf16.mxu0 0
      %5488 = vmatpush1.bf16.msra.mxu0 %v5467
      %5489 = vmatprep.subr.bf16.mxu0 0
      %5490 = vmatpush1.bf16.msra.mxu0 %v5468
      %5491 = vmatprep.subr.bf16.mxu0 0
      %5492 = vmatpush1.bf16.msra.mxu0 %v5469
      %5493 = vmatprep.subr.bf16.mxu0 0
      %5494 = vmatpush1.bf16.msra.mxu0 %v5470
      %5495 = vmatprep.subr.bf16.mxu0 0
      %5496 = vmatpush1.bf16.msra.mxu0 0
      %5497 = vmatprep.subr.bf16.mxu0 0
      %5498 = vmatpush1.bf16.msra.mxu0 0
      %5499 = vmatprep.subr.bf16.mxu0 0
      %5500 = vmatpush1.bf16.msra.mxu0 0
      %5501 = vmatprep.subr.bf16.mxu0 0
      %5502 = vmatpush1.bf16.msra.mxu0 0
      %5503 = vmatprep.subr.bf16.mxu0 0
      %5504 = vmatpush1.bf16.msra.mxu0 0
      %5505 = vmatprep.subr.bf16.mxu0 0
      %5506 = vmatpush1.bf16.msra.mxu0 0
      %5507 = vmatprep.subr.bf16.mxu0 0
      %5508 = vmatpush1.bf16.msra.mxu0 0
      %5509 = vmatprep.subr.bf16.mxu0 0
      %5510 = vmatpush1.bf16.msra.mxu0 0
      %5511 = vmatprep.mubr.bf16.mxu0 0
      %5512 = vmatmul.mubr.bf16.gmra.mrb[0].mxu0 %v5417
      %v5513 = vpop.f32.mrb[0].mxu0
      %v5514 = vadd.f32 0.0, %v5513
      %v5515 = vpop.f32.mrb[0].mxu0
      %v5516 = vpop.f32.mrb[0].mxu0
      %v5517 = vadd.f32 0.0, %v5516
      %v5518 = vpop.f32.mrb[0].mxu0
      %5519 = vmatprep.mubr.bf16.mxu0 0
      %5520 = vmatmul.mubr.bf16.gmra.mrb[0].mxu0 %v5419
      %v5521 = vpop.f32.mrb[0].mxu0
      %v5522 = vadd.f32 0.0, %v5521
      %v5523 = vpop.f32.mrb[0].mxu0
      %v5524 = vpop.f32.mrb[0].mxu0
      %v5525 = vadd.f32 0.0, %v5524
      %v5526 = vpop.f32.mrb[0].mxu0
      %5527 = vmatprep.mubr.bf16.mxu0 0
      %5528 = vmatmul.mubr.bf16.gmra.mrb[0].mxu0 %v5421
      %v5529 = vpop.f32.mrb[0].mxu0
      %v5530 = vadd.f32 0.0, %v5529
      %v5531 = vpop.f32.mrb[0].mxu0
      %v5532 = vpop.f32.mrb[0].mxu0
      %v5533 = vadd.f32 0.0, %v5532
      %v5534 = vpop.f32.mrb[0].mxu0
      %5535 = vmatprep.mubr.bf16.mxu0 0
      %5536 = vmatmul.mubr.bf16.gmra.mrb[0].mxu0 %v5423
      %v5537 = vpop.f32.mrb[0].mxu0
      %v5538 = vadd.f32 0.0, %v5537
      %v5539 = vpop.f32.mrb[0].mxu0
      %v5540 = vpop.f32.mrb[0].mxu0
      %v5541 = vadd.f32 0.0, %v5540
      %v5542 = vpop.f32.mrb[0].mxu0
      %5543 = vmatprep.mubr.bf16.mxu0 0
      %5544 = vmatmul.mubr.bf16.gmra.mrb[0].mxu0 %v5425
      %v5545 = vpop.f32.mrb[0].mxu0
      %v5546 = vadd.f32 0.0, %v5545
      %v5547 = vpop.f32.mrb[0].mxu0
      %v5548 = vpop.f32.mrb[0].mxu0
      %v5549 = vadd.f32 0.0, %v5548
      %v5550 = vpop.f32.mrb[0].mxu0
      %5551 = vdwg.mxu0
      %v5552 = vadd.f32 %v5384, %v5514
      %v5553 = vadd.f32 %v5385, %v5517
      %v5554 = vadd.f32 %v5386, %v5522
      %v5555 = vadd.f32 %v5387, %v5525
      %v5556 = vadd.f32 %v5388, %v5530
      %v5557 = vadd.f32 %v5389, %v5533
      %v5558 = vadd.f32 %v5390, %v5538
      %v5559 = vadd.f32 %v5391, %v5541
      %v5560 = vadd.f32 %v5392, %v5546
      %v5561 = vadd.f32 %v5393, %v5549
      %v5562 = vld [vmem:[#allocation2 + $0x30] sm:$0x7]
      %s5563 = scalar_lea.vmem %s5, 320
      %v5564 = vld [vmem:[%s5563] sm:$0xf]
      %v5565 = vld [vmem:[%s5563 + $0x4] sm:$0xf]
      %v5566 = vld [vmem:[%s5563 + $0x8] sm:$0xf]
      %v5567 = vld [vmem:[%s5563 + $0xc] sm:$0xf]
      %v5568 = vld [vmem:[%s5563 + $0x10] sm:$0xf]
      %v5569 = vld [vmem:[%s5563 + $0x14] sm:$0xf]
      %v5570 = vld [vmem:[%s5563 + $0x18] sm:$0xf]
      %v5571 = vld [vmem:[%s5563 + $0x1c] sm:$0xf]
      %v5572 = vld [vmem:[%s5563 + $0x20] sm:$0xf]
      %v5573 = vld [vmem:[%s5563 + $0x24] sm:$0xf]
      %v5574 = vld [vmem:[%s5563 + $0x28] sm:$0xf]
      %v5575 = vld [vmem:[%s5563 + $0x2c] sm:$0xf]
      %v5576 = vld [vmem:[%s5563 + $0x30] sm:$0xf]
      %v5577 = vld [vmem:[%s5563 + $0x34] sm:$0xf]
      %v5578 = vld [vmem:[%s5563 + $0x38] sm:$0xf]
      %v5579 = vld [vmem:[%s5563 + $0x3c] sm:$0xf]
      %v5581 = vunpack.c.l.b16 %v5562
      %v5582 = vpack.c.b16 %v5581, %v5581
      %v5584 = vshrl.u32 %v5414, 16
      %v5586 = vrot.slane %v5584, 2
      %v5587 = vshll.u32 %v5414, 16
      %v5589 = vrot.slane %v5587, 3
      %v5590 = vor.u32 %v5586, %v5589
      %v5591 = vrot.slane %v5214, 2
      %v5592 = vrot.slane %v5217, 3
      %v5593 = vor.u32 %v5591, %v5592
      %v5594 = vsel %vm1578, %v5590, %v5593
      %v5595 = vrot.slane %v5223, 2
      %v5596 = vrot.slane %v5226, 3
      %v5597 = vor.u32 %v5595, %v5596
      %v5598 = vsel %vm1578, %v5593, %v5597
      %v5599 = vrot.slane %v5232, 2
      %v5600 = vrot.slane %v5235, 3
      %v5601 = vor.u32 %v5599, %v5600
      %v5602 = vsel %vm1578, %v5597, %v5601
      %v5603 = vrot.slane %v5241, 2
      %v5604 = vrot.slane %v5244, 3
      %v5605 = vor.u32 %v5603, %v5604
      %v5606 = vsel %vm1578, %v5601, %v5605
      %v5608 = vshrl.u32 %v5582, 16
      %v5610 = vrot.slane %v5608, 2
      %v5611 = vshll.u32 %v5582, 16
      %v5613 = vrot.slane %v5611, 3
      %v5614 = vor.u32 %v5610, %v5613
      %v5615 = vsel %vm1578, %v5605, %v5614
      %v5637 = vunpack.c.l.b16 %v5564
      %v5638 = vunpack.c.l.b16 %v5565
      %v5639 = vunpack.c.l.b16 %v5566
      %v5640 = vunpack.c.l.b16 %v5567
      %v5641 = vunpack.c.l.b16 %v5568
      %v5642 = vunpack.c.l.b16 %v5569
      %v5643 = vunpack.c.l.b16 %v5570
      %v5644 = vunpack.c.l.b16 %v5571
      %v5645 = vunpack.c.l.b16 %v5572
      %v5646 = vunpack.c.l.b16 %v5573
      %v5647 = vunpack.c.l.b16 %v5574
      %v5648 = vunpack.c.l.b16 %v5575
      %v5649 = vunpack.c.l.b16 %v5576
      %v5650 = vunpack.c.l.b16 %v5577
      %v5651 = vunpack.c.l.b16 %v5578
      %v5652 = vunpack.c.l.b16 %v5579
      %v5653 = vpack.c.b16 %v5638, %v5637
      %v5654 = vpack.c.b16 %v5640, %v5639
      %v5655 = vpack.c.b16 %v5642, %v5641
      %v5656 = vpack.c.b16 %v5644, %v5643
      %v5657 = vpack.c.b16 %v5646, %v5645
      %v5658 = vpack.c.b16 %v5648, %v5647
      %v5659 = vpack.c.b16 %v5650, %v5649
      %v5660 = vpack.c.b16 %v5652, %v5651
      %5669 = vmatprep.subr.bf16.mxu0 0
      %5670 = vmatpush1.bf16.msra.mxu0 %v5653
      %5671 = vmatprep.subr.bf16.mxu0 0
      %5672 = vmatpush1.bf16.msra.mxu0 %v5654
      %5673 = vmatprep.subr.bf16.mxu0 0
      %5674 = vmatpush1.bf16.msra.mxu0 %v5655
      %5675 = vmatprep.subr.bf16.mxu0 0
      %5676 = vmatpush1.bf16.msra.mxu0 %v5656
      %5677 = vmatprep.subr.bf16.mxu0 0
      %5678 = vmatpush1.bf16.msra.mxu0 %v5657
      %5679 = vmatprep.subr.bf16.mxu0 0
      %5680 = vmatpush1.bf16.msra.mxu0 %v5658
      %5681 = vmatprep.subr.bf16.mxu0 0
      %5682 = vmatpush1.bf16.msra.mxu0 %v5659
      %5683 = vmatprep.subr.bf16.mxu0 0
      %5684 = vmatpush1.bf16.msra.mxu0 %v5660
      %5685 = vmatprep.subr.bf16.mxu0 0
      %5686 = vmatpush1.bf16.msra.mxu0 0
      %5687 = vmatprep.subr.bf16.mxu0 0
      %5688 = vmatpush1.bf16.msra.mxu0 0
      %5689 = vmatprep.subr.bf16.mxu0 0
      %5690 = vmatpush1.bf16.msra.mxu0 0
      %5691 = vmatprep.subr.bf16.mxu0 0
      %5692 = vmatpush1.bf16.msra.mxu0 0
      %5693 = vmatprep.subr.bf16.mxu0 0
      %5694 = vmatpush1.bf16.msra.mxu0 0
      %5695 = vmatprep.subr.bf16.mxu0 0
      %5696 = vmatpush1.bf16.msra.mxu0 0
      %5697 = vmatprep.subr.bf16.mxu0 0
      %5698 = vmatpush1.bf16.msra.mxu0 0
      %5699 = vmatprep.subr.bf16.mxu0 0
      %5700 = vmatpush1.bf16.msra.mxu0 0
      %5701 = vmatprep.mubr.bf16.mxu0 0
      %5702 = vmatmul.mubr.bf16.gmra.mrb[0].mxu0 %v5594
      %v5703 = vpop.f32.mrb[0].mxu0
      %v5704 = vadd.f32 0.0, %v5703
      %v5705 = vpop.f32.mrb[0].mxu0
      %v5706 = vpop.f32.mrb[0].mxu0
      %v5707 = vadd.f32 0.0, %v5706
      %v5708 = vpop.f32.mrb[0].mxu0
      %5709 = vmatprep.mubr.bf16.mxu0 0
      %5710 = vmatmul.mubr.bf16.gmra.mrb[0].mxu0 %v5598
      %v5711 = vpop.f32.mrb[0].mxu0
      %v5712 = vadd.f32 0.0, %v5711
      %v5713 = vpop.f32.mrb[0].mxu0
      %v5714 = vpop.f32.mrb[0].mxu0
      %v5715 = vadd.f32 0.0, %v5714
      %v5716 = vpop.f32.mrb[0].mxu0
      %5717 = vmatprep.mubr.bf16.mxu0 0
      %5718 = vmatmul.mubr.bf16.gmra.mrb[0].mxu0 %v5602
      %v5719 = vpop.f32.mrb[0].mxu0
      %v5720 = vadd.f32 0.0, %v5719
      %v5721 = vpop.f32.mrb[0].mxu0
      %v5722 = vpop.f32.mrb[0].mxu0
      %v5723 = vadd.f32 0.0, %v5722
      %v5724 = vpop.f32.mrb[0].mxu0
      %5725 = vmatprep.mubr.bf16.mxu0 0
      %5726 = vmatmul.mubr.bf16.gmra.mrb[0].mxu0 %v5606
      %v5727 = vpop.f32.mrb[0].mxu0
      %v5728 = vadd.f32 0.0, %v5727
      %v5729 = vpop.f32.mrb[0].mxu0
      %v5730 = vpop.f32.mrb[0].mxu0
      %v5731 = vadd.f32 0.0, %v5730
      %v5732 = vpop.f32.mrb[0].mxu0
      %5733 = vmatprep.mubr.bf16.mxu0 0
      %5734 = vmatmul.mubr.bf16.gmra.mrb[0].mxu0 %v5615
      %v5735 = vpop.f32.mrb[0].mxu0
      %v5736 = vadd.f32 0.0, %v5735
      %v5737 = vpop.f32.mrb[0].mxu0
      %v5738 = vpop.f32.mrb[0].mxu0
      %v5739 = vadd.f32 0.0, %v5738
      %v5740 = vpop.f32.mrb[0].mxu0
      %5741 = vdwg.mxu0
      %v5742 = vadd.f32 %v5552, %v5704
      %v5743 = vadd.f32 %v5553, %v5707
      %v5744 = vadd.f32 %v5554, %v5712
      %v5745 = vadd.f32 %v5555, %v5715
      %v5746 = vadd.f32 %v5556, %v5720
      %v5747 = vadd.f32 %v5557, %v5723
      %v5748 = vadd.f32 %v5558, %v5728
      %v5749 = vadd.f32 %v5559, %v5731
      %v5750 = vadd.f32 %v5560, %v5736
      %v5751 = vadd.f32 %v5561, %v5739
      %v5752 = vld [vmem:[#allocation2 + $0xc] sm:$0xc]
      %v5753 = vld [vmem:[#allocation2 + $0x10] sm:$0xf]
      %v5754 = vld [vmem:[#allocation2 + $0x14] sm:$0xf]
      %v5755 = vld [vmem:[#allocation2 + $0x18] sm:$0xf]
      %v5756 = vld [vmem:[#allocation2 + $0x1c] sm:$0xf]
      %v5757 = vld [vmem:[#allocation2 + $0x20] sm:$0xf]
      %v5758 = vld [vmem:[#allocation2 + $0x24] sm:$0xf]
      %v5759 = vld [vmem:[#allocation2 + $0x28] sm:$0xf]
      %v5760 = vld [vmem:[#allocation2 + $0x2c] sm:$0xf]
      %v5761 = vld [vmem:[#allocation2 + $0x30] sm:$0xf]
      %v5762 = vld [vmem:[#allocation2 + $0x34] sm:$0x7]
      %s5763 = scalar_lea.vmem %s5, 384
      %v5764 = vld [vmem:[%s5763] sm:$0xf]
      %v5765 = vld [vmem:[%s5763 + $0x4] sm:$0xf]
      %v5766 = vld [vmem:[%s5763 + $0x8] sm:$0xf]
      %v5767 = vld [vmem:[%s5763 + $0xc] sm:$0xf]
      %v5768 = vld [vmem:[%s5763 + $0x10] sm:$0xf]
      %v5769 = vld [vmem:[%s5763 + $0x14] sm:$0xf]
      %v5770 = vld [vmem:[%s5763 + $0x18] sm:$0xf]
      %v5771 = vld [vmem:[%s5763 + $0x1c] sm:$0xf]
      %v5772 = vld [vmem:[%s5763 + $0x20] sm:$0xf]
      %v5773 = vld [vmem:[%s5763 + $0x24] sm:$0xf]
      %v5774 = vld [vmem:[%s5763 + $0x28] sm:$0xf]
      %v5775 = vld [vmem:[%s5763 + $0x2c] sm:$0xf]
      %v5776 = vld [vmem:[%s5763 + $0x30] sm:$0xf]
      %v5777 = vld [vmem:[%s5763 + $0x34] sm:$0xf]
      %v5778 = vld [vmem:[%s5763 + $0x38] sm:$0xf]
      %v5779 = vld [vmem:[%s5763 + $0x3c] sm:$0xf]
      %v5791 = vunpack.c.l.b16 %v5752
      %v5792 = vunpack.c.l.b16 %v5753
      %v5793 = vunpack.c.l.b16 %v5754
      %v5794 = vunpack.c.l.b16 %v5755
      %v5795 = vunpack.c.l.b16 %v5756
      %v5796 = vunpack.c.l.b16 %v5757
      %v5797 = vunpack.c.l.b16 %v5758
      %v5798 = vunpack.c.l.b16 %v5759
      %v5799 = vunpack.c.l.b16 %v5760
      %v5800 = vunpack.c.l.b16 %v5761
      %v5801 = vunpack.c.l.b16 %v5762
      %v5802 = vpack.c.b16 %v5792, %v5791
      %v5803 = vpack.c.b16 %v5794, %v5793
      %v5804 = vpack.c.b16 %v5796, %v5795
      %v5805 = vpack.c.b16 %v5798, %v5797
      %v5806 = vpack.c.b16 %v5800, %v5799
      %v5807 = vpack.c.b16 %v5801, %v5801
      %v5809 = vshrl.u32 %v5802, 16
      %v5811 = vrot.slane %v5809, 2
      %v5812 = vshll.u32 %v5802, 16
      %v5814 = vrot.slane %v5812, 3
      %v5815 = vor.u32 %v5811, %v5814
      %v5817 = vshrl.u32 %v5803, 16
      %v5819 = vrot.slane %v5817, 2
      %v5820 = vshll.u32 %v5803, 16
      %v5822 = vrot.slane %v5820, 3
      %v5823 = vor.u32 %v5819, %v5822
      %v5824 = vsel %vm1578, %v5815, %v5823
      %v5826 = vshrl.u32 %v5804, 16
      %v5828 = vrot.slane %v5826, 2
      %v5829 = vshll.u32 %v5804, 16
      %v5831 = vrot.slane %v5829, 3
      %v5832 = vor.u32 %v5828, %v5831
      %v5833 = vsel %vm1578, %v5823, %v5832
      %v5835 = vshrl.u32 %v5805, 16
      %v5837 = vrot.slane %v5835, 2
      %v5838 = vshll.u32 %v5805, 16
      %v5840 = vrot.slane %v5838, 3
      %v5841 = vor.u32 %v5837, %v5840
      %v5842 = vsel %vm1578, %v5832, %v5841
      %v5844 = vshrl.u32 %v5806, 16
      %v5846 = vrot.slane %v5844, 2
      %v5847 = vshll.u32 %v5806, 16
      %v5849 = vrot.slane %v5847, 3
      %v5850 = vor.u32 %v5846, %v5849
      %v5851 = vsel %vm1578, %v5841, %v5850
      %v5853 = vshrl.u32 %v5807, 16
      %v5855 = vrot.slane %v5853, 2
      %v5856 = vshll.u32 %v5807, 16
      %v5858 = vrot.slane %v5856, 3
      %v5859 = vor.u32 %v5855, %v5858
      %v5860 = vsel %vm1578, %v5850, %v5859
      %v5882 = vunpack.c.l.b16 %v5764
      %v5883 = vunpack.c.l.b16 %v5765
      %v5884 = vunpack.c.l.b16 %v5766
      %v5885 = vunpack.c.l.b16 %v5767
      %v5886 = vunpack.c.l.b16 %v5768
      %v5887 = vunpack.c.l.b16 %v5769
      %v5888 = vunpack.c.l.b16 %v5770
      %v5889 = vunpack.c.l.b16 %v5771
      %v5890 = vunpack.c.l.b16 %v5772
      %v5891 = vunpack.c.l.b16 %v5773
      %v5892 = vunpack.c.l.b16 %v5774
      %v5893 = vunpack.c.l.b16 %v5775
      %v5894 = vunpack.c.l.b16 %v5776
      %v5895 = vunpack.c.l.b16 %v5777
      %v5896 = vunpack.c.l.b16 %v5778
      %v5897 = vunpack.c.l.b16 %v5779
      %v5898 = vpack.c.b16 %v5883, %v5882
      %v5899 = vpack.c.b16 %v5885, %v5884
      %v5900 = vpack.c.b16 %v5887, %v5886
      %v5901 = vpack.c.b16 %v5889, %v5888
      %v5902 = vpack.c.b16 %v5891, %v5890
      %v5903 = vpack.c.b16 %v5893, %v5892
      %v5904 = vpack.c.b16 %v5895, %v5894
      %v5905 = vpack.c.b16 %v5897, %v5896
      %5914 = vmatprep.subr.bf16.mxu0 0
      %5915 = vmatpush1.bf16.msra.mxu0 %v5898
      %5916 = vmatprep.subr.bf16.mxu0 0
      %5917 = vmatpush1.bf16.msra.mxu0 %v5899
      %5918 = vmatprep.subr.bf16.mxu0 0
      %5919 = vmatpush1.bf16.msra.mxu0 %v5900
      %5920 = vmatprep.subr.bf16.mxu0 0
      %5921 = vmatpush1.bf16.msra.mxu0 %v5901
      %5922 = vmatprep.subr.bf16.mxu0 0
      %5923 = vmatpush1.bf16.msra.mxu0 %v5902
      %5924 = vmatprep.subr.bf16.mxu0 0
      %5925 = vmatpush1.bf16.msra.mxu0 %v5903
      %5926 = vmatprep.subr.bf16.mxu0 0
      %5927 = vmatpush1.bf16.msra.mxu0 %v5904
      %5928 = vmatprep.subr.bf16.mxu0 0
      %5929 = vmatpush1.bf16.msra.mxu0 %v5905
      %5930 = vmatprep.subr.bf16.mxu0 0
      %5931 = vmatpush1.bf16.msra.mxu0 0
      %5932 = vmatprep.subr.bf16.mxu0 0
      %5933 = vmatpush1.bf16.msra.mxu0 0
      %5934 = vmatprep.subr.bf16.mxu0 0
      %5935 = vmatpush1.bf16.msra.mxu0 0
      %5936 = vmatprep.subr.bf16.mxu0 0
      %5937 = vmatpush1.bf16.msra.mxu0 0
      %5938 = vmatprep.subr.bf16.mxu0 0
      %5939 = vmatpush1.bf16.msra.mxu0 0
      %5940 = vmatprep.subr.bf16.mxu0 0
      %5941 = vmatpush1.bf16.msra.mxu0 0
      %5942 = vmatprep.subr.bf16.mxu0 0
      %5943 = vmatpush1.bf16.msra.mxu0 0
      %5944 = vmatprep.subr.bf16.mxu0 0
      %5945 = vmatpush1.bf16.msra.mxu0 0
      %5946 = vmatprep.mubr.bf16.mxu0 0
      %5947 = vmatmul.mubr.bf16.gmra.mrb[0].mxu0 %v5824
      %v5948 = vpop.f32.mrb[0].mxu0
      %v5949 = vadd.f32 0.0, %v5948
      %v5950 = vpop.f32.mrb[0].mxu0
      %v5951 = vpop.f32.mrb[0].mxu0
      %v5952 = vadd.f32 0.0, %v5951
      %v5953 = vpop.f32.mrb[0].mxu0
      %5954 = vmatprep.mubr.bf16.mxu0 0
      %5955 = vmatmul.mubr.bf16.gmra.mrb[0].mxu0 %v5833
      %v5956 = vpop.f32.mrb[0].mxu0
      %v5957 = vadd.f32 0.0, %v5956
      %v5958 = vpop.f32.mrb[0].mxu0
      %v5959 = vpop.f32.mrb[0].mxu0
      %v5960 = vadd.f32 0.0, %v5959
      %v5961 = vpop.f32.mrb[0].mxu0
      %5962 = vmatprep.mubr.bf16.mxu0 0
      %5963 = vmatmul.mubr.bf16.gmra.mrb[0].mxu0 %v5842
      %v5964 = vpop.f32.mrb[0].mxu0
      %v5965 = vadd.f32 0.0, %v5964
      %v5966 = vpop.f32.mrb[0].mxu0
      %v5967 = vpop.f32.mrb[0].mxu0
      %v5968 = vadd.f32 0.0, %v5967
      %v5969 = vpop.f32.mrb[0].mxu0
      %5970 = vmatprep.mubr.bf16.mxu0 0
      %5971 = vmatmul.mubr.bf16.gmra.mrb[0].mxu0 %v5851
      %v5972 = vpop.f32.mrb[0].mxu0
      %v5973 = vadd.f32 0.0, %v5972
      %v5974 = vpop.f32.mrb[0].mxu0
      %v5975 = vpop.f32.mrb[0].mxu0
      %v5976 = vadd.f32 0.0, %v5975
      %v5977 = vpop.f32.mrb[0].mxu0
      %5978 = vmatprep.mubr.bf16.mxu0 0
      %5979 = vmatmul.mubr.bf16.gmra.mrb[0].mxu0 %v5860
      %v5980 = vpop.f32.mrb[0].mxu0
      %v5981 = vadd.f32 0.0, %v5980
      %v5982 = vpop.f32.mrb[0].mxu0
      %v5983 = vpop.f32.mrb[0].mxu0
      %v5984 = vadd.f32 0.0, %v5983
      %v5985 = vpop.f32.mrb[0].mxu0
      %5986 = vdwg.mxu0
      %v5987 = vadd.f32 %v5742, %v5949
      %v5988 = vadd.f32 %v5743, %v5952
      %v5989 = vadd.f32 %v5744, %v5957
      %v5990 = vadd.f32 %v5745, %v5960
      %v5991 = vadd.f32 %v5746, %v5965
      %v5992 = vadd.f32 %v5747, %v5968
      %v5993 = vadd.f32 %v5748, %v5973
      %v5994 = vadd.f32 %v5749, %v5976
      %v5995 = vadd.f32 %v5750, %v5981
      %v5996 = vadd.f32 %v5751, %v5984
      %v5997 = vld [vmem:[#allocation2 + $0xc] sm:$0x8]
      %s5998 = scalar_lea.vmem %s5, 448
      %v5999 = vld [vmem:[%s5998] sm:$0xf]
      %v6000 = vld [vmem:[%s5998 + $0x4] sm:$0xf]
      %v6001 = vld [vmem:[%s5998 + $0x8] sm:$0xf]
      %v6002 = vld [vmem:[%s5998 + $0xc] sm:$0xf]
      %v6003 = vld [vmem:[%s5998 + $0x10] sm:$0xf]
      %v6004 = vld [vmem:[%s5998 + $0x14] sm:$0xf]
      %v6005 = vld [vmem:[%s5998 + $0x18] sm:$0xf]
      %v6006 = vld [vmem:[%s5998 + $0x1c] sm:$0xf]
      %v6007 = vld [vmem:[%s5998 + $0x20] sm:$0xf]
      %v6008 = vld [vmem:[%s5998 + $0x24] sm:$0xf]
      %v6009 = vld [vmem:[%s5998 + $0x28] sm:$0xf]
      %v6010 = vld [vmem:[%s5998 + $0x2c] sm:$0xf]
      %v6011 = vld [vmem:[%s5998 + $0x30] sm:$0xf]
      %v6012 = vld [vmem:[%s5998 + $0x34] sm:$0xf]
      %v6013 = vld [vmem:[%s5998 + $0x38] sm:$0xf]
      %v6014 = vld [vmem:[%s5998 + $0x3c] sm:$0xf]
      %v6016 = vunpack.c.l.b16 %v5997
      %v6017 = vpack.c.b16 %v5792, %v6016
      %v6018 = vrot.slane %v6017, 3
      %v6019 = vrot.slane %v5803, 3
      %v6020 = vsel %vm2014, %v6018, %v6019
      %v6021 = vrot.slane %v5804, 3
      %v6022 = vsel %vm2014, %v6019, %v6021
      %v6023 = vrot.slane %v5805, 3
      %v6024 = vsel %vm2014, %v6021, %v6023
      %v6025 = vrot.slane %v5806, 3
      %v6026 = vsel %vm2014, %v6023, %v6025
      %v6027 = vrot.slane %v5807, 3
      %v6028 = vsel %vm2014, %v6025, %v6027
      %v6050 = vunpack.c.l.b16 %v5999
      %v6051 = vunpack.c.l.b16 %v6000
      %v6052 = vunpack.c.l.b16 %v6001
      %v6053 = vunpack.c.l.b16 %v6002
      %v6054 = vunpack.c.l.b16 %v6003
      %v6055 = vunpack.c.l.b16 %v6004
      %v6056 = vunpack.c.l.b16 %v6005
      %v6057 = vunpack.c.l.b16 %v6006
      %v6058 = vunpack.c.l.b16 %v6007
      %v6059 = vunpack.c.l.b16 %v6008
      %v6060 = vunpack.c.l.b16 %v6009
      %v6061 = vunpack.c.l.b16 %v6010
      %v6062 = vunpack.c.l.b16 %v6011
      %v6063 = vunpack.c.l.b16 %v6012
      %v6064 = vunpack.c.l.b16 %v6013
      %v6065 = vunpack.c.l.b16 %v6014
      %v6066 = vpack.c.b16 %v6051, %v6050
      %v6067 = vpack.c.b16 %v6053, %v6052
      %v6068 = vpack.c.b16 %v6055, %v6054
      %v6069 = vpack.c.b16 %v6057, %v6056
      %v6070 = vpack.c.b16 %v6059, %v6058
      %v6071 = vpack.c.b16 %v6061, %v6060
      %v6072 = vpack.c.b16 %v6063, %v6062
      %v6073 = vpack.c.b16 %v6065, %v6064
      %6082 = vmatprep.subr.bf16.mxu0 0
      %6083 = vmatpush1.bf16.msra.mxu0 %v6066
      %6084 = vmatprep.subr.bf16.mxu0 0
      %6085 = vmatpush1.bf16.msra.mxu0 %v6067
      %6086 = vmatprep.subr.bf16.mxu0 0
      %6087 = vmatpush1.bf16.msra.mxu0 %v6068
      %6088 = vmatprep.subr.bf16.mxu0 0
      %6089 = vmatpush1.bf16.msra.mxu0 %v6069
      %6090 = vmatprep.subr.bf16.mxu0 0
      %6091 = vmatpush1.bf16.msra.mxu0 %v6070
      %6092 = vmatprep.subr.bf16.mxu0 0
      %6093 = vmatpush1.bf16.msra.mxu0 %v6071
      %6094 = vmatprep.subr.bf16.mxu0 0
      %6095 = vmatpush1.bf16.msra.mxu0 %v6072
      %6096 = vmatprep.subr.bf16.mxu0 0
      %6097 = vmatpush1.bf16.msra.mxu0 %v6073
      %6098 = vmatprep.subr.bf16.mxu0 0
      %6099 = vmatpush1.bf16.msra.mxu0 0
      %6100 = vmatprep.subr.bf16.mxu0 0
      %6101 = vmatpush1.bf16.msra.mxu0 0
      %6102 = vmatprep.subr.bf16.mxu0 0
      %6103 = vmatpush1.bf16.msra.mxu0 0
      %6104 = vmatprep.subr.bf16.mxu0 0
      %6105 = vmatpush1.bf16.msra.mxu0 0
      %6106 = vmatprep.subr.bf16.mxu0 0
      %6107 = vmatpush1.bf16.msra.mxu0 0
      %6108 = vmatprep.subr.bf16.mxu0 0
      %6109 = vmatpush1.bf16.msra.mxu0 0
      %6110 = vmatprep.subr.bf16.mxu0 0
      %6111 = vmatpush1.bf16.msra.mxu0 0
      %6112 = vmatprep.subr.bf16.mxu0 0
      %6113 = vmatpush1.bf16.msra.mxu0 0
      %6114 = vmatprep.mubr.bf16.mxu0 0
      %6115 = vmatmul.mubr.bf16.gmra.mrb[0].mxu0 %v6020
      %v6116 = vpop.f32.mrb[0].mxu0
      %v6117 = vadd.f32 0.0, %v6116
      %v6118 = vpop.f32.mrb[0].mxu0
      %v6119 = vpop.f32.mrb[0].mxu0
      %v6120 = vadd.f32 0.0, %v6119
      %v6121 = vpop.f32.mrb[0].mxu0
      %6122 = vmatprep.mubr.bf16.mxu0 0
      %6123 = vmatmul.mubr.bf16.gmra.mrb[0].mxu0 %v6022
      %v6124 = vpop.f32.mrb[0].mxu0
      %v6125 = vadd.f32 0.0, %v6124
      %v6126 = vpop.f32.mrb[0].mxu0
      %v6127 = vpop.f32.mrb[0].mxu0
      %v6128 = vadd.f32 0.0, %v6127
      %v6129 = vpop.f32.mrb[0].mxu0
      %6130 = vmatprep.mubr.bf16.mxu0 0
      %6131 = vmatmul.mubr.bf16.gmra.mrb[0].mxu0 %v6024
      %v6132 = vpop.f32.mrb[0].mxu0
      %v6133 = vadd.f32 0.0, %v6132
      %v6134 = vpop.f32.mrb[0].mxu0
      %v6135 = vpop.f32.mrb[0].mxu0
      %v6136 = vadd.f32 0.0, %v6135
      %v6137 = vpop.f32.mrb[0].mxu0
      %6138 = vmatprep.mubr.bf16.mxu0 0
      %6139 = vmatmul.mubr.bf16.gmra.mrb[0].mxu0 %v6026
      %v6140 = vpop.f32.mrb[0].mxu0
      %v6141 = vadd.f32 0.0, %v6140
      %v6142 = vpop.f32.mrb[0].mxu0
      %v6143 = vpop.f32.mrb[0].mxu0
      %v6144 = vadd.f32 0.0, %v6143
      %v6145 = vpop.f32.mrb[0].mxu0
      %6146 = vmatprep.mubr.bf16.mxu0 0
      %6147 = vmatmul.mubr.bf16.gmra.mrb[0].mxu0 %v6028
      %v6148 = vpop.f32.mrb[0].mxu0
      %v6149 = vadd.f32 0.0, %v6148
      %v6150 = vpop.f32.mrb[0].mxu0
      %v6151 = vpop.f32.mrb[0].mxu0
      %v6152 = vadd.f32 0.0, %v6151
      %v6153 = vpop.f32.mrb[0].mxu0
      %6154 = vdwg.mxu0
      %v6155 = vadd.f32 %v5987, %v6117
      %v6156 = vadd.f32 %v5988, %v6120
      %v6157 = vadd.f32 %v5989, %v6125
      %v6158 = vadd.f32 %v5990, %v6128
      %v6159 = vadd.f32 %v5991, %v6133
      %v6160 = vadd.f32 %v5992, %v6136
      %v6161 = vadd.f32 %v5993, %v6141
      %v6162 = vadd.f32 %v5994, %v6144
      %v6163 = vadd.f32 %v5995, %v6149
      %v6164 = vadd.f32 %v5996, %v6152
      %v6165 = vld [vmem:[#allocation2 + $0x34] sm:$0xf]
      %s6166 = scalar_lea.vmem %s5, 512
      %v6167 = vld [vmem:[%s6166] sm:$0xf]
      %v6168 = vld [vmem:[%s6166 + $0x4] sm:$0xf]
      %v6169 = vld [vmem:[%s6166 + $0x8] sm:$0xf]
      %v6170 = vld [vmem:[%s6166 + $0xc] sm:$0xf]
      %v6171 = vld [vmem:[%s6166 + $0x10] sm:$0xf]
      %v6172 = vld [vmem:[%s6166 + $0x14] sm:$0xf]
      %v6173 = vld [vmem:[%s6166 + $0x18] sm:$0xf]
      %v6174 = vld [vmem:[%s6166 + $0x1c] sm:$0xf]
      %v6175 = vld [vmem:[%s6166 + $0x20] sm:$0xf]
      %v6176 = vld [vmem:[%s6166 + $0x24] sm:$0xf]
      %v6177 = vld [vmem:[%s6166 + $0x28] sm:$0xf]
      %v6178 = vld [vmem:[%s6166 + $0x2c] sm:$0xf]
      %v6179 = vld [vmem:[%s6166 + $0x30] sm:$0xf]
      %v6180 = vld [vmem:[%s6166 + $0x34] sm:$0xf]
      %v6181 = vld [vmem:[%s6166 + $0x38] sm:$0xf]
      %v6182 = vld [vmem:[%s6166 + $0x3c] sm:$0xf]
      %v6184 = vunpack.c.l.b16 %v6165
      %v6185 = vpack.c.b16 %v6184, %v6184
      %v6187 = vshrl.u32 %v6017, 16
      %v6189 = vrot.slane %v6187, 3
      %v6190 = vshll.u32 %v6017, 16
      %v6192 = vrot.slane %v6190, 4
      %v6193 = vor.u32 %v6189, %v6192
      %v6194 = vrot.slane %v5817, 3
      %v6195 = vrot.slane %v5820, 4
      %v6196 = vor.u32 %v6194, %v6195
      %v6197 = vsel %vm2183, %v6193, %v6196
      %v6198 = vrot.slane %v5826, 3
      %v6199 = vrot.slane %v5829, 4
      %v6200 = vor.u32 %v6198, %v6199
      %v6201 = vsel %vm2183, %v6196, %v6200
      %v6202 = vrot.slane %v5835, 3
      %v6203 = vrot.slane %v5838, 4
      %v6204 = vor.u32 %v6202, %v6203
      %v6205 = vsel %vm2183, %v6200, %v6204
      %v6206 = vrot.slane %v5844, 3
      %v6207 = vrot.slane %v5847, 4
      %v6208 = vor.u32 %v6206, %v6207
      %v6209 = vsel %vm2183, %v6204, %v6208
      %v6211 = vshrl.u32 %v6185, 16
      %v6213 = vrot.slane %v6211, 3
      %v6214 = vshll.u32 %v6185, 16
      %v6216 = vrot.slane %v6214, 4
      %v6217 = vor.u32 %v6213, %v6216
      %v6218 = vsel %vm2183, %v6208, %v6217
      %v6240 = vunpack.c.l.b16 %v6167
      %v6241 = vunpack.c.l.b16 %v6168
      %v6242 = vunpack.c.l.b16 %v6169
      %v6243 = vunpack.c.l.b16 %v6170
      %v6244 = vunpack.c.l.b16 %v6171
      %v6245 = vunpack.c.l.b16 %v6172
      %v6246 = vunpack.c.l.b16 %v6173
      %v6247 = vunpack.c.l.b16 %v6174
      %v6248 = vunpack.c.l.b16 %v6175
      %v6249 = vunpack.c.l.b16 %v6176
      %v6250 = vunpack.c.l.b16 %v6177
      %v6251 = vunpack.c.l.b16 %v6178
      %v6252 = vunpack.c.l.b16 %v6179
      %v6253 = vunpack.c.l.b16 %v6180
      %v6254 = vunpack.c.l.b16 %v6181
      %v6255 = vunpack.c.l.b16 %v6182
      %v6256 = vpack.c.b16 %v6241, %v6240
      %v6257 = vpack.c.b16 %v6243, %v6242
      %v6258 = vpack.c.b16 %v6245, %v6244
      %v6259 = vpack.c.b16 %v6247, %v6246
      %v6260 = vpack.c.b16 %v6249, %v6248
      %v6261 = vpack.c.b16 %v6251, %v6250
      %v6262 = vpack.c.b16 %v6253, %v6252
      %v6263 = vpack.c.b16 %v6255, %v6254
      %6272 = vmatprep.subr.bf16.mxu0 0
      %6273 = vmatpush1.bf16.msra.mxu0 %v6256
      %6274 = vmatprep.subr.bf16.mxu0 0
      %6275 = vmatpush1.bf16.msra.mxu0 %v6257
      %6276 = vmatprep.subr.bf16.mxu0 0
      %6277 = vmatpush1.bf16.msra.mxu0 %v6258
      %6278 = vmatprep.subr.bf16.mxu0 0
      %6279 = vmatpush1.bf16.msra.mxu0 %v6259
      %6280 = vmatprep.subr.bf16.mxu0 0
      %6281 = vmatpush1.bf16.msra.mxu0 %v6260
      %6282 = vmatprep.subr.bf16.mxu0 0
      %6283 = vmatpush1.bf16.msra.mxu0 %v6261
      %6284 = vmatprep.subr.bf16.mxu0 0
      %6285 = vmatpush1.bf16.msra.mxu0 %v6262
      %6286 = vmatprep.subr.bf16.mxu0 0
      %6287 = vmatpush1.bf16.msra.mxu0 %v6263
      %6288 = vmatprep.subr.bf16.mxu0 0
      %6289 = vmatpush1.bf16.msra.mxu0 0
      %6290 = vmatprep.subr.bf16.mxu0 0
      %6291 = vmatpush1.bf16.msra.mxu0 0
      %6292 = vmatprep.subr.bf16.mxu0 0
      %6293 = vmatpush1.bf16.msra.mxu0 0
      %6294 = vmatprep.subr.bf16.mxu0 0
      %6295 = vmatpush1.bf16.msra.mxu0 0
      %6296 = vmatprep.subr.bf16.mxu0 0
      %6297 = vmatpush1.bf16.msra.mxu0 0
      %6298 = vmatprep.subr.bf16.mxu0 0
      %6299 = vmatpush1.bf16.msra.mxu0 0
      %6300 = vmatprep.subr.bf16.mxu0 0
      %6301 = vmatpush1.bf16.msra.mxu0 0
      %6302 = vmatprep.subr.bf16.mxu0 0
      %6303 = vmatpush1.bf16.msra.mxu0 0
      %6304 = vmatprep.mubr.bf16.mxu0 0
      %6305 = vmatmul.mubr.bf16.gmra.mrb[0].mxu0 %v6197
      %v6306 = vpop.f32.mrb[0].mxu0
      %v6307 = vadd.f32 0.0, %v6306
      %v6308 = vpop.f32.mrb[0].mxu0
      %v6309 = vpop.f32.mrb[0].mxu0
      %v6310 = vadd.f32 0.0, %v6309
      %v6311 = vpop.f32.mrb[0].mxu0
      %6312 = vmatprep.mubr.bf16.mxu0 0
      %6313 = vmatmul.mubr.bf16.gmra.mrb[0].mxu0 %v6201
      %v6314 = vpop.f32.mrb[0].mxu0
      %v6315 = vadd.f32 0.0, %v6314
      %v6316 = vpop.f32.mrb[0].mxu0
      %v6317 = vpop.f32.mrb[0].mxu0
      %v6318 = vadd.f32 0.0, %v6317
      %v6319 = vpop.f32.mrb[0].mxu0
      %6320 = vmatprep.mubr.bf16.mxu0 0
      %6321 = vmatmul.mubr.bf16.gmra.mrb[0].mxu0 %v6205
      %v6322 = vpop.f32.mrb[0].mxu0
      %v6323 = vadd.f32 0.0, %v6322
      %v6324 = vpop.f32.mrb[0].mxu0
      %v6325 = vpop.f32.mrb[0].mxu0
      %v6326 = vadd.f32 0.0, %v6325
      %v6327 = vpop.f32.mrb[0].mxu0
      %6328 = vmatprep.mubr.bf16.mxu0 0
      %6329 = vmatmul.mubr.bf16.gmra.mrb[0].mxu0 %v6209
      %v6330 = vpop.f32.mrb[0].mxu0
      %v6331 = vadd.f32 0.0, %v6330
      %v6332 = vpop.f32.mrb[0].mxu0
      %v6333 = vpop.f32.mrb[0].mxu0
      %v6334 = vadd.f32 0.0, %v6333
      %v6335 = vpop.f32.mrb[0].mxu0
      %6336 = vmatprep.mubr.bf16.mxu0 0
      %6337 = vmatmul.mubr.bf16.gmra.mrb[0].mxu0 %v6218
      %v6338 = vpop.f32.mrb[0].mxu0
      %v6339 = vadd.f32 0.0, %v6338
      %v6340 = vpop.f32.mrb[0].mxu0
      %v6341 = vpop.f32.mrb[0].mxu0
      %v6342 = vadd.f32 0.0, %v6341
      %v6343 = vpop.f32.mrb[0].mxu0
      %6344 = vdwg.mxu0
      %v6345 = vadd.f32 %v6155, %v6307
      %v6346 = vadd.f32 %v6156, %v6310
      %v6347 = vadd.f32 %v6157, %v6315
      %v6348 = vadd.f32 %v6158, %v6318
      %v6349 = vadd.f32 %v6159, %v6323
      %v6350 = vadd.f32 %v6160, %v6326
      %v6351 = vadd.f32 %v6161, %v6331
      %v6352 = vadd.f32 %v6162, %v6334
      %v6353 = vadd.f32 %v6163, %v6339
      %v6354 = vadd.f32 %v6164, %v6342
      %v6355 = vld [vmem:[%s6] sm:$0x1]
      %v6357 = vlaneseq
      %v6358 = vshrl.u32 %v6357, 7
      %v6359 = vsub.s32 0, %v6358
      %v6360 = vrot.slane %v6355, %v6359
      %v6362 = vadd.f32 %v6345, %v6360
      %v6363 = vadd.f32 %v6346, %v6360
      %v6364 = vadd.f32 %v6347, %v6360
      %v6365 = vadd.f32 %v6348, %v6360
      %v6366 = vadd.f32 %v6349, %v6360
      %v6367 = vadd.f32 %v6350, %v6360
      %v6368 = vadd.f32 %v6351, %v6360
      %v6369 = vadd.f32 %v6352, %v6360
      %v6370 = vadd.f32 %v6353, %v6360
      %v6371 = vadd.f32 %v6354, %v6360
      %v6372 = vsub.f32 0.0, %v6362
      %v6373 = vsub.f32 0.0, %v6363
      %v6374 = vsub.f32 0.0, %v6364
      %v6375 = vsub.f32 0.0, %v6365
      %v6376 = vsub.f32 0.0, %v6366
      %v6377 = vsub.f32 0.0, %v6367
      %v6378 = vsub.f32 0.0, %v6368
      %v6379 = vsub.f32 0.0, %v6369
      %v6380 = vsub.f32 0.0, %v6370
      %v6381 = vsub.f32 0.0, %v6371
      %v6382 = vmul.f32 %v6372, 1.442695
      %v6383 = vpow.pop %v6382
      %v6384 = vmul.f32 %v6373, 1.442695
      %v6385 = vpow.pop %v6384
      %v6386 = vmul.f32 %v6374, 1.442695
      %v6387 = vpow.pop %v6386
      %v6388 = vmul.f32 %v6375, 1.442695
      %v6389 = vpow.pop %v6388
      %v6390 = vmul.f32 %v6376, 1.442695
      %v6391 = vpow.pop %v6390
      %v6392 = vmul.f32 %v6377, 1.442695
      %v6393 = vpow.pop %v6392
      %v6394 = vmul.f32 %v6378, 1.442695
      %v6395 = vpow.pop %v6394
      %v6396 = vmul.f32 %v6379, 1.442695
      %v6397 = vpow.pop %v6396
      %v6398 = vmul.f32 %v6380, 1.442695
      %v6399 = vpow.pop %v6398
      %v6400 = vmul.f32 %v6381, 1.442695
      %v6401 = vpow.pop %v6400
      %v6402 = vadd.f32 %v6383, 1.0
      %v6403 = vadd.f32 %v6385, 1.0
      %v6404 = vadd.f32 %v6387, 1.0
      %v6405 = vadd.f32 %v6389, 1.0
      %v6406 = vadd.f32 %v6391, 1.0
      %v6407 = vadd.f32 %v6393, 1.0
      %v6408 = vadd.f32 %v6395, 1.0
      %v6409 = vadd.f32 %v6397, 1.0
      %v6410 = vadd.f32 %v6399, 1.0
      %v6411 = vadd.f32 %v6401, 1.0
      %v6412 = vrcp.pop %v6402
      %v6413 = vmul.f32 1.0, %v6412
      %v6414 = vrcp.pop %v6403
      %v6415 = vmul.f32 1.0, %v6414
      %v6416 = vrcp.pop %v6404
      %v6417 = vmul.f32 1.0, %v6416
      %v6418 = vrcp.pop %v6405
      %v6419 = vmul.f32 1.0, %v6418
      %v6420 = vrcp.pop %v6406
      %v6421 = vmul.f32 1.0, %v6420
      %v6422 = vrcp.pop %v6407
      %v6423 = vmul.f32 1.0, %v6422
      %v6424 = vrcp.pop %v6408
      %v6425 = vmul.f32 1.0, %v6424
      %v6426 = vrcp.pop %v6409
      %v6427 = vmul.f32 1.0, %v6426
      %v6428 = vrcp.pop %v6410
      %v6429 = vmul.f32 1.0, %v6428
      %v6430 = vrcp.pop %v6411
      %v6431 = vmul.f32 1.0, %v6430
      %v6432 = vpack.c.bf16 %v6415, %v6413
      %v6433 = vpack.c.bf16 %v6419, %v6417
      %v6434 = vpack.c.bf16 %v6423, %v6421
      %v6435 = vpack.c.bf16 %v6427, %v6425
      %v6436 = vpack.c.bf16 %v6431, %v6429
      %v6442 = vunpack.c.l.b16 %v6432
      %v6443 = vunpack.c.h.b16 %v6432
      %v6444 = vunpack.c.l.b16 %v6433
      %v6445 = vunpack.c.h.b16 %v6433
      %v6446 = vunpack.c.l.b16 %v6434
      %v6447 = vunpack.c.h.b16 %v6434
      %v6448 = vunpack.c.l.b16 %v6435
      %v6449 = vunpack.c.h.b16 %v6435
      %v6450 = vunpack.c.l.b16 %v6436
      %v6451 = vunpack.c.h.b16 %v6436
      %v6452 = vpack.c.b16 %v6442, %v6442
      %v6453 = vpack.c.b16 %v6443, %v6443
      %v6454 = vpack.c.b16 %v6444, %v6444
      %v6455 = vpack.c.b16 %v6445, %v6445
      %v6456 = vpack.c.b16 %v6446, %v6446
      %v6457 = vpack.c.b16 %v6447, %v6447
      %v6458 = vpack.c.b16 %v6448, %v6448
      %v6459 = vpack.c.b16 %v6449, %v6449
      %v6460 = vpack.c.b16 %v6450, %v6450
      %v6461 = vpack.c.b16 %v6451, %v6451
      %6472 = vst [vmem:[%s278] sm:$0xf] %v6452
      %6473 = vst [vmem:[%s278 + $0x4] sm:$0xf] %v6453
      %6474 = vst [vmem:[%s278 + $0x8] sm:$0xf] %v6454
      %6475 = vst [vmem:[%s278 + $0xc] sm:$0xf] %v6455
      %6476 = vst [vmem:[%s278 + $0x10] sm:$0xf] %v6456
      %6477 = vst [vmem:[%s278 + $0x14] sm:$0xf] %v6457
      %6478 = vst [vmem:[%s278 + $0x18] sm:$0xf] %v6458
      %6479 = vst [vmem:[%s278 + $0x1c] sm:$0xf] %v6459
      %6480 = vst [vmem:[%s278 + $0x20] sm:$0xf] %v6460
      %6481 = vst [vmem:[%s278 + $0x24] sm:$0xf] %v6461
      %p6482 = scmp.lt.s32.totalorder %s18, 1
      %s6483 = scalar_select %p6482, %s18, 1
      %s6484 = smul.addr %s6483, 10
      %s6485 = smul.addr %s6484, 4
      %s6486 = scalar_lea.vmem %s7, %s6485
      // Predicated region
      $region49: #{decoding_network_forward.1} parent=47 // pred_check
        %p6487 = pneg %p188
      $region50: #{decoding_network_forward.1} parent=47 // pred_check_branch
        %6489 = sbr.rel (%p6487) target = $region52
      $region51: #{decoding_network_forward.1} parent=47 // pred_region
        _
      $region52: #{decoding_network_forward.1} parent=47 // pred_fallthru
        _
    $region48: #{decoding_network_forward.1} parent=5 // pred_fallthru
      _
    %p6490 = scmp.le.s32.totalorder 2, %s13
    // Predicated region
    $region53: #{decoding_network_forward.1} parent=5 // pred_check
      %p6491 = pneg %p6490
    $region54: #{decoding_network_forward.1} parent=5 // pred_check_branch
      %6493 = sbr.rel (%p6491) target = $region56
    $region55: #{decoding_network_forward.1} parent=5 // pred_region
      %s6494 = ssub.s32 %s13, 2
      // Predicated region
      $region57: #{decoding_network_forward.1} parent=55 // pred_check
        %p6495 = pneg %p194
      $region58: #{decoding_network_forward.1} parent=55 // pred_check_branch
        %6497 = sbr.rel (%p6495) target = $region60
      $region59: #{decoding_network_forward.1} parent=55 // pred_region
        %p6498 = scmp.lt.s32.totalorder %s19, 1
        %s6499 = scalar_select %p6498, %s19, 1
        %s6500 = smul.addr %s6499, 10
        %s6501 = smul.addr %s6500, 4
        %s6502 = scalar_lea.vmem %s7, %s6501
      $region60: #{decoding_network_forward.1} parent=55 // pred_fallthru
        _
    $region56: #{decoding_network_forward.1} parent=5 // pred_fallthru
      _
  $region6: #{decoding_network_forward.1} parent=0 // loop_footer
    %s17 = sadd.s32 1, %s13
  $region7: #{decoding_network_forward.1} parent=0 // loop_footer_branch
    %12 = sbr.rel target = $region3
  $region8: #{decoding_network_forward.1} parent=0 // loop_exit
    _

</llo_original>
